<compile_context>
chip_gen: v6e
topology: v6e:2x2x1
jax: 0.10.0
libtpu: 0.0.40
codegen_flags: <defaults>
</compile_context>

<pallas_src>
import jax
import jax.numpy as jnp
from jax.experimental import pallas as pl
from jax.experimental.pallas import tpu as pltpu

LEAK = 0.2
BN_EPS = 1e-5
LANE = 128


def _round_up(x, m):
    return ((x + m - 1) // m) * m


def _leaky(x):
    return jnp.where(x >= 0, x, LEAK * x)


def _bn_eval(x, gamma, beta, mean, var):
    return (x - mean) * jax.lax.rsqrt(var + BN_EPS) * gamma + beta


def _fold_bn(w, b, g, be, m, v):
    """Fold eval-mode BN into the preceding Linear: y*s + (be - m*s), s = g*rsqrt(v+eps)."""
    s = g * jax.lax.rsqrt(v + BN_EPS)          # (1, feat)
    return w * s, (b - m) * s + be


# ---------------------------------------------------------------------------
# Kernel: 5 fused matmuls (bf16 operands, f32 accumulation) + LeakyReLU + Tanh.
# ---------------------------------------------------------------------------
def generator_kernel(z_ref,
                     w1_ref, b1_ref,
                     w2_ref, b2_ref,
                     w3_ref, b3_ref,
                     w4_ref, b4_ref,
                     w5_ref, b5_ref,
                     out_ref):
    # Block 1: Linear(latent_pad,128) -> LeakyReLU (Dropout = identity in eval)
    h = jnp.dot(z_ref[...], w1_ref[...], preferred_element_type=jnp.float32) + b1_ref[...]
    h = _leaky(h)

    # Block 2: Linear(128,256) [+ folded BN] -> LeakyReLU
    h = jnp.dot(h.astype(jnp.bfloat16), w2_ref[...],
                preferred_element_type=jnp.float32) + b2_ref[...]
    h = _leaky(h)

    # Block 3: Linear(256,512) [+ folded BN] -> LeakyReLU
    h = jnp.dot(h.astype(jnp.bfloat16), w3_ref[...],
                preferred_element_type=jnp.float32) + b3_ref[...]
    h = _leaky(h)

    # Block 4: Linear(512,1024) [+ folded BN] -> LeakyReLU
    h = jnp.dot(h.astype(jnp.bfloat16), w4_ref[...],
                preferred_element_type=jnp.float32) + b4_ref[...]
    h = _leaky(h)

    # Block 5: Linear(1024,out_pad) -> Tanh
    h = jnp.dot(h.astype(jnp.bfloat16), w5_ref[...],
                preferred_element_type=jnp.float32) + b5_ref[...]
    out_ref[...] = jnp.tanh(h).astype(out_ref.dtype)


# ---------------------------------------------------------------------------
# Host-side parameter preparation: BN folding, lane padding, bf16 cast.
# ---------------------------------------------------------------------------
def fold_and_pad_params(params, latent_dim, out_dim):
    """Returns f32 folded + padded params plus padded dims (k1, n5)."""
    k1 = _round_up(latent_dim, LANE)
    n5 = _round_up(out_dim, LANE)

    w1 = params["w1"].astype(jnp.float32)
    b1 = params["b1"].astype(jnp.float32)
    w2, b2 = _fold_bn(params["w2"], params["b2"],
                      params["g2"], params["be2"], params["m2"], params["v2"])
    w3, b3 = _fold_bn(params["w3"], params["b3"],
                      params["g3"], params["be3"], params["m3"], params["v3"])
    w4, b4 = _fold_bn(params["w4"], params["b4"],
                      params["g4"], params["be4"], params["m4"], params["v4"])
    w5 = params["w5"].astype(jnp.float32)
    b5 = params["b5"].astype(jnp.float32)

    # Pad K of layer 1 (extra rows = 0) and N of layer 5 (extra cols = 0).
    w1p = jnp.zeros((k1, w1.shape[1]), jnp.float32).at[:latent_dim, :].set(w1)
    w5p = jnp.zeros((w5.shape[0], n5), jnp.float32).at[:, :out_dim].set(w5)
    b5p = jnp.zeros((1, n5), jnp.float32).at[:, :out_dim].set(b5)

    return {"w1": w1p, "b1": b1, "w2": w2, "b2": b2, "w3": w3, "b3": b3,
            "w4": w4, "b4": b4, "w5": w5p, "b5": b5p,
            "k1": k1, "n5": n5, "latent_dim": latent_dim, "out_dim": out_dim}


def to_bf16_weights(pf):
    out = dict(pf)
    for k in ("w1", "w2", "w3", "w4", "w5"):
        out[k] = pf[k].astype(jnp.bfloat16)
    return out


# ---------------------------------------------------------------------------
# pallas_call wrapper
# ---------------------------------------------------------------------------
def generator_forward(z, params, *, tb=None):
    B, latent_dim = z.shape
    out_dim = params["w5"].shape[1]

    pp = to_bf16_weights(fold_and_pad_params(params, latent_dim, out_dim))
    k1, n5 = pp["k1"], pp["n5"]

    # Batch tiling: tb <= 128 (fills MXU M, keeps activation tiles small, lets
    # Pallas pipeline z/out DMA against compute; weights stay VMEM-resident
    # across batch tiles via constant index maps).
    if tb is None:
        tb = min(128, _round_up(B, 8))
    b_pad = _round_up(B, tb)

    z_p = jnp.zeros((b_pad, k1), jnp.bfloat16)
    z_p = z_p.at[:B, :latent_dim].set(z.astype(jnp.bfloat16))

    ordered = [pp["w1"], pp["b1"], pp["w2"], pp["b2"], pp["w3"], pp["b3"],
               pp["w4"], pp["b4"], pp["w5"], pp["b5"]]

    def const_spec(arr):
        shp = arr.shape
        return pl.BlockSpec(shp, lambda i, _s=shp: (0,) * len(_s))

    grid = (b_pad // tb,)
    in_specs = [pl.BlockSpec((tb, k1), lambda i: (i, 0))] + [const_spec(a) for a in ordered]

    out_pad = pl.pallas_call(
        generator_kernel,
        out_shape=jax.ShapeDtypeStruct((b_pad, n5), jnp.float32),
        grid=grid,
        in_specs=in_specs,
        out_specs=pl.BlockSpec((tb, n5), lambda i: (i, 0)),
        compiler_params=pltpu.CompilerParams(
            dimension_semantics=("parallel",),
            vmem_limit_bytes=32 * 1024 * 1024),
    )(z_p, *ordered)

    return out_pad[:B, :out_dim]


# ---------------------------------------------------------------------------
# References (pure JAX) and parameter init
# ---------------------------------------------------------------------------
def forward_from_prepped(z, pp):
    """Pure-JAX forward using folded+padded params (dtype of pp['w*'] decides matmul dtype)."""
    B, latent_dim = z.shape
    wdt = pp["w1"].dtype
    zp = jnp.zeros((B, pp["k1"]), wdt).at[:, :latent_dim].set(z.astype(wdt))
    h = _leaky(jnp.dot(zp, pp["w1"], preferred_element_type=jnp.float32) + pp["b1"])
    h = _leaky(jnp.dot(h.astype(wdt), pp["w2"], preferred_element_type=jnp.float32) + pp["b2"])
    h = _leaky(jnp.dot(h.astype(wdt), pp["w3"], preferred_element_type=jnp.float32) + pp["b3"])
    h = _leaky(jnp.dot(h.astype(wdt), pp["w4"], preferred_element_type=jnp.float32) + pp["b4"])
    h = jnp.tanh(jnp.dot(h.astype(wdt), pp["w5"], preferred_element_type=jnp.float32) + pp["b5"])
    return h[:, :pp["out_dim"]]


def reference_forward_f32(z, p):
    h = _leaky(z @ p["w1"] + p["b1"])
    h = _leaky(_bn_eval(h @ p["w2"] + p["b2"], p["g2"], p["be2"], p["m2"], p["v2"]))
    h = _leaky(_bn_eval(h @ p["w3"] + p["b3"], p["g3"], p["be3"], p["m3"], p["v3"]))
    h = _leaky(_bn_eval(h @ p["w4"] + p["b4"], p["g4"], p["be4"], p["m4"], p["v4"]))
    return jnp.tanh(h @ p["w5"] + p["b5"])


def init_params(key, latent_dim, out_dim):
    dims = [latent_dim, 128, 256, 512, 1024, out_dim]
    keys = jax.random.split(key, 32)
    p = {}
    ki = 0
    for li in range(5):
        fan_in, fan_out = dims[li], dims[li + 1]
        p[f"w{li+1}"] = (jax.random.normal(keys[ki], (fan_in, fan_out), jnp.float32)
                         * (1.0 / jnp.sqrt(fan_in)))
        ki += 1
        p[f"b{li+1}"] = (jax.random.normal(keys[ki], (1, fan_out), jnp.float32) * 0.01)
        ki += 1
    for li, feat in zip((2, 3, 4), (256, 512, 1024)):
        p[f"g{li}"] = 1.0 + 0.05 * jax.random.normal(keys[ki], (1, feat), jnp.float32); ki += 1
        p[f"be{li}"] = 0.05 * jax.random.normal(keys[ki], (1, feat), jnp.float32); ki += 1
        p[f"m{li}"] = 0.1 * jax.random.normal(keys[ki], (1, feat), jnp.float32); ki += 1
        p[f"v{li}"] = 1.0 + 0.1 * jax.nn.softplus(
            jax.random.normal(keys[ki], (1, feat), jnp.float32)); ki += 1
    return p


if __name__ == "__main__":
    key = jax.random.PRNGKey(0)
    k_z, k_p = jax.random.split(key)

    batch = 8
    latent_dim = 32
    output_dim = 64

    z = jax.random.normal(k_z, (batch, latent_dim), jnp.float32)
    params = init_params(k_p, latent_dim, output_dim)

    out = jax.block_until_ready(generator_forward(z, params))
    assert out.shape == (batch, output_dim)

    # 1) BN folding is exact in f32 (host math check, no bf16 noise).
    pf = fold_and_pad_params(params, latent_dim, output_dim)
    ref_folded_f32 = forward_from_prepped(z, pf)
    ref_bn_f32 = reference_forward_f32(z, params)
    assert jnp.allclose(ref_folded_f32, ref_bn_f32, atol=1e-5, rtol=1e-5), \
        "BN folding mismatch vs f32 reference"

    # 2) Kernel matches a pure-JAX reference with identical bf16/f32-acc numerics.
    ref_bf16 = forward_from_prepped(z, to_bf16_weights(pf))
    assert jnp.allclose(out, ref_bf16, atol=2e-3, rtol=2e-3), \
        "kernel mismatch vs bf16-matched JAX reference"

    # 3) Sanity: end-to-end close to full-precision reference (bf16 weight quantization noise).
    assert float(jnp.max(jnp.abs(out - ref_bn_f32))) < 0.15, \
        "kernel deviates too much from f32 reference"

    print("KERNEL_OK")
</pallas_src>

<mosaic_0001>
module attributes {stable_mosaic.version = 11 : i64} {
  func.func @generator_kernel(%arg0: i32, %arg1: memref<8x128xbf16, #tpu.memory_space<vmem>>, %arg2: memref<128x128xbf16, #tpu.memory_space<vmem>>, %arg3: memref<1x128xf32, #tpu.memory_space<vmem>>, %arg4: memref<128x256xbf16, #tpu.memory_space<vmem>>, %arg5: memref<1x256xf32, #tpu.memory_space<vmem>>, %arg6: memref<256x512xbf16, #tpu.memory_space<vmem>>, %arg7: memref<1x512xf32, #tpu.memory_space<vmem>>, %arg8: memref<512x1024xbf16, #tpu.memory_space<vmem>>, %arg9: memref<1x1024xf32, #tpu.memory_space<vmem>>, %arg10: memref<1024x128xbf16, #tpu.memory_space<vmem>>, %arg11: memref<1x128xf32, #tpu.memory_space<vmem>>, %arg12: memref<8x128xf32, #tpu.memory_space<vmem>>) attributes {dimension_semantics = [#tpu.dimension_semantics<parallel>], iteration_bounds = array<i64: 1>, scalar_prefetch = 0 : i64, scratch_operands = 0 : i64, tpu.core_type = #tpu.core_type<tc>, window_params = [{transform_indices = @transform_0, window_bounds = array<i64: 8, 128>}, {pipeline_mode = #tpu.pipeline_mode<synchronous>, transform_indices = @transform_1, window_bounds = array<i64: 128, 128>}, {pipeline_mode = #tpu.pipeline_mode<synchronous>, transform_indices = @transform_2, window_bounds = array<i64: 1, 128>}, {pipeline_mode = #tpu.pipeline_mode<synchronous>, transform_indices = @transform_3, window_bounds = array<i64: 128, 256>}, {pipeline_mode = #tpu.pipeline_mode<synchronous>, transform_indices = @transform_4, window_bounds = array<i64: 1, 256>}, {pipeline_mode = #tpu.pipeline_mode<synchronous>, transform_indices = @transform_5, window_bounds = array<i64: 256, 512>}, {pipeline_mode = #tpu.pipeline_mode<synchronous>, transform_indices = @transform_6, window_bounds = array<i64: 1, 512>}, {pipeline_mode = #tpu.pipeline_mode<synchronous>, transform_indices = @transform_7, window_bounds = array<i64: 512, 1024>}, {pipeline_mode = #tpu.pipeline_mode<synchronous>, transform_indices = @transform_8, window_bounds = array<i64: 1, 1024>}, {pipeline_mode = #tpu.pipeline_mode<synchronous>, transform_indices = @transform_9, window_bounds = array<i64: 1024, 128>}, {pipeline_mode = #tpu.pipeline_mode<synchronous>, transform_indices = @transform_10, window_bounds = array<i64: 1, 128>}, {transform_indices = @transform_11, window_bounds = array<i64: 8, 128>}]} {
    %c0 = arith.constant 0 : index
    %c0_0 = arith.constant 0 : index
    %0 = vector.load %arg1[%c0, %c0_0] : memref<8x128xbf16, #tpu.memory_space<vmem>>, vector<8x128xbf16>
    %c0_1 = arith.constant 0 : index
    %c0_2 = arith.constant 0 : index
    %1 = vector.load %arg2[%c0_1, %c0_2] : memref<128x128xbf16, #tpu.memory_space<vmem>>, vector<128x128xbf16>
    %cst = arith.constant dense<0.000000e+00> : vector<8x128xf32>
    %2 = tpu.matmul %0, %1, %cst {dimension_numbers = #tpu.dot_dimension_numbers<[1], [0], [0], [1], [0, 0, 1, 1], [], []>} : vector<8x128xbf16>, vector<128x128xbf16>, vector<8x128xf32> -> vector<8x128xf32>
    %c0_3 = arith.constant 0 : index
    %c0_4 = arith.constant 0 : index
    %3 = vector.load %arg3[%c0_3, %c0_4] : memref<1x128xf32, #tpu.memory_space<vmem>>, vector<1x128xf32>
    %4 = vector.broadcast %3 : vector<1x128xf32> to vector<8x128xf32>
    %5 = arith.addf %2, %4 : vector<8x128xf32>
    %cst_5 = arith.constant 0.000000e+00 : f32
    %6 = vector.broadcast %cst_5 : f32 to vector<8x128xf32>
    %7 = arith.cmpf oge, %5, %6 : vector<8x128xf32>
    %cst_6 = arith.constant 2.000000e-01 : f32
    %8 = vector.broadcast %cst_6 : f32 to vector<8x128xf32>
    %9 = arith.mulf %8, %5 : vector<8x128xf32>
    %10 = arith.select %7, %5, %9 : vector<8x128xi1>, vector<8x128xf32>
    %11 = arith.truncf %10 : vector<8x128xf32> to vector<8x128xbf16>
    %c0_7 = arith.constant 0 : index
    %c0_8 = arith.constant 0 : index
    %12 = vector.load %arg4[%c0_7, %c0_8] : memref<128x256xbf16, #tpu.memory_space<vmem>>, vector<128x256xbf16>
    %cst_9 = arith.constant dense<0.000000e+00> : vector<8x256xf32>
    %13 = tpu.matmul %11, %12, %cst_9 {dimension_numbers = #tpu.dot_dimension_numbers<[1], [0], [0], [1], [0, 0, 1, 1], [], []>} : vector<8x128xbf16>, vector<128x256xbf16>, vector<8x256xf32> -> vector<8x256xf32>
    %c0_10 = arith.constant 0 : index
    %c0_11 = arith.constant 0 : index
    %14 = vector.load %arg5[%c0_10, %c0_11] : memref<1x256xf32, #tpu.memory_space<vmem>>, vector<1x256xf32>
    %15 = vector.broadcast %14 : vector<1x256xf32> to vector<8x256xf32>
    %16 = arith.addf %13, %15 : vector<8x256xf32>
    %cst_12 = arith.constant 0.000000e+00 : f32
    %17 = vector.broadcast %cst_12 : f32 to vector<8x256xf32>
    %18 = arith.cmpf oge, %16, %17 : vector<8x256xf32>
    %cst_13 = arith.constant 2.000000e-01 : f32
    %19 = vector.broadcast %cst_13 : f32 to vector<8x256xf32>
    %20 = arith.mulf %19, %16 : vector<8x256xf32>
    %21 = arith.select %18, %16, %20 : vector<8x256xi1>, vector<8x256xf32>
    %22 = arith.truncf %21 : vector<8x256xf32> to vector<8x256xbf16>
    %c0_14 = arith.constant 0 : index
    %c0_15 = arith.constant 0 : index
    %23 = vector.load %arg6[%c0_14, %c0_15] : memref<256x512xbf16, #tpu.memory_space<vmem>>, vector<256x512xbf16>
    %cst_16 = arith.constant dense<0.000000e+00> : vector<8x512xf32>
    %24 = tpu.matmul %22, %23, %cst_16 {dimension_numbers = #tpu.dot_dimension_numbers<[1], [0], [0], [1], [0, 0, 1, 1], [], []>} : vector<8x256xbf16>, vector<256x512xbf16>, vector<8x512xf32> -> vector<8x512xf32>
    %c0_17 = arith.constant 0 : index
    %c0_18 = arith.constant 0 : index
    %25 = vector.load %arg7[%c0_17, %c0_18] : memref<1x512xf32, #tpu.memory_space<vmem>>, vector<1x512xf32>
    %26 = vector.broadcast %25 : vector<1x512xf32> to vector<8x512xf32>
    %27 = arith.addf %24, %26 : vector<8x512xf32>
    %cst_19 = arith.constant 0.000000e+00 : f32
    %28 = vector.broadcast %cst_19 : f32 to vector<8x512xf32>
    %29 = arith.cmpf oge, %27, %28 : vector<8x512xf32>
    %cst_20 = arith.constant 2.000000e-01 : f32
    %30 = vector.broadcast %cst_20 : f32 to vector<8x512xf32>
    %31 = arith.mulf %30, %27 : vector<8x512xf32>
    %32 = arith.select %29, %27, %31 : vector<8x512xi1>, vector<8x512xf32>
    %33 = arith.truncf %32 : vector<8x512xf32> to vector<8x512xbf16>
    %c0_21 = arith.constant 0 : index
    %c0_22 = arith.constant 0 : index
    %34 = vector.load %arg8[%c0_21, %c0_22] : memref<512x1024xbf16, #tpu.memory_space<vmem>>, vector<512x1024xbf16>
    %cst_23 = arith.constant dense<0.000000e+00> : vector<8x1024xf32>
    %35 = tpu.matmul %33, %34, %cst_23 {dimension_numbers = #tpu.dot_dimension_numbers<[1], [0], [0], [1], [0, 0, 1, 1], [], []>} : vector<8x512xbf16>, vector<512x1024xbf16>, vector<8x1024xf32> -> vector<8x1024xf32>
    %c0_24 = arith.constant 0 : index
    %c0_25 = arith.constant 0 : index
    %36 = vector.load %arg9[%c0_24, %c0_25] : memref<1x1024xf32, #tpu.memory_space<vmem>>, vector<1x1024xf32>
    %37 = vector.broadcast %36 : vector<1x1024xf32> to vector<8x1024xf32>
    %38 = arith.addf %35, %37 : vector<8x1024xf32>
    %cst_26 = arith.constant 0.000000e+00 : f32
    %39 = vector.broadcast %cst_26 : f32 to vector<8x1024xf32>
    %40 = arith.cmpf oge, %38, %39 : vector<8x1024xf32>
    %cst_27 = arith.constant 2.000000e-01 : f32
    %41 = vector.broadcast %cst_27 : f32 to vector<8x1024xf32>
    %42 = arith.mulf %41, %38 : vector<8x1024xf32>
    %43 = arith.select %40, %38, %42 : vector<8x1024xi1>, vector<8x1024xf32>
    %44 = arith.truncf %43 : vector<8x1024xf32> to vector<8x1024xbf16>
    %c0_28 = arith.constant 0 : index
    %c0_29 = arith.constant 0 : index
    %45 = vector.load %arg10[%c0_28, %c0_29] : memref<1024x128xbf16, #tpu.memory_space<vmem>>, vector<1024x128xbf16>
    %cst_30 = arith.constant dense<0.000000e+00> : vector<8x128xf32>
    %46 = tpu.matmul %44, %45, %cst_30 {dimension_numbers = #tpu.dot_dimension_numbers<[1], [0], [0], [1], [0, 0, 1, 1], [], []>} : vector<8x1024xbf16>, vector<1024x128xbf16>, vector<8x128xf32> -> vector<8x128xf32>
    %c0_31 = arith.constant 0 : index
    %c0_32 = arith.constant 0 : index
    %47 = vector.load %arg11[%c0_31, %c0_32] : memref<1x128xf32, #tpu.memory_space<vmem>>, vector<1x128xf32>
    %48 = vector.broadcast %47 : vector<1x128xf32> to vector<8x128xf32>
    %49 = arith.addf %46, %48 : vector<8x128xf32>
    %50 = math.tanh %49 : vector<8x128xf32>
    %c0_33 = arith.constant 0 : index
    %c0_34 = arith.constant 0 : index
    %51 = vector.load %arg12[%c0_33, %c0_34] : memref<8x128xf32, #tpu.memory_space<vmem>>, vector<8x128xf32>
    tpu.vector_store %arg12[%c0_33, %c0_34], %50 {strides = array<i32>} : memref<8x128xf32, #tpu.memory_space<vmem>>, vector<8x128xf32>,
    return
  }
  func.func @transform_0(%arg0: i32) -> (i32, i32) {
    %c0_i32 = arith.constant 0 : i32
    %c0_i32_0 = arith.constant 0 : i32
    return %arg0, %c0_i32 : i32, i32
  }
  func.func @transform_1(%arg0: i32) -> (i32, i32) {
    %c0_i32 = arith.constant 0 : i32
    %c0_i32_0 = arith.constant 0 : i32
    %c0_i32_1 = arith.constant 0 : i32
    return %c0_i32, %c0_i32_0 : i32, i32
  }
  func.func @transform_2(%arg0: i32) -> (i32, i32) {
    %c0_i32 = arith.constant 0 : i32
    %c0_i32_0 = arith.constant 0 : i32
    %c0_i32_1 = arith.constant 0 : i32
    return %c0_i32, %c0_i32_0 : i32, i32
  }
  func.func @transform_3(%arg0: i32) -> (i32, i32) {
    %c0_i32 = arith.constant 0 : i32
    %c0_i32_0 = arith.constant 0 : i32
    %c0_i32_1 = arith.constant 0 : i32
    return %c0_i32, %c0_i32_0 : i32, i32
  }
  func.func @transform_4(%arg0: i32) -> (i32, i32) {
    %c0_i32 = arith.constant 0 : i32
    %c0_i32_0 = arith.constant 0 : i32
    %c0_i32_1 = arith.constant 0 : i32
    return %c0_i32, %c0_i32_0 : i32, i32
  }
  func.func @transform_5(%arg0: i32) -> (i32, i32) {
    %c0_i32 = arith.constant 0 : i32
    %c0_i32_0 = arith.constant 0 : i32
    %c0_i32_1 = arith.constant 0 : i32
    return %c0_i32, %c0_i32_0 : i32, i32
  }
  func.func @transform_6(%arg0: i32) -> (i32, i32) {
    %c0_i32 = arith.constant 0 : i32
    %c0_i32_0 = arith.constant 0 : i32
    %c0_i32_1 = arith.constant 0 : i32
    return %c0_i32, %c0_i32_0 : i32, i32
  }
  func.func @transform_7(%arg0: i32) -> (i32, i32) {
    %c0_i32 = arith.constant 0 : i32
    %c0_i32_0 = arith.constant 0 : i32
    %c0_i32_1 = arith.constant 0 : i32
    return %c0_i32, %c0_i32_0 : i32, i32
  }
  func.func @transform_8(%arg0: i32) -> (i32, i32) {
    %c0_i32 = arith.constant 0 : i32
    %c0_i32_0 = arith.constant 0 : i32
    %c0_i32_1 = arith.constant 0 : i32
    return %c0_i32, %c0_i32_0 : i32, i32
  }
  func.func @transform_9(%arg0: i32) -> (i32, i32) {
    %c0_i32 = arith.constant 0 : i32
    %c0_i32_0 = arith.constant 0 : i32
    %c0_i32_1 = arith.constant 0 : i32
    return %c0_i32, %c0_i32_0 : i32, i32
  }
  func.func @transform_10(%arg0: i32) -> (i32, i32) {
    %c0_i32 = arith.constant 0 : i32
    %c0_i32_0 = arith.constant 0 : i32
    %c0_i32_1 = arith.constant 0 : i32
    return %c0_i32, %c0_i32_0 : i32, i32
  }
  func.func @transform_11(%arg0: i32) -> (i32, i32) {
    %c0_i32 = arith.constant 0 : i32
    %c0_i32_0 = arith.constant 0 : i32
    return %arg0, %c0_i32 : i32, i32
  }
}

</mosaic_0001>

<llo_original>
// kernel: tpu_custom_call.1
$region0: #{tpu_custom_call.1}
  #allocation0 [shape = 'u32[]', space=smem, size = 0x4, offset = 0x4, fixed_abs, tag = 'smem constant byte address 0x4 - core index']
  #allocation1 [shape = 'u32[144,128]{1,0:T(1,128)}', space=vmem, size = 0x12000, scoped, tag = 'internal scratch']
  %s0 = inlined_call_operand.hbm [shape: bf16[8,128], index: 0, kind: input, shape index: {}]
  %s1 = inlined_call_operand.hbm [shape: bf16[128,128], index: 1, kind: input, shape index: {}]
  %s2 = inlined_call_operand.hbm [shape: f32[1,128], index: 2, kind: input, shape index: {}]
  %s3 = inlined_call_operand.hbm [shape: bf16[128,256], index: 3, kind: input, shape index: {}]
  %s4 = inlined_call_operand.vmem [shape: f32[1,256], index: 4, kind: input, shape index: {}]
  %s5 = inlined_call_operand.hbm [shape: bf16[256,512], index: 5, kind: input, shape index: {}]
  %s6 = inlined_call_operand.vmem [shape: f32[1,512], index: 6, kind: input, shape index: {}]
  %s7 = inlined_call_operand.hbm [shape: bf16[512,1024], index: 7, kind: input, shape index: {}]
  %s8 = inlined_call_operand.vmem [shape: f32[1,1024], index: 8, kind: input, shape index: {}]
  %s9 = inlined_call_operand.hbm [shape: bf16[1024,128], index: 9, kind: input, shape index: {}]
  %s10 = inlined_call_operand.vmem [shape: f32[1,128], index: 10, kind: input, shape index: {}]
  %s11 = inlined_call_operand.hbm [shape: f32[8,128], index: 11, kind: output, shape index: {}]
  %s12 = sld [smem:[#allocation0]]
  $region82: #{tpu_custom_call.1} parent=0
    _
  %s14 = ssub.s32 1, %s12
  %s15 = scalar_select 0, %s14, %s12
  $region1: #{tpu_custom_call.1} parent=0
    #allocation2 [shape = 'u8[2048]{0}', space=vmem, size = 0x800, scoped, tag = 'input window, operand 0, single buffered']
    #allocation3 [shape = 's32[1]{0}', space=sflag, size = 0x4, scoped, tag = 'scoped memory for tpu_custom_call.1']
    #allocation4 [shape = 's32[1]{0}', space=sflag, size = 0x4, scoped, tag = 'scoped memory for tpu_custom_call.1']
    #allocation5 [shape = 'u8[32768]{0}', space=vmem, size = 0x8000, scoped, tag = 'input window, operand 1, single buffered']
    #allocation6 [shape = 's32[1]{0}', space=sflag, size = 0x4, scoped, tag = 'scoped memory for tpu_custom_call.1']
    #allocation7 [shape = 'u8[512]{0}', space=vmem, size = 0x400, scoped, tag = 'input window, operand 2, single buffered']
    #allocation8 [shape = 'u8[65536]{0}', space=vmem, size = 0x10000, scoped, tag = 'input window, operand 3, single buffered']
    #allocation9 [shape = 's32[1]{0}', space=sflag, size = 0x4, scoped, tag = 'scoped memory for tpu_custom_call.1']
    #allocation10 [shape = 'u8[262144]{0}', space=vmem, size = 0x40000, scoped, tag = 'input window, operand 5, single buffered']
    #allocation11 [shape = 'u8[1048576]{0}', space=vmem, size = 0x100000, scoped, tag = 'input window, operand 7, single buffered']
    #allocation12 [shape = 's32[1]{0}', space=sflag, size = 0x4, scoped, tag = 'scoped memory for tpu_custom_call.1']
    #allocation13 [shape = 'u8[262144]{0}', space=vmem, size = 0x40000, scoped, tag = 'input window, operand 9, single buffered']
    #allocation14 [shape = 'u8[4096]{0}', space=vmem, size = 0x1000, scoped, tag = 'output window, operand 0, single buffered']
    %16 = vsyncpa [#allocation3], 0
    %17 = vsyncpa [#allocation6], 0
    %18 = vsyncpa [#allocation9], 0
    %19 = vsyncpa [#allocation12], 0
    %20 = vsyncpa [#allocation4], 0
    // Predicated region
    $region2: #{tpu_custom_call.1} parent=1 // pred_check
      _
    $region3: #{tpu_custom_call.1} parent=1 // pred_check_branch
      %22 = sbr.rel (0) target = $region5
    $region4: #{tpu_custom_call.1} parent=1 // pred_region
      %s24 = ssub.s32 64, 64
      %25 = vsyncadd [#allocation3], %s24
      %s27 = sshll.u32 [#allocation2], 4
      %s28 = int_to_ptr.vmem [resolvable:$true] %s27
      %30 = dma.hbm_to_vmem [thread:$0]  %s0, 64, %s28, [#allocation3]
    $region5: #{tpu_custom_call.1} parent=1 // pred_fallthru
      _
    // Predicated region
    $region6: #{tpu_custom_call.1} parent=1 // pred_check
      _
    $region7: #{tpu_custom_call.1} parent=1 // pred_check_branch
      %32 = sbr.rel (0) target = $region9
    $region8: #{tpu_custom_call.1} parent=1 // pred_region
      %s34 = ssub.s32 1024, 1024
      %35 = vsyncadd [#allocation6], %s34
      %s36 = sshll.u32 [#allocation5], 4
      %s37 = int_to_ptr.vmem [resolvable:$true] %s36
      %42 = dma.hbm_to_vmem [thread:$0]  %s1, 1024, %s37, [#allocation6], 64, 64, 4
    $region9: #{tpu_custom_call.1} parent=1 // pred_fallthru
      _
    // Predicated region
    $region10: #{tpu_custom_call.1} parent=1 // pred_check
      _
    $region11: #{tpu_custom_call.1} parent=1 // pred_check_branch
      %44 = sbr.rel (0) target = $region13
    $region12: #{tpu_custom_call.1} parent=1 // pred_region
      %s46 = ssub.s32 16, 16
      %47 = vsyncadd [#allocation6], %s46
      %s49 = sshll.u32 [#allocation7], 4
      %s50 = int_to_ptr.vmem [resolvable:$true] %s49
      %52 = dma.hbm_to_vmem [thread:$0]  %s2, 16, %s50, [#allocation6]
    $region13: #{tpu_custom_call.1} parent=1 // pred_fallthru
      _
    // Predicated region
    $region14: #{tpu_custom_call.1} parent=1 // pred_check
      _
    $region15: #{tpu_custom_call.1} parent=1 // pred_check_branch
      %54 = sbr.rel (0) target = $region17
    $region16: #{tpu_custom_call.1} parent=1 // pred_region
      %s56 = ssub.s32 2048, 2048
      %57 = vsyncadd [#allocation9], %s56
      %s58 = sshll.u32 [#allocation8], 4
      %s59 = int_to_ptr.vmem [resolvable:$true] %s58
      %64 = dma.hbm_to_vmem [thread:$0]  %s3, 2048, %s59, [#allocation9], 128, 128, 8
    $region17: #{tpu_custom_call.1} parent=1 // pred_fallthru
      _
    // Predicated region
    $region18: #{tpu_custom_call.1} parent=1 // pred_check
      _
    $region19: #{tpu_custom_call.1} parent=1 // pred_check_branch
      %66 = sbr.rel (0) target = $region21
    $region20: #{tpu_custom_call.1} parent=1 // pred_region
      _
    $region21: #{tpu_custom_call.1} parent=1 // pred_fallthru
      _
    // Predicated region
    $region22: #{tpu_custom_call.1} parent=1 // pred_check
      _
    $region23: #{tpu_custom_call.1} parent=1 // pred_check_branch
      %68 = sbr.rel (0) target = $region25
    $region24: #{tpu_custom_call.1} parent=1 // pred_region
      %s70 = ssub.s32 8192, 8192
      %71 = vsyncadd [#allocation9], %s70
      %s72 = sshll.u32 [#allocation10], 4
      %s73 = int_to_ptr.vmem [resolvable:$true] %s72
      %78 = dma.hbm_to_vmem [thread:$0]  %s5, 8192, %s73, [#allocation9], 256, 256, 16
    $region25: #{tpu_custom_call.1} parent=1 // pred_fallthru
      _
    // Predicated region
    $region26: #{tpu_custom_call.1} parent=1 // pred_check
      _
    $region27: #{tpu_custom_call.1} parent=1 // pred_check_branch
      %80 = sbr.rel (0) target = $region29
    $region28: #{tpu_custom_call.1} parent=1 // pred_region
      _
    $region29: #{tpu_custom_call.1} parent=1 // pred_fallthru
      _
    // Predicated region
    $region30: #{tpu_custom_call.1} parent=1 // pred_check
      _
    $region31: #{tpu_custom_call.1} parent=1 // pred_check_branch
      %82 = sbr.rel (0) target = $region33
    $region32: #{tpu_custom_call.1} parent=1 // pred_region
      %s84 = ssub.s32 32768, 32768
      %85 = vsyncadd [#allocation12], %s84
      %s86 = sshll.u32 [#allocation11], 4
      %s87 = int_to_ptr.vmem [resolvable:$true] %s86
      %92 = dma.hbm_to_vmem [thread:$0]  %s7, 32768, %s87, [#allocation12], 512, 512, 32
    $region33: #{tpu_custom_call.1} parent=1 // pred_fallthru
      _
    // Predicated region
    $region34: #{tpu_custom_call.1} parent=1 // pred_check
      _
    $region35: #{tpu_custom_call.1} parent=1 // pred_check_branch
      %94 = sbr.rel (0) target = $region37
    $region36: #{tpu_custom_call.1} parent=1 // pred_region
      _
    $region37: #{tpu_custom_call.1} parent=1 // pred_fallthru
      _
    // Predicated region
    $region38: #{tpu_custom_call.1} parent=1 // pred_check
      _
    $region39: #{tpu_custom_call.1} parent=1 // pred_check_branch
      %96 = sbr.rel (0) target = $region41
    $region40: #{tpu_custom_call.1} parent=1 // pred_region
      %s98 = ssub.s32 8192, 8192
      %99 = vsyncadd [#allocation12], %s98
      %s100 = sshll.u32 [#allocation13], 4
      %s101 = int_to_ptr.vmem [resolvable:$true] %s100
      %106 = dma.hbm_to_vmem [thread:$0]  %s9, 8192, %s101, [#allocation12], 64, 64, 4
    $region41: #{tpu_custom_call.1} parent=1 // pred_fallthru
      _
    // Predicated region
    $region42: #{tpu_custom_call.1} parent=1 // pred_check
      _
    $region43: #{tpu_custom_call.1} parent=1 // pred_check_branch
      %108 = sbr.rel (0) target = $region45
    $region44: #{tpu_custom_call.1} parent=1 // pred_region
      _
    $region45: #{tpu_custom_call.1} parent=1 // pred_fallthru
      _
    // Predicated region
    $region46: #{tpu_custom_call.1} parent=1 // pred_check
      _
    $region47: #{tpu_custom_call.1} parent=1 // pred_check_branch
      %110 = sbr.rel (0) target = $region49
    $region48: #{tpu_custom_call.1} parent=1 // pred_region
      %111 = dma.done [#allocation3], 64
    $region49: #{tpu_custom_call.1} parent=1 // pred_fallthru
      _
    // Predicated region
    $region50: #{tpu_custom_call.1} parent=1 // pred_check
      _
    $region51: #{tpu_custom_call.1} parent=1 // pred_check_branch
      %113 = sbr.rel (0) target = $region53
    $region52: #{tpu_custom_call.1} parent=1 // pred_region
      %114 = dma.done [#allocation6], 1024
    $region53: #{tpu_custom_call.1} parent=1 // pred_fallthru
      _
    // Predicated region
    $region54: #{tpu_custom_call.1} parent=1 // pred_check
      _
    $region55: #{tpu_custom_call.1} parent=1 // pred_check_branch
      %116 = sbr.rel (0) target = $region57
    $region56: #{tpu_custom_call.1} parent=1 // pred_region
      %117 = dma.done [#allocation6], 16
    $region57: #{tpu_custom_call.1} parent=1 // pred_fallthru
      _
    // Predicated region
    $region58: #{tpu_custom_call.1} parent=1 // pred_check
      _
    $region59: #{tpu_custom_call.1} parent=1 // pred_check_branch
      %119 = sbr.rel (0) target = $region61
    $region60: #{tpu_custom_call.1} parent=1 // pred_region
      %120 = dma.done [#allocation9], 2048
    $region61: #{tpu_custom_call.1} parent=1 // pred_fallthru
      _
    // Predicated region
    $region62: #{tpu_custom_call.1} parent=1 // pred_check
      _
    $region63: #{tpu_custom_call.1} parent=1 // pred_check_branch
      %122 = sbr.rel (0) target = $region65
    $region64: #{tpu_custom_call.1} parent=1 // pred_region
      %123 = dma.done [#allocation9], 8192
    $region65: #{tpu_custom_call.1} parent=1 // pred_fallthru
      _
    // Predicated region
    $region66: #{tpu_custom_call.1} parent=1 // pred_check
      _
    $region67: #{tpu_custom_call.1} parent=1 // pred_check_branch
      %125 = sbr.rel (0) target = $region69
    $region68: #{tpu_custom_call.1} parent=1 // pred_region
      %126 = dma.done [#allocation12], 32768
    $region69: #{tpu_custom_call.1} parent=1 // pred_fallthru
      _
    // Predicated region
    $region70: #{tpu_custom_call.1} parent=1 // pred_check
      _
    $region71: #{tpu_custom_call.1} parent=1 // pred_check_branch
      %128 = sbr.rel (0) target = $region73
    $region72: #{tpu_custom_call.1} parent=1 // pred_region
      %129 = dma.done [#allocation12], 8192
    $region73: #{tpu_custom_call.1} parent=1 // pred_fallthru
      _
    %v131 = vld [vmem:[#allocation2] sm:$0xf]
    %v132 = vld [vmem:[#allocation5] sm:$0xf]
    %v133 = vld [vmem:[#allocation5 + $0x4] sm:$0xf]
    %v134 = vld [vmem:[#allocation5 + $0x8] sm:$0xf]
    %v135 = vld [vmem:[#allocation5 + $0xc] sm:$0xf]
    %v136 = vld [vmem:[#allocation5 + $0x10] sm:$0xf]
    %v137 = vld [vmem:[#allocation5 + $0x14] sm:$0xf]
    %v138 = vld [vmem:[#allocation5 + $0x18] sm:$0xf]
    %v139 = vld [vmem:[#allocation5 + $0x1c] sm:$0xf]
    %v140 = vld [vmem:[#allocation5 + $0x20] sm:$0xf]
    %v141 = vld [vmem:[#allocation5 + $0x24] sm:$0xf]
    %v142 = vld [vmem:[#allocation5 + $0x28] sm:$0xf]
    %v143 = vld [vmem:[#allocation5 + $0x2c] sm:$0xf]
    %v144 = vld [vmem:[#allocation5 + $0x30] sm:$0xf]
    %v145 = vld [vmem:[#allocation5 + $0x34] sm:$0xf]
    %v146 = vld [vmem:[#allocation5 + $0x38] sm:$0xf]
    %v147 = vld [vmem:[#allocation5 + $0x3c] sm:$0xf]
    %v148 = vld [vmem:[#allocation7] sm:$0x1]
    %v150 = vlaneseq
    %v151 = vshrl.u32 %v150, 7
    %v152 = vsub.s32 0, %v151
    %v153 = vrot.slane %v148, %v152
    %v171 = vunpack.c.l.b16 %v132
    %v172 = vunpack.c.l.b16 %v133
    %v173 = vunpack.c.l.b16 %v134
    %v174 = vunpack.c.l.b16 %v135
    %v175 = vunpack.c.l.b16 %v136
    %v176 = vunpack.c.l.b16 %v137
    %v177 = vunpack.c.l.b16 %v138
    %v178 = vunpack.c.l.b16 %v139
    %v179 = vunpack.c.l.b16 %v140
    %v180 = vunpack.c.l.b16 %v141
    %v181 = vunpack.c.l.b16 %v142
    %v182 = vunpack.c.l.b16 %v143
    %v183 = vunpack.c.l.b16 %v144
    %v184 = vunpack.c.l.b16 %v145
    %v185 = vunpack.c.l.b16 %v146
    %v186 = vunpack.c.l.b16 %v147
    %v187 = vpack.c.b16 %v172, %v171
    %v188 = vpack.c.b16 %v174, %v173
    %v189 = vpack.c.b16 %v176, %v175
    %v190 = vpack.c.b16 %v178, %v177
    %v191 = vpack.c.b16 %v180, %v179
    %v192 = vpack.c.b16 %v182, %v181
    %v193 = vpack.c.b16 %v184, %v183
    %v194 = vpack.c.b16 %v186, %v185
    %203 = vmatprep.subr.bf16.mxu0 0
    %204 = vmatpush1.bf16.msra.mxu0 %v194
    %205 = vmatprep.subr.bf16.mxu0 0
    %206 = vmatpush1.bf16.msra.mxu0 %v193
    %207 = vmatprep.subr.bf16.mxu0 0
    %208 = vmatpush1.bf16.msra.mxu0 %v192
    %209 = vmatprep.subr.bf16.mxu0 0
    %210 = vmatpush1.bf16.msra.mxu0 %v191
    %211 = vmatprep.subr.bf16.mxu0 0
    %212 = vmatpush1.bf16.msra.mxu0 %v190
    %213 = vmatprep.subr.bf16.mxu0 0
    %214 = vmatpush1.bf16.msra.mxu0 %v189
    %215 = vmatprep.subr.bf16.mxu0 0
    %216 = vmatpush1.bf16.msra.mxu0 %v188
    %217 = vmatprep.subr.bf16.mxu0 0
    %218 = vmatpush1.bf16.msra.mxu0 %v187
    %219 = vmatprep.subr.bf16.mxu0 0
    %220 = vmatpush2.bf16.msra.mxu0 0
    %221 = vmatprep.subr.bf16.mxu0 0
    %222 = vmatpush2.bf16.msra.mxu0 0
    %223 = vmatprep.subr.bf16.mxu0 0
    %224 = vmatpush2.bf16.msra.mxu0 0
    %225 = vmatprep.subr.bf16.mxu0 0
    %226 = vmatpush2.bf16.msra.mxu0 0
    %227 = vmatprep.subr.bf16.mxu0 0
    %228 = vmatpush2.bf16.msra.mxu0 0
    %229 = vmatprep.subr.bf16.mxu0 0
    %230 = vmatpush2.bf16.msra.mxu0 0
    %231 = vmatprep.subr.bf16.mxu0 0
    %232 = vmatpush2.bf16.msra.mxu0 0
    %233 = vmatprep.subr.bf16.mxu0 0
    %234 = vmatpush2.bf16.msra.mxu0 0
    %235 = vmatprep.mubr.bf16.mxu0 0
    %236 = vmatmul.mubr.bf16.gmra.mxu0 %v131
    %v237 = vpop.f32.mrf.mxu0
    %v238 = vadd.f32 %v153, %v237
    %v239 = vpop.f32.mrf.mxu0
    %v240 = vpop.f32.mrf.mxu0
    %v241 = vpop.f32.mrf.mxu0
    %242 = vdwg.mxu0
    %vm243 = vcmp.ge.f32.partialorder %v238, 0.0
    %v244 = vmul.f32 %v238, 0.2
    %v245 = vsel %vm243, %v238, %v244
    %v246 = vpack.c.bf16 %v245, %v245
    %v247 = vld [vmem:[#allocation8] sm:$0xff]
    %v248 = vld [vmem:[#allocation8 + $0x8] sm:$0xff]
    %v249 = vld [vmem:[#allocation8 + $0x10] sm:$0xff]
    %v250 = vld [vmem:[#allocation8 + $0x18] sm:$0xff]
    %v251 = vld [vmem:[#allocation8 + $0x20] sm:$0xff]
    %v252 = vld [vmem:[#allocation8 + $0x28] sm:$0xff]
    %v253 = vld [vmem:[#allocation8 + $0x30] sm:$0xff]
    %v254 = vld [vmem:[#allocation8 + $0x38] sm:$0xff]
    %v255 = vld [vmem:[#allocation8 + $0x40] sm:$0xff]
    %v256 = vld [vmem:[#allocation8 + $0x48] sm:$0xff]
    %v257 = vld [vmem:[#allocation8 + $0x50] sm:$0xff]
    %v258 = vld [vmem:[#allocation8 + $0x58] sm:$0xff]
    %v259 = vld [vmem:[#allocation8 + $0x60] sm:$0xff]
    %v260 = vld [vmem:[#allocation8 + $0x68] sm:$0xff]
    %v261 = vld [vmem:[#allocation8 + $0x70] sm:$0xff]
    %v262 = vld [vmem:[#allocation8 + $0x78] sm:$0xff]
    %v263 = vld [vmem:[%s4] sm:$0x3]
    %v265 = vlaneseq
    %v266 = vshrl.u32 %v265, 7
    %v267 = vsub.s32 0, %v266
    %v268 = vrot.slane %v263, %v267
    %v269 = vlaneseq
    %v270 = vshrl.u32 %v269, 7
    %v271 = vsub.s32 1, %v270
    %v272 = vrot.slane %v263, %v271
    %v291 = vunpack.c.l.b16 %v247
    %v292 = vunpack.c.h.b16 %v247
    %v293 = vunpack.c.l.b16 %v248
    %v294 = vunpack.c.h.b16 %v248
    %v295 = vunpack.c.l.b16 %v249
    %v296 = vunpack.c.h.b16 %v249
    %v297 = vunpack.c.l.b16 %v250
    %v298 = vunpack.c.h.b16 %v250
    %v299 = vunpack.c.l.b16 %v251
    %v300 = vunpack.c.h.b16 %v251
    %v301 = vunpack.c.l.b16 %v252
    %v302 = vunpack.c.h.b16 %v252
    %v303 = vunpack.c.l.b16 %v253
    %v304 = vunpack.c.h.b16 %v253
    %v305 = vunpack.c.l.b16 %v254
    %v306 = vunpack.c.h.b16 %v254
    %v307 = vunpack.c.l.b16 %v255
    %v308 = vunpack.c.h.b16 %v255
    %v309 = vunpack.c.l.b16 %v256
    %v310 = vunpack.c.h.b16 %v256
    %v311 = vunpack.c.l.b16 %v257
    %v312 = vunpack.c.h.b16 %v257
    %v313 = vunpack.c.l.b16 %v258
    %v314 = vunpack.c.h.b16 %v258
    %v315 = vunpack.c.l.b16 %v259
    %v316 = vunpack.c.h.b16 %v259
    %v317 = vunpack.c.l.b16 %v260
    %v318 = vunpack.c.h.b16 %v260
    %v319 = vunpack.c.l.b16 %v261
    %v320 = vunpack.c.h.b16 %v261
    %v321 = vunpack.c.l.b16 %v262
    %v322 = vunpack.c.h.b16 %v262
    %v323 = vpack.c.b16 %v293, %v291
    %v324 = vpack.c.b16 %v294, %v292
    %v325 = vpack.c.b16 %v297, %v295
    %v326 = vpack.c.b16 %v298, %v296
    %v327 = vpack.c.b16 %v301, %v299
    %v328 = vpack.c.b16 %v302, %v300
    %v329 = vpack.c.b16 %v305, %v303
    %v330 = vpack.c.b16 %v306, %v304
    %v331 = vpack.c.b16 %v309, %v307
    %v332 = vpack.c.b16 %v310, %v308
    %v333 = vpack.c.b16 %v313, %v311
    %v334 = vpack.c.b16 %v314, %v312
    %v335 = vpack.c.b16 %v317, %v315
    %v336 = vpack.c.b16 %v318, %v316
    %v337 = vpack.c.b16 %v321, %v319
    %v338 = vpack.c.b16 %v322, %v320
    %355 = vmatprep.subr.bf16.mxu0 %v338
    %356 = vmatpush1.bf16.msra.mxu0 %v337
    %357 = vmatprep.subr.bf16.mxu0 %v336
    %358 = vmatpush1.bf16.msra.mxu0 %v335
    %359 = vmatprep.subr.bf16.mxu0 %v334
    %360 = vmatpush1.bf16.msra.mxu0 %v333
    %361 = vmatprep.subr.bf16.mxu0 %v332
    %362 = vmatpush1.bf16.msra.mxu0 %v331
    %363 = vmatprep.subr.bf16.mxu0 %v330
    %364 = vmatpush1.bf16.msra.mxu0 %v329
    %365 = vmatprep.subr.bf16.mxu0 %v328
    %366 = vmatpush1.bf16.msra.mxu0 %v327
    %367 = vmatprep.subr.bf16.mxu0 %v326
    %368 = vmatpush1.bf16.msra.mxu0 %v325
    %369 = vmatprep.subr.bf16.mxu0 %v324
    %370 = vmatpush1.bf16.msra.mxu0 %v323
    %371 = vmatprep.subr.bf16.mxu0 0
    %372 = vmatpush2.bf16.msra.mxu0 0
    %373 = vmatprep.subr.bf16.mxu0 0
    %374 = vmatpush2.bf16.msra.mxu0 0
    %375 = vmatprep.subr.bf16.mxu0 0
    %376 = vmatpush2.bf16.msra.mxu0 0
    %377 = vmatprep.subr.bf16.mxu0 0
    %378 = vmatpush2.bf16.msra.mxu0 0
    %379 = vmatprep.subr.bf16.mxu0 0
    %380 = vmatpush2.bf16.msra.mxu0 0
    %381 = vmatprep.subr.bf16.mxu0 0
    %382 = vmatpush2.bf16.msra.mxu0 0
    %383 = vmatprep.subr.bf16.mxu0 0
    %384 = vmatpush2.bf16.msra.mxu0 0
    %385 = vmatprep.subr.bf16.mxu0 0
    %386 = vmatpush2.bf16.msra.mxu0 0
    %387 = vmatprep.mubr.bf16.mxu0 0
    %388 = vmatmul.mubr.bf16.gmra.mxu0 %v246
    %v389 = vpop.f32.mrf.mxu0
    %v390 = vadd.f32 %v268, %v389
    %v391 = vpop.f32.mrf.mxu0
    %v392 = vadd.f32 %v272, %v391
    %v393 = vpop.f32.mrf.mxu0
    %v394 = vpop.f32.mrf.mxu0
    %395 = vdwg.mxu0
    %vm396 = vcmp.ge.f32.partialorder %v390, 0.0
    %vm397 = vcmp.ge.f32.partialorder %v392, 0.0
    %v398 = vmul.f32 %v390, 0.2
    %v399 = vmul.f32 %v392, 0.2
    %v400 = vsel %vm396, %v390, %v398
    %v401 = vsel %vm397, %v392, %v399
    %v402 = vpack.c.bf16 %v400, %v400
    %v403 = vpack.c.bf16 %v401, %v401
    %v404 = vld [vmem:[#allocation10] sm:$0xff]
    %v405 = vld [vmem:[#allocation10 + $0x8] sm:$0xff]
    %v406 = vld [vmem:[#allocation10 + $0x10] sm:$0xff]
    %v407 = vld [vmem:[#allocation10 + $0x18] sm:$0xff]
    %v408 = vld [vmem:[#allocation10 + $0x20] sm:$0xff]
    %v409 = vld [vmem:[#allocation10 + $0x28] sm:$0xff]
    %v410 = vld [vmem:[#allocation10 + $0x30] sm:$0xff]
    %v411 = vld [vmem:[#allocation10 + $0x38] sm:$0xff]
    %v412 = vld [vmem:[#allocation10 + $0x40] sm:$0xff]
    %v413 = vld [vmem:[#allocation10 + $0x48] sm:$0xff]
    %v414 = vld [vmem:[#allocation10 + $0x50] sm:$0xff]
    %v415 = vld [vmem:[#allocation10 + $0x58] sm:$0xff]
    %v416 = vld [vmem:[#allocation10 + $0x60] sm:$0xff]
    %v417 = vld [vmem:[#allocation10 + $0x68] sm:$0xff]
    %v418 = vld [vmem:[#allocation10 + $0x70] sm:$0xff]
    %v419 = vld [vmem:[#allocation10 + $0x78] sm:$0xff]
    %v420 = vld [vmem:[#allocation10 + $0x80] sm:$0xff]
    %v421 = vld [vmem:[#allocation10 + $0x88] sm:$0xff]
    %v422 = vld [vmem:[#allocation10 + $0x90] sm:$0xff]
    %v423 = vld [vmem:[#allocation10 + $0x98] sm:$0xff]
    %v424 = vld [vmem:[#allocation10 + $0xa0] sm:$0xff]
    %v425 = vld [vmem:[#allocation10 + $0xa8] sm:$0xff]
    %v426 = vld [vmem:[#allocation10 + $0xb0] sm:$0xff]
    %v427 = vld [vmem:[#allocation10 + $0xb8] sm:$0xff]
    %v428 = vld [vmem:[#allocation10 + $0xc0] sm:$0xff]
    %v429 = vld [vmem:[#allocation10 + $0xc8] sm:$0xff]
    %v430 = vld [vmem:[#allocation10 + $0xd0] sm:$0xff]
    %v431 = vld [vmem:[#allocation10 + $0xd8] sm:$0xff]
    %v432 = vld [vmem:[#allocation10 + $0xe0] sm:$0xff]
    %v433 = vld [vmem:[#allocation10 + $0xe8] sm:$0xff]
    %v434 = vld [vmem:[#allocation10 + $0xf0] sm:$0xff]
    %v435 = vld [vmem:[#allocation10 + $0xf8] sm:$0xff]
    %v436 = vld [vmem:[#allocation10 + $0x100] sm:$0xff]
    %v437 = vld [vmem:[#allocation10 + $0x108] sm:$0xff]
    %v438 = vld [vmem:[#allocation10 + $0x110] sm:$0xff]
    %v439 = vld [vmem:[#allocation10 + $0x118] sm:$0xff]
    %v440 = vld [vmem:[#allocation10 + $0x120] sm:$0xff]
    %v441 = vld [vmem:[#allocation10 + $0x128] sm:$0xff]
    %v442 = vld [vmem:[#allocation10 + $0x130] sm:$0xff]
    %v443 = vld [vmem:[#allocation10 + $0x138] sm:$0xff]
    %v444 = vld [vmem:[#allocation10 + $0x140] sm:$0xff]
    %v445 = vld [vmem:[#allocation10 + $0x148] sm:$0xff]
    %v446 = vld [vmem:[#allocation10 + $0x150] sm:$0xff]
    %v447 = vld [vmem:[#allocation10 + $0x158] sm:$0xff]
    %v448 = vld [vmem:[#allocation10 + $0x160] sm:$0xff]
    %v449 = vld [vmem:[#allocation10 + $0x168] sm:$0xff]
    %v450 = vld [vmem:[#allocation10 + $0x170] sm:$0xff]
    %v451 = vld [vmem:[#allocation10 + $0x178] sm:$0xff]
    %v452 = vld [vmem:[#allocation10 + $0x180] sm:$0xff]
    %v453 = vld [vmem:[#allocation10 + $0x188] sm:$0xff]
    %v454 = vld [vmem:[#allocation10 + $0x190] sm:$0xff]
    %v455 = vld [vmem:[#allocation10 + $0x198] sm:$0xff]
    %v456 = vld [vmem:[#allocation10 + $0x1a0] sm:$0xff]
    %v457 = vld [vmem:[#allocation10 + $0x1a8] sm:$0xff]
    %v458 = vld [vmem:[#allocation10 + $0x1b0] sm:$0xff]
    %v459 = vld [vmem:[#allocation10 + $0x1b8] sm:$0xff]
    %v460 = vld [vmem:[#allocation10 + $0x1c0] sm:$0xff]
    %v461 = vld [vmem:[#allocation10 + $0x1c8] sm:$0xff]
    %v462 = vld [vmem:[#allocation10 + $0x1d0] sm:$0xff]
    %v463 = vld [vmem:[#allocation10 + $0x1d8] sm:$0xff]
    %v464 = vld [vmem:[#allocation10 + $0x1e0] sm:$0xff]
    %v465 = vld [vmem:[#allocation10 + $0x1e8] sm:$0xff]
    %v466 = vld [vmem:[#allocation10 + $0x1f0] sm:$0xff]
    %v467 = vld [vmem:[#allocation10 + $0x1f8] sm:$0xff]
    %v468 = vld [vmem:[%s6] sm:$0xf]
    %v470 = vlaneseq
    %v471 = vshrl.u32 %v470, 7
    %v472 = vsub.s32 0, %v471
    %v473 = vrot.slane %v468, %v472
    %v474 = vlaneseq
    %v475 = vshrl.u32 %v474, 7
    %v476 = vsub.s32 1, %v475
    %v477 = vrot.slane %v468, %v476
    %v478 = vlaneseq
    %v479 = vshrl.u32 %v478, 7
    %v480 = vsub.s32 2, %v479
    %v481 = vrot.slane %v468, %v480
    %v482 = vlaneseq
    %v483 = vshrl.u32 %v482, 7
    %v484 = vsub.s32 3, %v483
    %v485 = vrot.slane %v468, %v484
    %v554 = vunpack.c.l.b16 %v404
    %v555 = vunpack.c.h.b16 %v404
    %v556 = vunpack.c.l.b16 %v405
    %v557 = vunpack.c.h.b16 %v405
    %v558 = vunpack.c.l.b16 %v406
    %v559 = vunpack.c.h.b16 %v406
    %v560 = vunpack.c.l.b16 %v407
    %v561 = vunpack.c.h.b16 %v407
    %v562 = vunpack.c.l.b16 %v408
    %v563 = vunpack.c.h.b16 %v408
    %v564 = vunpack.c.l.b16 %v409
    %v565 = vunpack.c.h.b16 %v409
    %v566 = vunpack.c.l.b16 %v410
    %v567 = vunpack.c.h.b16 %v410
    %v568 = vunpack.c.l.b16 %v411
    %v569 = vunpack.c.h.b16 %v411
    %v570 = vunpack.c.l.b16 %v412
    %v571 = vunpack.c.h.b16 %v412
    %v572 = vunpack.c.l.b16 %v413
    %v573 = vunpack.c.h.b16 %v413
    %v574 = vunpack.c.l.b16 %v414
    %v575 = vunpack.c.h.b16 %v414
    %v576 = vunpack.c.l.b16 %v415
    %v577 = vunpack.c.h.b16 %v415
    %v578 = vunpack.c.l.b16 %v416
    %v579 = vunpack.c.h.b16 %v416
    %v580 = vunpack.c.l.b16 %v417
    %v581 = vunpack.c.h.b16 %v417
    %v582 = vunpack.c.l.b16 %v418
    %v583 = vunpack.c.h.b16 %v418
    %v584 = vunpack.c.l.b16 %v419
    %v585 = vunpack.c.h.b16 %v419
    %v586 = vunpack.c.l.b16 %v420
    %v587 = vunpack.c.h.b16 %v420
    %v588 = vunpack.c.l.b16 %v421
    %v589 = vunpack.c.h.b16 %v421
    %v590 = vunpack.c.l.b16 %v422
    %v591 = vunpack.c.h.b16 %v422
    %v592 = vunpack.c.l.b16 %v423
    %v593 = vunpack.c.h.b16 %v423
    %v594 = vunpack.c.l.b16 %v424
    %v595 = vunpack.c.h.b16 %v424
    %v596 = vunpack.c.l.b16 %v425
    %v597 = vunpack.c.h.b16 %v425
    %v598 = vunpack.c.l.b16 %v426
    %v599 = vunpack.c.h.b16 %v426
    %v600 = vunpack.c.l.b16 %v427
    %v601 = vunpack.c.h.b16 %v427
    %v602 = vunpack.c.l.b16 %v428
    %v603 = vunpack.c.h.b16 %v428
    %v604 = vunpack.c.l.b16 %v429
    %v605 = vunpack.c.h.b16 %v429
    %v606 = vunpack.c.l.b16 %v430
    %v607 = vunpack.c.h.b16 %v430
    %v608 = vunpack.c.l.b16 %v431
    %v609 = vunpack.c.h.b16 %v431
    %v610 = vunpack.c.l.b16 %v432
    %v611 = vunpack.c.h.b16 %v432
    %v612 = vunpack.c.l.b16 %v433
    %v613 = vunpack.c.h.b16 %v433
    %v614 = vunpack.c.l.b16 %v434
    %v615 = vunpack.c.h.b16 %v434
    %v616 = vunpack.c.l.b16 %v435
    %v617 = vunpack.c.h.b16 %v435
    %v618 = vunpack.c.l.b16 %v436
    %v619 = vunpack.c.h.b16 %v436
    %v620 = vunpack.c.l.b16 %v437
    %v621 = vunpack.c.h.b16 %v437
    %v622 = vunpack.c.l.b16 %v438
    %v623 = vunpack.c.h.b16 %v438
    %v624 = vunpack.c.l.b16 %v439
    %v625 = vunpack.c.h.b16 %v439
    %v626 = vunpack.c.l.b16 %v440
    %v627 = vunpack.c.h.b16 %v440
    %v628 = vunpack.c.l.b16 %v441
    %v629 = vunpack.c.h.b16 %v441
    %v630 = vunpack.c.l.b16 %v442
    %v631 = vunpack.c.h.b16 %v442
    %v632 = vunpack.c.l.b16 %v443
    %v633 = vunpack.c.h.b16 %v443
    %v634 = vunpack.c.l.b16 %v444
    %v635 = vunpack.c.h.b16 %v444
    %v636 = vunpack.c.l.b16 %v445
    %v637 = vunpack.c.h.b16 %v445
    %v638 = vunpack.c.l.b16 %v446
    %v639 = vunpack.c.h.b16 %v446
    %v640 = vunpack.c.l.b16 %v447
    %v641 = vunpack.c.h.b16 %v447
    %v642 = vunpack.c.l.b16 %v448
    %v643 = vunpack.c.h.b16 %v448
    %v644 = vunpack.c.l.b16 %v449
    %v645 = vunpack.c.h.b16 %v449
    %v646 = vunpack.c.l.b16 %v450
    %v647 = vunpack.c.h.b16 %v450
    %v648 = vunpack.c.l.b16 %v451
    %v649 = vunpack.c.h.b16 %v451
    %v650 = vunpack.c.l.b16 %v452
    %v651 = vunpack.c.h.b16 %v452
    %v652 = vunpack.c.l.b16 %v453
    %v653 = vunpack.c.h.b16 %v453
    %v654 = vunpack.c.l.b16 %v454
    %v655 = vunpack.c.h.b16 %v454
    %v656 = vunpack.c.l.b16 %v455
    %v657 = vunpack.c.h.b16 %v455
    %v658 = vunpack.c.l.b16 %v456
    %v659 = vunpack.c.h.b16 %v456
    %v660 = vunpack.c.l.b16 %v457
    %v661 = vunpack.c.h.b16 %v457
    %v662 = vunpack.c.l.b16 %v458
    %v663 = vunpack.c.h.b16 %v458
    %v664 = vunpack.c.l.b16 %v459
    %v665 = vunpack.c.h.b16 %v459
    %v666 = vunpack.c.l.b16 %v460
    %v667 = vunpack.c.h.b16 %v460
    %v668 = vunpack.c.l.b16 %v461
    %v669 = vunpack.c.h.b16 %v461
    %v670 = vunpack.c.l.b16 %v462
    %v671 = vunpack.c.h.b16 %v462
    %v672 = vunpack.c.l.b16 %v463
    %v673 = vunpack.c.h.b16 %v463
    %v674 = vunpack.c.l.b16 %v464
    %v675 = vunpack.c.h.b16 %v464
    %v676 = vunpack.c.l.b16 %v465
    %v677 = vunpack.c.h.b16 %v465
    %v678 = vunpack.c.l.b16 %v466
    %v679 = vunpack.c.h.b16 %v466
    %v680 = vunpack.c.l.b16 %v467
    %v681 = vunpack.c.h.b16 %v467
    %v682 = vpack.c.b16 %v558, %v554
    %v683 = vpack.c.b16 %v559, %v555
    %v684 = vpack.c.b16 %v560, %v556
    %v685 = vpack.c.b16 %v561, %v557
    %v686 = vpack.c.b16 %v566, %v562
    %v687 = vpack.c.b16 %v567, %v563
    %v688 = vpack.c.b16 %v568, %v564
    %v689 = vpack.c.b16 %v569, %v565
    %v690 = vpack.c.b16 %v574, %v570
    %v691 = vpack.c.b16 %v575, %v571
    %v692 = vpack.c.b16 %v576, %v572
    %v693 = vpack.c.b16 %v577, %v573
    %v694 = vpack.c.b16 %v582, %v578
    %v695 = vpack.c.b16 %v583, %v579
    %v696 = vpack.c.b16 %v584, %v580
    %v697 = vpack.c.b16 %v585, %v581
    %v698 = vpack.c.b16 %v590, %v586
    %v699 = vpack.c.b16 %v591, %v587
    %v700 = vpack.c.b16 %v592, %v588
    %v701 = vpack.c.b16 %v593, %v589
    %v702 = vpack.c.b16 %v598, %v594
    %v703 = vpack.c.b16 %v599, %v595
    %v704 = vpack.c.b16 %v600, %v596
    %v705 = vpack.c.b16 %v601, %v597
    %v706 = vpack.c.b16 %v606, %v602
    %v707 = vpack.c.b16 %v607, %v603
    %v708 = vpack.c.b16 %v608, %v604
    %v709 = vpack.c.b16 %v609, %v605
    %v710 = vpack.c.b16 %v614, %v610
    %v711 = vpack.c.b16 %v615, %v611
    %v712 = vpack.c.b16 %v616, %v612
    %v713 = vpack.c.b16 %v617, %v613
    %v714 = vpack.c.b16 %v622, %v618
    %v715 = vpack.c.b16 %v623, %v619
    %v716 = vpack.c.b16 %v624, %v620
    %v717 = vpack.c.b16 %v625, %v621
    %v718 = vpack.c.b16 %v630, %v626
    %v719 = vpack.c.b16 %v631, %v627
    %v720 = vpack.c.b16 %v632, %v628
    %v721 = vpack.c.b16 %v633, %v629
    %v722 = vpack.c.b16 %v638, %v634
    %v723 = vpack.c.b16 %v639, %v635
    %v724 = vpack.c.b16 %v640, %v636
    %v725 = vpack.c.b16 %v641, %v637
    %v726 = vpack.c.b16 %v646, %v642
    %v727 = vpack.c.b16 %v647, %v643
    %v728 = vpack.c.b16 %v648, %v644
    %v729 = vpack.c.b16 %v649, %v645
    %v730 = vpack.c.b16 %v654, %v650
    %v731 = vpack.c.b16 %v655, %v651
    %v732 = vpack.c.b16 %v656, %v652
    %v733 = vpack.c.b16 %v657, %v653
    %v734 = vpack.c.b16 %v662, %v658
    %v735 = vpack.c.b16 %v663, %v659
    %v736 = vpack.c.b16 %v664, %v660
    %v737 = vpack.c.b16 %v665, %v661
    %v738 = vpack.c.b16 %v670, %v666
    %v739 = vpack.c.b16 %v671, %v667
    %v740 = vpack.c.b16 %v672, %v668
    %v741 = vpack.c.b16 %v673, %v669
    %v742 = vpack.c.b16 %v678, %v674
    %v743 = vpack.c.b16 %v679, %v675
    %v744 = vpack.c.b16 %v680, %v676
    %v745 = vpack.c.b16 %v681, %v677
    %810 = vmatprep.subr.bf16.mxu0 %v711
    %811 = vmatpush1.bf16.msra.mxu0 %v710
    %812 = vmatprep.subr.bf16.mxu0 %v707
    %813 = vmatpush1.bf16.msra.mxu0 %v706
    %814 = vmatprep.subr.bf16.mxu0 %v703
    %815 = vmatpush1.bf16.msra.mxu0 %v702
    %816 = vmatprep.subr.bf16.mxu0 %v699
    %817 = vmatpush1.bf16.msra.mxu0 %v698
    %818 = vmatprep.subr.bf16.mxu0 %v695
    %819 = vmatpush1.bf16.msra.mxu0 %v694
    %820 = vmatprep.subr.bf16.mxu0 %v691
    %821 = vmatpush1.bf16.msra.mxu0 %v690
    %822 = vmatprep.subr.bf16.mxu0 %v687
    %823 = vmatpush1.bf16.msra.mxu0 %v686
    %824 = vmatprep.subr.bf16.mxu0 %v683
    %825 = vmatpush1.bf16.msra.mxu0 %v682
    %826 = vmatprep.subr.bf16.mxu0 %v743
    %827 = vmatpush2.bf16.msra.mxu0 %v742
    %828 = vmatprep.subr.bf16.mxu0 %v739
    %829 = vmatpush2.bf16.msra.mxu0 %v738
    %830 = vmatprep.subr.bf16.mxu0 %v735
    %831 = vmatpush2.bf16.msra.mxu0 %v734
    %832 = vmatprep.subr.bf16.mxu0 %v731
    %833 = vmatpush2.bf16.msra.mxu0 %v730
    %834 = vmatprep.subr.bf16.mxu0 %v727
    %835 = vmatpush2.bf16.msra.mxu0 %v726
    %836 = vmatprep.subr.bf16.mxu0 %v723
    %837 = vmatpush2.bf16.msra.mxu0 %v722
    %838 = vmatprep.subr.bf16.mxu0 %v719
    %839 = vmatpush2.bf16.msra.mxu0 %v718
    %840 = vmatprep.subr.bf16.mxu0 %v715
    %841 = vmatpush2.bf16.msra.mxu0 %v714
    %842 = vmatprep.mubr.bf16.mxu0 %v403
    %843 = vmatmul.mubr.bf16.gmra.mxu0 %v402
    %v844 = vpop.f32.mrf.mxu0
    %v845 = vadd.f32 %v473, %v844
    %v846 = vpop.f32.mrf.mxu0
    %v847 = vadd.f32 %v477, %v846
    %v848 = vpop.f32.mrf.mxu0
    %v849 = vpop.f32.mrf.mxu0
    %850 = vdwg.mxu0
    %851 = vmatprep.subr.bf16.mxu0 %v713
    %852 = vmatpush1.bf16.msra.mxu0 %v712
    %853 = vmatprep.subr.bf16.mxu0 %v709
    %854 = vmatpush1.bf16.msra.mxu0 %v708
    %855 = vmatprep.subr.bf16.mxu0 %v705
    %856 = vmatpush1.bf16.msra.mxu0 %v704
    %857 = vmatprep.subr.bf16.mxu0 %v701
    %858 = vmatpush1.bf16.msra.mxu0 %v700
    %859 = vmatprep.subr.bf16.mxu0 %v697
    %860 = vmatpush1.bf16.msra.mxu0 %v696
    %861 = vmatprep.subr.bf16.mxu0 %v693
    %862 = vmatpush1.bf16.msra.mxu0 %v692
    %863 = vmatprep.subr.bf16.mxu0 %v689
    %864 = vmatpush1.bf16.msra.mxu0 %v688
    %865 = vmatprep.subr.bf16.mxu0 %v685
    %866 = vmatpush1.bf16.msra.mxu0 %v684
    %867 = vmatprep.subr.bf16.mxu0 %v745
    %868 = vmatpush2.bf16.msra.mxu0 %v744
    %869 = vmatprep.subr.bf16.mxu0 %v741
    %870 = vmatpush2.bf16.msra.mxu0 %v740
    %871 = vmatprep.subr.bf16.mxu0 %v737
    %872 = vmatpush2.bf16.msra.mxu0 %v736
    %873 = vmatprep.subr.bf16.mxu0 %v733
    %874 = vmatpush2.bf16.msra.mxu0 %v732
    %875 = vmatprep.subr.bf16.mxu0 %v729
    %876 = vmatpush2.bf16.msra.mxu0 %v728
    %877 = vmatprep.subr.bf16.mxu0 %v725
    %878 = vmatpush2.bf16.msra.mxu0 %v724
    %879 = vmatprep.subr.bf16.mxu0 %v721
    %880 = vmatpush2.bf16.msra.mxu0 %v720
    %881 = vmatprep.subr.bf16.mxu0 %v717
    %882 = vmatpush2.bf16.msra.mxu0 %v716
    %883 = vmatprep.mubr.bf16.mxu0 %v403
    %884 = vmatmul.mubr.bf16.gmra.mxu0 %v402
    %v885 = vpop.f32.mrf.mxu0
    %v886 = vadd.f32 %v481, %v885
    %v887 = vpop.f32.mrf.mxu0
    %v888 = vadd.f32 %v485, %v887
    %v889 = vpop.f32.mrf.mxu0
    %v890 = vpop.f32.mrf.mxu0
    %891 = vdwg.mxu0
    %vm892 = vcmp.ge.f32.partialorder %v845, 0.0
    %vm893 = vcmp.ge.f32.partialorder %v847, 0.0
    %vm894 = vcmp.ge.f32.partialorder %v886, 0.0
    %vm895 = vcmp.ge.f32.partialorder %v888, 0.0
    %v896 = vmul.f32 %v845, 0.2
    %v897 = vmul.f32 %v847, 0.2
    %v898 = vmul.f32 %v886, 0.2
    %v899 = vmul.f32 %v888, 0.2
    %v900 = vsel %vm892, %v845, %v896
    %v901 = vsel %vm893, %v847, %v897
    %v902 = vsel %vm894, %v886, %v898
    %v903 = vsel %vm895, %v888, %v899
    %v904 = vpack.c.bf16 %v900, %v900
    %v905 = vpack.c.bf16 %v901, %v901
    %v906 = vpack.c.bf16 %v902, %v902
    %v907 = vpack.c.bf16 %v903, %v903
    %v908 = vld [vmem:[#allocation11] sm:$0xff]
    %v909 = vld [vmem:[#allocation11 + $0x8] sm:$0xff]
    %v910 = vld [vmem:[#allocation11 + $0x10] sm:$0xff]
    %v911 = vld [vmem:[#allocation11 + $0x18] sm:$0xff]
    %v912 = vld [vmem:[#allocation11 + $0x20] sm:$0xff]
    %v913 = vld [vmem:[#allocation11 + $0x28] sm:$0xff]
    %v914 = vld [vmem:[#allocation11 + $0x30] sm:$0xff]
    %v915 = vld [vmem:[#allocation11 + $0x38] sm:$0xff]
    %v916 = vld [vmem:[#allocation11 + $0x40] sm:$0xff]
    %v917 = vld [vmem:[#allocation11 + $0x48] sm:$0xff]
    %v918 = vld [vmem:[#allocation11 + $0x50] sm:$0xff]
    %v919 = vld [vmem:[#allocation11 + $0x58] sm:$0xff]
    %v920 = vld [vmem:[#allocation11 + $0x60] sm:$0xff]
    %v921 = vld [vmem:[#allocation11 + $0x68] sm:$0xff]
    %v922 = vld [vmem:[#allocation11 + $0x70] sm:$0xff]
    %v923 = vld [vmem:[#allocation11 + $0x78] sm:$0xff]
    %v924 = vld [vmem:[#allocation11 + $0x80] sm:$0xff]
    %v925 = vld [vmem:[#allocation11 + $0x88] sm:$0xff]
    %v926 = vld [vmem:[#allocation11 + $0x90] sm:$0xff]
    %v927 = vld [vmem:[#allocation11 + $0x98] sm:$0xff]
    %v928 = vld [vmem:[#allocation11 + $0xa0] sm:$0xff]
    %v929 = vld [vmem:[#allocation11 + $0xa8] sm:$0xff]
    %v930 = vld [vmem:[#allocation11 + $0xb0] sm:$0xff]
    %v931 = vld [vmem:[#allocation11 + $0xb8] sm:$0xff]
    %v932 = vld [vmem:[#allocation11 + $0xc0] sm:$0xff]
    %v933 = vld [vmem:[#allocation11 + $0xc8] sm:$0xff]
    %v934 = vld [vmem:[#allocation11 + $0xd0] sm:$0xff]
    %v935 = vld [vmem:[#allocation11 + $0xd8] sm:$0xff]
    %v936 = vld [vmem:[#allocation11 + $0xe0] sm:$0xff]
    %v937 = vld [vmem:[#allocation11 + $0xe8] sm:$0xff]
    %v938 = vld [vmem:[#allocation11 + $0xf0] sm:$0xff]
    %v939 = vld [vmem:[#allocation11 + $0xf8] sm:$0xff]
    %v940 = vld [vmem:[#allocation11 + $0x100] sm:$0xff]
    %v941 = vld [vmem:[#allocation11 + $0x108] sm:$0xff]
    %v942 = vld [vmem:[#allocation11 + $0x110] sm:$0xff]
    %v943 = vld [vmem:[#allocation11 + $0x118] sm:$0xff]
    %v944 = vld [vmem:[#allocation11 + $0x120] sm:$0xff]
    %v945 = vld [vmem:[#allocation11 + $0x128] sm:$0xff]
    %v946 = vld [vmem:[#allocation11 + $0x130] sm:$0xff]
    %v947 = vld [vmem:[#allocation11 + $0x138] sm:$0xff]
    %v948 = vld [vmem:[#allocation11 + $0x140] sm:$0xff]
    %v949 = vld [vmem:[#allocation11 + $0x148] sm:$0xff]
    %v950 = vld [vmem:[#allocation11 + $0x150] sm:$0xff]
    %v951 = vld [vmem:[#allocation11 + $0x158] sm:$0xff]
    %v952 = vld [vmem:[#allocation11 + $0x160] sm:$0xff]
    %v953 = vld [vmem:[#allocation11 + $0x168] sm:$0xff]
    %v954 = vld [vmem:[#allocation11 + $0x170] sm:$0xff]
    %v955 = vld [vmem:[#allocation11 + $0x178] sm:$0xff]
    %v956 = vld [vmem:[#allocation11 + $0x180] sm:$0xff]
    %v957 = vld [vmem:[#allocation11 + $0x188] sm:$0xff]
    %v958 = vld [vmem:[#allocation11 + $0x190] sm:$0xff]
    %v959 = vld [vmem:[#allocation11 + $0x198] sm:$0xff]
    %v960 = vld [vmem:[#allocation11 + $0x1a0] sm:$0xff]
    %v961 = vld [vmem:[#allocation11 + $0x1a8] sm:$0xff]
    %v962 = vld [vmem:[#allocation11 + $0x1b0] sm:$0xff]
    %v963 = vld [vmem:[#allocation11 + $0x1b8] sm:$0xff]
    %v964 = vld [vmem:[#allocation11 + $0x1c0] sm:$0xff]
    %v965 = vld [vmem:[#allocation11 + $0x1c8] sm:$0xff]
    %v966 = vld [vmem:[#allocation11 + $0x1d0] sm:$0xff]
    %v967 = vld [vmem:[#allocation11 + $0x1d8] sm:$0xff]
    %v968 = vld [vmem:[#allocation11 + $0x1e0] sm:$0xff]
    %v969 = vld [vmem:[#allocation11 + $0x1e8] sm:$0xff]
    %v970 = vld [vmem:[#allocation11 + $0x1f0] sm:$0xff]
    %v971 = vld [vmem:[#allocation11 + $0x1f8] sm:$0xff]
    %v972 = vld [vmem:[#allocation11 + $0x200] sm:$0xff]
    %v973 = vld [vmem:[#allocation11 + $0x208] sm:$0xff]
    %v974 = vld [vmem:[#allocation11 + $0x210] sm:$0xff]
    %v975 = vld [vmem:[#allocation11 + $0x218] sm:$0xff]
    %v976 = vld [vmem:[#allocation11 + $0x220] sm:$0xff]
    %v977 = vld [vmem:[#allocation11 + $0x228] sm:$0xff]
    %v978 = vld [vmem:[#allocation11 + $0x230] sm:$0xff]
    %v979 = vld [vmem:[#allocation11 + $0x238] sm:$0xff]
    %v980 = vld [vmem:[#allocation11 + $0x240] sm:$0xff]
    %v981 = vld [vmem:[#allocation11 + $0x248] sm:$0xff]
    %v982 = vld [vmem:[#allocation11 + $0x250] sm:$0xff]
    %v983 = vld [vmem:[#allocation11 + $0x258] sm:$0xff]
    %v984 = vld [vmem:[#allocation11 + $0x260] sm:$0xff]
    %v985 = vld [vmem:[#allocation11 + $0x268] sm:$0xff]
    %v986 = vld [vmem:[#allocation11 + $0x270] sm:$0xff]
    %v987 = vld [vmem:[#allocation11 + $0x278] sm:$0xff]
    %v988 = vld [vmem:[#allocation11 + $0x280] sm:$0xff]
    %v989 = vld [vmem:[#allocation11 + $0x288] sm:$0xff]
    %v990 = vld [vmem:[#allocation11 + $0x290] sm:$0xff]
    %v991 = vld [vmem:[#allocation11 + $0x298] sm:$0xff]
    %v992 = vld [vmem:[#allocation11 + $0x2a0] sm:$0xff]
    %v993 = vld [vmem:[#allocation11 + $0x2a8] sm:$0xff]
    %v994 = vld [vmem:[#allocation11 + $0x2b0] sm:$0xff]
    %v995 = vld [vmem:[#allocation11 + $0x2b8] sm:$0xff]
    %v996 = vld [vmem:[#allocation11 + $0x2c0] sm:$0xff]
    %v997 = vld [vmem:[#allocation11 + $0x2c8] sm:$0xff]
    %v998 = vld [vmem:[#allocation11 + $0x2d0] sm:$0xff]
    %v999 = vld [vmem:[#allocation11 + $0x2d8] sm:$0xff]
    %v1000 = vld [vmem:[#allocation11 + $0x2e0] sm:$0xff]
    %v1001 = vld [vmem:[#allocation11 + $0x2e8] sm:$0xff]
    %v1002 = vld [vmem:[#allocation11 + $0x2f0] sm:$0xff]
    %v1003 = vld [vmem:[#allocation11 + $0x2f8] sm:$0xff]
    %v1004 = vld [vmem:[#allocation11 + $0x300] sm:$0xff]
    %v1005 = vld [vmem:[#allocation11 + $0x308] sm:$0xff]
    %v1006 = vld [vmem:[#allocation11 + $0x310] sm:$0xff]
    %v1007 = vld [vmem:[#allocation11 + $0x318] sm:$0xff]
    %v1008 = vld [vmem:[#allocation11 + $0x320] sm:$0xff]
    %v1009 = vld [vmem:[#allocation11 + $0x328] sm:$0xff]
    %v1010 = vld [vmem:[#allocation11 + $0x330] sm:$0xff]
    %v1011 = vld [vmem:[#allocation11 + $0x338] sm:$0xff]
    %v1012 = vld [vmem:[#allocation11 + $0x340] sm:$0xff]
    %v1013 = vld [vmem:[#allocation11 + $0x348] sm:$0xff]
    %v1014 = vld [vmem:[#allocation11 + $0x350] sm:$0xff]
    %v1015 = vld [vmem:[#allocation11 + $0x358] sm:$0xff]
    %v1016 = vld [vmem:[#allocation11 + $0x360] sm:$0xff]
    %v1017 = vld [vmem:[#allocation11 + $0x368] sm:$0xff]
    %v1018 = vld [vmem:[#allocation11 + $0x370] sm:$0xff]
    %v1019 = vld [vmem:[#allocation11 + $0x378] sm:$0xff]
    %v1020 = vld [vmem:[#allocation11 + $0x380] sm:$0xff]
    %v1021 = vld [vmem:[#allocation11 + $0x388] sm:$0xff]
    %v1022 = vld [vmem:[#allocation11 + $0x390] sm:$0xff]
    %v1023 = vld [vmem:[#allocation11 + $0x398] sm:$0xff]
    %v1024 = vld [vmem:[#allocation11 + $0x3a0] sm:$0xff]
    %v1025 = vld [vmem:[#allocation11 + $0x3a8] sm:$0xff]
    %v1026 = vld [vmem:[#allocation11 + $0x3b0] sm:$0xff]
    %v1027 = vld [vmem:[#allocation11 + $0x3b8] sm:$0xff]
    %v1028 = vld [vmem:[#allocation11 + $0x3c0] sm:$0xff]
    %v1029 = vld [vmem:[#allocation11 + $0x3c8] sm:$0xff]
    %v1030 = vld [vmem:[#allocation11 + $0x3d0] sm:$0xff]
    %v1031 = vld [vmem:[#allocation11 + $0x3d8] sm:$0xff]
    %v1032 = vld [vmem:[#allocation11 + $0x3e0] sm:$0xff]
    %v1033 = vld [vmem:[#allocation11 + $0x3e8] sm:$0xff]
    %v1034 = vld [vmem:[#allocation11 + $0x3f0] sm:$0xff]
    %v1035 = vld [vmem:[#allocation11 + $0x3f8] sm:$0xff]
    %v1036 = vld [vmem:[#allocation11 + $0x400] sm:$0xff]
    %v1037 = vld [vmem:[#allocation11 + $0x408] sm:$0xff]
    %v1038 = vld [vmem:[#allocation11 + $0x410] sm:$0xff]
    %v1039 = vld [vmem:[#allocation11 + $0x418] sm:$0xff]
    %v1040 = vld [vmem:[#allocation11 + $0x420] sm:$0xff]
    %v1041 = vld [vmem:[#allocation11 + $0x428] sm:$0xff]
    %v1042 = vld [vmem:[#allocation11 + $0x430] sm:$0xff]
    %v1043 = vld [vmem:[#allocation11 + $0x438] sm:$0xff]
    %v1044 = vld [vmem:[#allocation11 + $0x440] sm:$0xff]
    %v1045 = vld [vmem:[#allocation11 + $0x448] sm:$0xff]
    %v1046 = vld [vmem:[#allocation11 + $0x450] sm:$0xff]
    %v1047 = vld [vmem:[#allocation11 + $0x458] sm:$0xff]
    %v1048 = vld [vmem:[#allocation11 + $0x460] sm:$0xff]
    %v1049 = vld [vmem:[#allocation11 + $0x468] sm:$0xff]
    %v1050 = vld [vmem:[#allocation11 + $0x470] sm:$0xff]
    %v1051 = vld [vmem:[#allocation11 + $0x478] sm:$0xff]
    %v1052 = vld [vmem:[#allocation11 + $0x480] sm:$0xff]
    %v1053 = vld [vmem:[#allocation11 + $0x488] sm:$0xff]
    %v1054 = vld [vmem:[#allocation11 + $0x490] sm:$0xff]
    %v1055 = vld [vmem:[#allocation11 + $0x498] sm:$0xff]
    %v1056 = vld [vmem:[#allocation11 + $0x4a0] sm:$0xff]
    %v1057 = vld [vmem:[#allocation11 + $0x4a8] sm:$0xff]
    %v1058 = vld [vmem:[#allocation11 + $0x4b0] sm:$0xff]
    %v1059 = vld [vmem:[#allocation11 + $0x4b8] sm:$0xff]
    %v1060 = vld [vmem:[#allocation11 + $0x4c0] sm:$0xff]
    %v1061 = vld [vmem:[#allocation11 + $0x4c8] sm:$0xff]
    %v1062 = vld [vmem:[#allocation11 + $0x4d0] sm:$0xff]
    %v1063 = vld [vmem:[#allocation11 + $0x4d8] sm:$0xff]
    %v1064 = vld [vmem:[#allocation11 + $0x4e0] sm:$0xff]
    %v1065 = vld [vmem:[#allocation11 + $0x4e8] sm:$0xff]
    %v1066 = vld [vmem:[#allocation11 + $0x4f0] sm:$0xff]
    %v1067 = vld [vmem:[#allocation11 + $0x4f8] sm:$0xff]
    %v1068 = vld [vmem:[#allocation11 + $0x500] sm:$0xff]
    %v1069 = vld [vmem:[#allocation11 + $0x508] sm:$0xff]
    %v1070 = vld [vmem:[#allocation11 + $0x510] sm:$0xff]
    %v1071 = vld [vmem:[#allocation11 + $0x518] sm:$0xff]
    %v1072 = vld [vmem:[#allocation11 + $0x520] sm:$0xff]
    %v1073 = vld [vmem:[#allocation11 + $0x528] sm:$0xff]
    %v1074 = vld [vmem:[#allocation11 + $0x530] sm:$0xff]
    %v1075 = vld [vmem:[#allocation11 + $0x538] sm:$0xff]
    %v1076 = vld [vmem:[#allocation11 + $0x540] sm:$0xff]
    %v1077 = vld [vmem:[#allocation11 + $0x548] sm:$0xff]
    %v1078 = vld [vmem:[#allocation11 + $0x550] sm:$0xff]
    %v1079 = vld [vmem:[#allocation11 + $0x558] sm:$0xff]
    %v1080 = vld [vmem:[#allocation11 + $0x560] sm:$0xff]
    %v1081 = vld [vmem:[#allocation11 + $0x568] sm:$0xff]
    %v1082 = vld [vmem:[#allocation11 + $0x570] sm:$0xff]
    %v1083 = vld [vmem:[#allocation11 + $0x578] sm:$0xff]
    %v1084 = vld [vmem:[#allocation11 + $0x580] sm:$0xff]
    %v1085 = vld [vmem:[#allocation11 + $0x588] sm:$0xff]
    %v1086 = vld [vmem:[#allocation11 + $0x590] sm:$0xff]
    %v1087 = vld [vmem:[#allocation11 + $0x598] sm:$0xff]
    %v1088 = vld [vmem:[#allocation11 + $0x5a0] sm:$0xff]
    %v1089 = vld [vmem:[#allocation11 + $0x5a8] sm:$0xff]
    %v1090 = vld [vmem:[#allocation11 + $0x5b0] sm:$0xff]
    %v1091 = vld [vmem:[#allocation11 + $0x5b8] sm:$0xff]
    %v1092 = vld [vmem:[#allocation11 + $0x5c0] sm:$0xff]
    %v1093 = vld [vmem:[#allocation11 + $0x5c8] sm:$0xff]
    %v1094 = vld [vmem:[#allocation11 + $0x5d0] sm:$0xff]
    %v1095 = vld [vmem:[#allocation11 + $0x5d8] sm:$0xff]
    %v1096 = vld [vmem:[#allocation11 + $0x5e0] sm:$0xff]
    %v1097 = vld [vmem:[#allocation11 + $0x5e8] sm:$0xff]
    %v1098 = vld [vmem:[#allocation11 + $0x5f0] sm:$0xff]
    %v1099 = vld [vmem:[#allocation11 + $0x5f8] sm:$0xff]
    %v1100 = vld [vmem:[#allocation11 + $0x600] sm:$0xff]
    %v1101 = vld [vmem:[#allocation11 + $0x608] sm:$0xff]
    %v1102 = vld [vmem:[#allocation11 + $0x610] sm:$0xff]
    %v1103 = vld [vmem:[#allocation11 + $0x618] sm:$0xff]
    %v1104 = vld [vmem:[#allocation11 + $0x620] sm:$0xff]
    %v1105 = vld [vmem:[#allocation11 + $0x628] sm:$0xff]
    %v1106 = vld [vmem:[#allocation11 + $0x630] sm:$0xff]
    %v1107 = vld [vmem:[#allocation11 + $0x638] sm:$0xff]
    %v1108 = vld [vmem:[#allocation11 + $0x640] sm:$0xff]
    %v1109 = vld [vmem:[#allocation11 + $0x648] sm:$0xff]
    %v1110 = vld [vmem:[#allocation11 + $0x650] sm:$0xff]
    %v1111 = vld [vmem:[#allocation11 + $0x658] sm:$0xff]
    %v1112 = vld [vmem:[#allocation11 + $0x660] sm:$0xff]
    %v1113 = vld [vmem:[#allocation11 + $0x668] sm:$0xff]
    %v1114 = vld [vmem:[#allocation11 + $0x670] sm:$0xff]
    %v1115 = vld [vmem:[#allocation11 + $0x678] sm:$0xff]
    %v1116 = vld [vmem:[#allocation11 + $0x680] sm:$0xff]
    %v1117 = vld [vmem:[#allocation11 + $0x688] sm:$0xff]
    %v1118 = vld [vmem:[#allocation11 + $0x690] sm:$0xff]
    %v1119 = vld [vmem:[#allocation11 + $0x698] sm:$0xff]
    %v1120 = vld [vmem:[#allocation11 + $0x6a0] sm:$0xff]
    %v1121 = vld [vmem:[#allocation11 + $0x6a8] sm:$0xff]
    %v1122 = vld [vmem:[#allocation11 + $0x6b0] sm:$0xff]
    %v1123 = vld [vmem:[#allocation11 + $0x6b8] sm:$0xff]
    %v1124 = vld [vmem:[#allocation11 + $0x6c0] sm:$0xff]
    %v1125 = vld [vmem:[#allocation11 + $0x6c8] sm:$0xff]
    %v1126 = vld [vmem:[#allocation11 + $0x6d0] sm:$0xff]
    %v1127 = vld [vmem:[#allocation11 + $0x6d8] sm:$0xff]
    %v1128 = vld [vmem:[#allocation11 + $0x6e0] sm:$0xff]
    %v1129 = vld [vmem:[#allocation11 + $0x6e8] sm:$0xff]
    %v1130 = vld [vmem:[#allocation11 + $0x6f0] sm:$0xff]
    %v1131 = vld [vmem:[#allocation11 + $0x6f8] sm:$0xff]
    %v1132 = vld [vmem:[#allocation11 + $0x700] sm:$0xff]
    %v1133 = vld [vmem:[#allocation11 + $0x708] sm:$0xff]
    %v1134 = vld [vmem:[#allocation11 + $0x710] sm:$0xff]
    %v1135 = vld [vmem:[#allocation11 + $0x718] sm:$0xff]
    %v1136 = vld [vmem:[#allocation11 + $0x720] sm:$0xff]
    %v1137 = vld [vmem:[#allocation11 + $0x728] sm:$0xff]
    %v1138 = vld [vmem:[#allocation11 + $0x730] sm:$0xff]
    %v1139 = vld [vmem:[#allocation11 + $0x738] sm:$0xff]
    %v1140 = vld [vmem:[#allocation11 + $0x740] sm:$0xff]
    %v1141 = vld [vmem:[#allocation11 + $0x748] sm:$0xff]
    %v1142 = vld [vmem:[#allocation11 + $0x750] sm:$0xff]
    %v1143 = vld [vmem:[#allocation11 + $0x758] sm:$0xff]
    %v1144 = vld [vmem:[#allocation11 + $0x760] sm:$0xff]
    %v1145 = vld [vmem:[#allocation11 + $0x768] sm:$0xff]
    %v1146 = vld [vmem:[#allocation11 + $0x770] sm:$0xff]
    %v1147 = vld [vmem:[#allocation11 + $0x778] sm:$0xff]
    %v1148 = vld [vmem:[#allocation11 + $0x780] sm:$0xff]
    %v1149 = vld [vmem:[#allocation11 + $0x788] sm:$0xff]
    %v1150 = vld [vmem:[#allocation11 + $0x790] sm:$0xff]
    %v1151 = vld [vmem:[#allocation11 + $0x798] sm:$0xff]
    %v1152 = vld [vmem:[#allocation11 + $0x7a0] sm:$0xff]
    %v1153 = vld [vmem:[#allocation11 + $0x7a8] sm:$0xff]
    %v1154 = vld [vmem:[#allocation11 + $0x7b0] sm:$0xff]
    %v1155 = vld [vmem:[#allocation11 + $0x7b8] sm:$0xff]
    %v1156 = vld [vmem:[#allocation11 + $0x7c0] sm:$0xff]
    %v1157 = vld [vmem:[#allocation11 + $0x7c8] sm:$0xff]
    %v1158 = vld [vmem:[#allocation11 + $0x7d0] sm:$0xff]
    %v1159 = vld [vmem:[#allocation11 + $0x7d8] sm:$0xff]
    %v1160 = vld [vmem:[#allocation11 + $0x7e0] sm:$0xff]
    %v1161 = vld [vmem:[#allocation11 + $0x7e8] sm:$0xff]
    %v1162 = vld [vmem:[#allocation11 + $0x7f0] sm:$0xff]
    %v1163 = vld [vmem:[#allocation11 + $0x7f8] sm:$0xff]
    %v1164 = vld [vmem:[%s8] sm:$0xff]
    %v1166 = vlaneseq
    %v1167 = vshrl.u32 %v1166, 7
    %v1168 = vsub.s32 0, %v1167
    %v1169 = vrot.slane %v1164, %v1168
    %v1170 = vlaneseq
    %v1171 = vshrl.u32 %v1170, 7
    %v1172 = vsub.s32 1, %v1171
    %v1173 = vrot.slane %v1164, %v1172
    %v1174 = vlaneseq
    %v1175 = vshrl.u32 %v1174, 7
    %v1176 = vsub.s32 2, %v1175
    %v1177 = vrot.slane %v1164, %v1176
    %v1178 = vlaneseq
    %v1179 = vshrl.u32 %v1178, 7
    %v1180 = vsub.s32 3, %v1179
    %v1181 = vrot.slane %v1164, %v1180
    %v1182 = vlaneseq
    %v1183 = vshrl.u32 %v1182, 7
    %v1184 = vsub.s32 4, %v1183
    %v1185 = vrot.slane %v1164, %v1184
    %v1186 = vlaneseq
    %v1187 = vshrl.u32 %v1186, 7
    %v1188 = vsub.s32 5, %v1187
    %v1189 = vrot.slane %v1164, %v1188
    %v1190 = vlaneseq
    %v1191 = vshrl.u32 %v1190, 7
    %v1192 = vsub.s32 6, %v1191
    %v1193 = vrot.slane %v1164, %v1192
    %v1194 = vlaneseq
    %v1195 = vshrl.u32 %v1194, 7
    %v1196 = vsub.s32 7, %v1195
    %v1197 = vrot.slane %v1164, %v1196
    %v1462 = vunpack.c.l.b16 %v908
    %v1463 = vunpack.c.h.b16 %v908
    %v1464 = vunpack.c.l.b16 %v909
    %v1465 = vunpack.c.h.b16 %v909
    %v1466 = vunpack.c.l.b16 %v910
    %v1467 = vunpack.c.h.b16 %v910
    %v1468 = vunpack.c.l.b16 %v911
    %v1469 = vunpack.c.h.b16 %v911
    %v1470 = vunpack.c.l.b16 %v912
    %v1471 = vunpack.c.h.b16 %v912
    %v1472 = vunpack.c.l.b16 %v913
    %v1473 = vunpack.c.h.b16 %v913
    %v1474 = vunpack.c.l.b16 %v914
    %v1475 = vunpack.c.h.b16 %v914
    %v1476 = vunpack.c.l.b16 %v915
    %v1477 = vunpack.c.h.b16 %v915
    %v1478 = vunpack.c.l.b16 %v916
    %v1479 = vunpack.c.h.b16 %v916
    %v1480 = vunpack.c.l.b16 %v917
    %v1481 = vunpack.c.h.b16 %v917
    %v1482 = vunpack.c.l.b16 %v918
    %v1483 = vunpack.c.h.b16 %v918
    %v1484 = vunpack.c.l.b16 %v919
    %v1485 = vunpack.c.h.b16 %v919
    %v1486 = vunpack.c.l.b16 %v920
    %v1487 = vunpack.c.h.b16 %v920
    %v1488 = vunpack.c.l.b16 %v921
    %v1489 = vunpack.c.h.b16 %v921
    %v1490 = vunpack.c.l.b16 %v922
    %v1491 = vunpack.c.h.b16 %v922
    %v1492 = vunpack.c.l.b16 %v923
    %v1493 = vunpack.c.h.b16 %v923
    %v1494 = vunpack.c.l.b16 %v924
    %v1495 = vunpack.c.h.b16 %v924
    %v1496 = vunpack.c.l.b16 %v925
    %v1497 = vunpack.c.h.b16 %v925
    %v1498 = vunpack.c.l.b16 %v926
    %v1499 = vunpack.c.h.b16 %v926
    %v1500 = vunpack.c.l.b16 %v927
    %v1501 = vunpack.c.h.b16 %v927
    %v1502 = vunpack.c.l.b16 %v928
    %v1503 = vunpack.c.h.b16 %v928
    %v1504 = vunpack.c.l.b16 %v929
    %v1505 = vunpack.c.h.b16 %v929
    %v1506 = vunpack.c.l.b16 %v930
    %v1507 = vunpack.c.h.b16 %v930
    %v1508 = vunpack.c.l.b16 %v931
    %v1509 = vunpack.c.h.b16 %v931
    %v1510 = vunpack.c.l.b16 %v932
    %v1511 = vunpack.c.h.b16 %v932
    %v1512 = vunpack.c.l.b16 %v933
    %v1513 = vunpack.c.h.b16 %v933
    %v1514 = vunpack.c.l.b16 %v934
    %v1515 = vunpack.c.h.b16 %v934
    %v1516 = vunpack.c.l.b16 %v935
    %v1517 = vunpack.c.h.b16 %v935
    %v1518 = vunpack.c.l.b16 %v936
    %v1519 = vunpack.c.h.b16 %v936
    %v1520 = vunpack.c.l.b16 %v937
    %v1521 = vunpack.c.h.b16 %v937
    %v1522 = vunpack.c.l.b16 %v938
    %v1523 = vunpack.c.h.b16 %v938
    %v1524 = vunpack.c.l.b16 %v939
    %v1525 = vunpack.c.h.b16 %v939
    %v1526 = vunpack.c.l.b16 %v940
    %v1527 = vunpack.c.h.b16 %v940
    %v1528 = vunpack.c.l.b16 %v941
    %v1529 = vunpack.c.h.b16 %v941
    %v1530 = vunpack.c.l.b16 %v942
    %v1531 = vunpack.c.h.b16 %v942
    %v1532 = vunpack.c.l.b16 %v943
    %v1533 = vunpack.c.h.b16 %v943
    %v1534 = vunpack.c.l.b16 %v944
    %v1535 = vunpack.c.h.b16 %v944
    %v1536 = vunpack.c.l.b16 %v945
    %v1537 = vunpack.c.h.b16 %v945
    %v1538 = vunpack.c.l.b16 %v946
    %v1539 = vunpack.c.h.b16 %v946
    %v1540 = vunpack.c.l.b16 %v947
    %v1541 = vunpack.c.h.b16 %v947
    %v1542 = vunpack.c.l.b16 %v948
    %v1543 = vunpack.c.h.b16 %v948
    %v1544 = vunpack.c.l.b16 %v949
    %v1545 = vunpack.c.h.b16 %v949
    %v1546 = vunpack.c.l.b16 %v950
    %v1547 = vunpack.c.h.b16 %v950
    %v1548 = vunpack.c.l.b16 %v951
    %v1549 = vunpack.c.h.b16 %v951
    %v1550 = vunpack.c.l.b16 %v952
    %v1551 = vunpack.c.h.b16 %v952
    %v1552 = vunpack.c.l.b16 %v953
    %v1553 = vunpack.c.h.b16 %v953
    %v1554 = vunpack.c.l.b16 %v954
    %v1555 = vunpack.c.h.b16 %v954
    %v1556 = vunpack.c.l.b16 %v955
    %v1557 = vunpack.c.h.b16 %v955
    %v1558 = vunpack.c.l.b16 %v956
    %v1559 = vunpack.c.h.b16 %v956
    %v1560 = vunpack.c.l.b16 %v957
    %v1561 = vunpack.c.h.b16 %v957
    %v1562 = vunpack.c.l.b16 %v958
    %v1563 = vunpack.c.h.b16 %v958
    %v1564 = vunpack.c.l.b16 %v959
    %v1565 = vunpack.c.h.b16 %v959
    %v1566 = vunpack.c.l.b16 %v960
    %v1567 = vunpack.c.h.b16 %v960
    %v1568 = vunpack.c.l.b16 %v961
    %v1569 = vunpack.c.h.b16 %v961
    %v1570 = vunpack.c.l.b16 %v962
    %v1571 = vunpack.c.h.b16 %v962
    %v1572 = vunpack.c.l.b16 %v963
    %v1573 = vunpack.c.h.b16 %v963
    %v1574 = vunpack.c.l.b16 %v964
    %v1575 = vunpack.c.h.b16 %v964
    %v1576 = vunpack.c.l.b16 %v965
    %v1577 = vunpack.c.h.b16 %v965
    %v1578 = vunpack.c.l.b16 %v966
    %v1579 = vunpack.c.h.b16 %v966
    %v1580 = vunpack.c.l.b16 %v967
    %v1581 = vunpack.c.h.b16 %v967
    %v1582 = vunpack.c.l.b16 %v968
    %v1583 = vunpack.c.h.b16 %v968
    %v1584 = vunpack.c.l.b16 %v969
    %v1585 = vunpack.c.h.b16 %v969
    %v1586 = vunpack.c.l.b16 %v970
    %v1587 = vunpack.c.h.b16 %v970
    %v1588 = vunpack.c.l.b16 %v971
    %v1589 = vunpack.c.h.b16 %v971
    %v1590 = vunpack.c.l.b16 %v972
    %v1591 = vunpack.c.h.b16 %v972
    %v1592 = vunpack.c.l.b16 %v973
    %v1593 = vunpack.c.h.b16 %v973
    %v1594 = vunpack.c.l.b16 %v974
    %v1595 = vunpack.c.h.b16 %v974
    %v1596 = vunpack.c.l.b16 %v975
    %v1597 = vunpack.c.h.b16 %v975
    %v1598 = vunpack.c.l.b16 %v976
    %v1599 = vunpack.c.h.b16 %v976
    %v1600 = vunpack.c.l.b16 %v977
    %v1601 = vunpack.c.h.b16 %v977
    %v1602 = vunpack.c.l.b16 %v978
    %v1603 = vunpack.c.h.b16 %v978
    %v1604 = vunpack.c.l.b16 %v979
    %v1605 = vunpack.c.h.b16 %v979
    %v1606 = vunpack.c.l.b16 %v980
    %v1607 = vunpack.c.h.b16 %v980
    %v1608 = vunpack.c.l.b16 %v981
    %v1609 = vunpack.c.h.b16 %v981
    %v1610 = vunpack.c.l.b16 %v982
    %v1611 = vunpack.c.h.b16 %v982
    %v1612 = vunpack.c.l.b16 %v983
    %v1613 = vunpack.c.h.b16 %v983
    %v1614 = vunpack.c.l.b16 %v984
    %v1615 = vunpack.c.h.b16 %v984
    %v1616 = vunpack.c.l.b16 %v985
    %v1617 = vunpack.c.h.b16 %v985
    %v1618 = vunpack.c.l.b16 %v986
    %v1619 = vunpack.c.h.b16 %v986
    %v1620 = vunpack.c.l.b16 %v987
    %v1621 = vunpack.c.h.b16 %v987
    %v1622 = vunpack.c.l.b16 %v988
    %v1623 = vunpack.c.h.b16 %v988
    %v1624 = vunpack.c.l.b16 %v989
    %v1625 = vunpack.c.h.b16 %v989
    %v1626 = vunpack.c.l.b16 %v990
    %v1627 = vunpack.c.h.b16 %v990
    %v1628 = vunpack.c.l.b16 %v991
    %v1629 = vunpack.c.h.b16 %v991
    %v1630 = vunpack.c.l.b16 %v992
    %v1631 = vunpack.c.h.b16 %v992
    %v1632 = vunpack.c.l.b16 %v993
    %v1633 = vunpack.c.h.b16 %v993
    %v1634 = vunpack.c.l.b16 %v994
    %v1635 = vunpack.c.h.b16 %v994
    %v1636 = vunpack.c.l.b16 %v995
    %v1637 = vunpack.c.h.b16 %v995
    %v1638 = vunpack.c.l.b16 %v996
    %v1639 = vunpack.c.h.b16 %v996
    %v1640 = vunpack.c.l.b16 %v997
    %v1641 = vunpack.c.h.b16 %v997
    %v1642 = vunpack.c.l.b16 %v998
    %v1643 = vunpack.c.h.b16 %v998
    %v1644 = vunpack.c.l.b16 %v999
    %v1645 = vunpack.c.h.b16 %v999
    %v1646 = vunpack.c.l.b16 %v1000
    %v1647 = vunpack.c.h.b16 %v1000
    %v1648 = vunpack.c.l.b16 %v1001
    %v1649 = vunpack.c.h.b16 %v1001
    %v1650 = vunpack.c.l.b16 %v1002
    %v1651 = vunpack.c.h.b16 %v1002
    %v1652 = vunpack.c.l.b16 %v1003
    %v1653 = vunpack.c.h.b16 %v1003
    %v1654 = vunpack.c.l.b16 %v1004
    %v1655 = vunpack.c.h.b16 %v1004
    %v1656 = vunpack.c.l.b16 %v1005
    %v1657 = vunpack.c.h.b16 %v1005
    %v1658 = vunpack.c.l.b16 %v1006
    %v1659 = vunpack.c.h.b16 %v1006
    %v1660 = vunpack.c.l.b16 %v1007
    %v1661 = vunpack.c.h.b16 %v1007
    %v1662 = vunpack.c.l.b16 %v1008
    %v1663 = vunpack.c.h.b16 %v1008
    %v1664 = vunpack.c.l.b16 %v1009
    %v1665 = vunpack.c.h.b16 %v1009
    %v1666 = vunpack.c.l.b16 %v1010
    %v1667 = vunpack.c.h.b16 %v1010
    %v1668 = vunpack.c.l.b16 %v1011
    %v1669 = vunpack.c.h.b16 %v1011
    %v1670 = vunpack.c.l.b16 %v1012
    %v1671 = vunpack.c.h.b16 %v1012
    %v1672 = vunpack.c.l.b16 %v1013
    %v1673 = vunpack.c.h.b16 %v1013
    %v1674 = vunpack.c.l.b16 %v1014
    %v1675 = vunpack.c.h.b16 %v1014
    %v1676 = vunpack.c.l.b16 %v1015
    %v1677 = vunpack.c.h.b16 %v1015
    %v1678 = vunpack.c.l.b16 %v1016
    %v1679 = vunpack.c.h.b16 %v1016
    %v1680 = vunpack.c.l.b16 %v1017
    %v1681 = vunpack.c.h.b16 %v1017
    %v1682 = vunpack.c.l.b16 %v1018
    %v1683 = vunpack.c.h.b16 %v1018
    %v1684 = vunpack.c.l.b16 %v1019
    %v1685 = vunpack.c.h.b16 %v1019
    %v1686 = vunpack.c.l.b16 %v1020
    %v1687 = vunpack.c.h.b16 %v1020
    %v1688 = vunpack.c.l.b16 %v1021
    %v1689 = vunpack.c.h.b16 %v1021
    %v1690 = vunpack.c.l.b16 %v1022
    %v1691 = vunpack.c.h.b16 %v1022
    %v1692 = vunpack.c.l.b16 %v1023
    %v1693 = vunpack.c.h.b16 %v1023
    %v1694 = vunpack.c.l.b16 %v1024
    %v1695 = vunpack.c.h.b16 %v1024
    %v1696 = vunpack.c.l.b16 %v1025
    %v1697 = vunpack.c.h.b16 %v1025
    %v1698 = vunpack.c.l.b16 %v1026
    %v1699 = vunpack.c.h.b16 %v1026
    %v1700 = vunpack.c.l.b16 %v1027
    %v1701 = vunpack.c.h.b16 %v1027
    %v1702 = vunpack.c.l.b16 %v1028
    %v1703 = vunpack.c.h.b16 %v1028
    %v1704 = vunpack.c.l.b16 %v1029
    %v1705 = vunpack.c.h.b16 %v1029
    %v1706 = vunpack.c.l.b16 %v1030
    %v1707 = vunpack.c.h.b16 %v1030
    %v1708 = vunpack.c.l.b16 %v1031
    %v1709 = vunpack.c.h.b16 %v1031
    %v1710 = vunpack.c.l.b16 %v1032
    %v1711 = vunpack.c.h.b16 %v1032
    %v1712 = vunpack.c.l.b16 %v1033
    %v1713 = vunpack.c.h.b16 %v1033
    %v1714 = vunpack.c.l.b16 %v1034
    %v1715 = vunpack.c.h.b16 %v1034
    %v1716 = vunpack.c.l.b16 %v1035
    %v1717 = vunpack.c.h.b16 %v1035
    %v1718 = vunpack.c.l.b16 %v1036
    %v1719 = vunpack.c.h.b16 %v1036
    %v1720 = vunpack.c.l.b16 %v1037
    %v1721 = vunpack.c.h.b16 %v1037
    %v1722 = vunpack.c.l.b16 %v1038
    %v1723 = vunpack.c.h.b16 %v1038
    %v1724 = vunpack.c.l.b16 %v1039
    %v1725 = vunpack.c.h.b16 %v1039
    %v1726 = vunpack.c.l.b16 %v1040
    %v1727 = vunpack.c.h.b16 %v1040
    %v1728 = vunpack.c.l.b16 %v1041
    %v1729 = vunpack.c.h.b16 %v1041
    %v1730 = vunpack.c.l.b16 %v1042
    %v1731 = vunpack.c.h.b16 %v1042
    %v1732 = vunpack.c.l.b16 %v1043
    %v1733 = vunpack.c.h.b16 %v1043
    %v1734 = vunpack.c.l.b16 %v1044
    %v1735 = vunpack.c.h.b16 %v1044
    %v1736 = vunpack.c.l.b16 %v1045
    %v1737 = vunpack.c.h.b16 %v1045
    %v1738 = vunpack.c.l.b16 %v1046
    %v1739 = vunpack.c.h.b16 %v1046
    %v1740 = vunpack.c.l.b16 %v1047
    %v1741 = vunpack.c.h.b16 %v1047
    %v1742 = vunpack.c.l.b16 %v1048
    %v1743 = vunpack.c.h.b16 %v1048
    %v1744 = vunpack.c.l.b16 %v1049
    %v1745 = vunpack.c.h.b16 %v1049
    %v1746 = vunpack.c.l.b16 %v1050
    %v1747 = vunpack.c.h.b16 %v1050
    %v1748 = vunpack.c.l.b16 %v1051
    %v1749 = vunpack.c.h.b16 %v1051
    %v1750 = vunpack.c.l.b16 %v1052
    %v1751 = vunpack.c.h.b16 %v1052
    %v1752 = vunpack.c.l.b16 %v1053
    %v1753 = vunpack.c.h.b16 %v1053
    %v1754 = vunpack.c.l.b16 %v1054
    %v1755 = vunpack.c.h.b16 %v1054
    %v1756 = vunpack.c.l.b16 %v1055
    %v1757 = vunpack.c.h.b16 %v1055
    %v1758 = vunpack.c.l.b16 %v1056
    %v1759 = vunpack.c.h.b16 %v1056
    %v1760 = vunpack.c.l.b16 %v1057
    %v1761 = vunpack.c.h.b16 %v1057
    %v1762 = vunpack.c.l.b16 %v1058
    %v1763 = vunpack.c.h.b16 %v1058
    %v1764 = vunpack.c.l.b16 %v1059
    %v1765 = vunpack.c.h.b16 %v1059
    %v1766 = vunpack.c.l.b16 %v1060
    %v1767 = vunpack.c.h.b16 %v1060
    %v1768 = vunpack.c.l.b16 %v1061
    %v1769 = vunpack.c.h.b16 %v1061
    %v1770 = vunpack.c.l.b16 %v1062
    %v1771 = vunpack.c.h.b16 %v1062
    %v1772 = vunpack.c.l.b16 %v1063
    %v1773 = vunpack.c.h.b16 %v1063
    %v1774 = vunpack.c.l.b16 %v1064
    %v1775 = vunpack.c.h.b16 %v1064
    %v1776 = vunpack.c.l.b16 %v1065
    %v1777 = vunpack.c.h.b16 %v1065
    %v1778 = vunpack.c.l.b16 %v1066
    %v1779 = vunpack.c.h.b16 %v1066
    %v1780 = vunpack.c.l.b16 %v1067
    %v1781 = vunpack.c.h.b16 %v1067
    %v1782 = vunpack.c.l.b16 %v1068
    %v1783 = vunpack.c.h.b16 %v1068
    %v1784 = vunpack.c.l.b16 %v1069
    %v1785 = vunpack.c.h.b16 %v1069
    %v1786 = vunpack.c.l.b16 %v1070
    %v1787 = vunpack.c.h.b16 %v1070
    %v1788 = vunpack.c.l.b16 %v1071
    %v1789 = vunpack.c.h.b16 %v1071
    %v1790 = vunpack.c.l.b16 %v1072
    %v1791 = vunpack.c.h.b16 %v1072
    %v1792 = vunpack.c.l.b16 %v1073
    %v1793 = vunpack.c.h.b16 %v1073
    %v1794 = vunpack.c.l.b16 %v1074
    %v1795 = vunpack.c.h.b16 %v1074
    %v1796 = vunpack.c.l.b16 %v1075
    %v1797 = vunpack.c.h.b16 %v1075
    %v1798 = vunpack.c.l.b16 %v1076
    %v1799 = vunpack.c.h.b16 %v1076
    %v1800 = vunpack.c.l.b16 %v1077
    %v1801 = vunpack.c.h.b16 %v1077
    %v1802 = vunpack.c.l.b16 %v1078
    %v1803 = vunpack.c.h.b16 %v1078
    %v1804 = vunpack.c.l.b16 %v1079
    %v1805 = vunpack.c.h.b16 %v1079
    %v1806 = vunpack.c.l.b16 %v1080
    %v1807 = vunpack.c.h.b16 %v1080
    %v1808 = vunpack.c.l.b16 %v1081
    %v1809 = vunpack.c.h.b16 %v1081
    %v1810 = vunpack.c.l.b16 %v1082
    %v1811 = vunpack.c.h.b16 %v1082
    %v1812 = vunpack.c.l.b16 %v1083
    %v1813 = vunpack.c.h.b16 %v1083
    %v1814 = vunpack.c.l.b16 %v1084
    %v1815 = vunpack.c.h.b16 %v1084
    %v1816 = vunpack.c.l.b16 %v1085
    %v1817 = vunpack.c.h.b16 %v1085
    %v1818 = vunpack.c.l.b16 %v1086
    %v1819 = vunpack.c.h.b16 %v1086
    %v1820 = vunpack.c.l.b16 %v1087
    %v1821 = vunpack.c.h.b16 %v1087
    %v1822 = vunpack.c.l.b16 %v1088
    %v1823 = vunpack.c.h.b16 %v1088
    %v1824 = vunpack.c.l.b16 %v1089
    %v1825 = vunpack.c.h.b16 %v1089
    %v1826 = vunpack.c.l.b16 %v1090
    %v1827 = vunpack.c.h.b16 %v1090
    %v1828 = vunpack.c.l.b16 %v1091
    %v1829 = vunpack.c.h.b16 %v1091
    %v1830 = vunpack.c.l.b16 %v1092
    %v1831 = vunpack.c.h.b16 %v1092
    %v1832 = vunpack.c.l.b16 %v1093
    %v1833 = vunpack.c.h.b16 %v1093
    %v1834 = vunpack.c.l.b16 %v1094
    %v1835 = vunpack.c.h.b16 %v1094
    %v1836 = vunpack.c.l.b16 %v1095
    %v1837 = vunpack.c.h.b16 %v1095
    %v1838 = vunpack.c.l.b16 %v1096
    %v1839 = vunpack.c.h.b16 %v1096
    %v1840 = vunpack.c.l.b16 %v1097
    %v1841 = vunpack.c.h.b16 %v1097
    %v1842 = vunpack.c.l.b16 %v1098
    %v1843 = vunpack.c.h.b16 %v1098
    %v1844 = vunpack.c.l.b16 %v1099
    %v1845 = vunpack.c.h.b16 %v1099
    %v1846 = vunpack.c.l.b16 %v1100
    %v1847 = vunpack.c.h.b16 %v1100
    %v1848 = vunpack.c.l.b16 %v1101
    %v1849 = vunpack.c.h.b16 %v1101
    %v1850 = vunpack.c.l.b16 %v1102
    %v1851 = vunpack.c.h.b16 %v1102
    %v1852 = vunpack.c.l.b16 %v1103
    %v1853 = vunpack.c.h.b16 %v1103
    %v1854 = vunpack.c.l.b16 %v1104
    %v1855 = vunpack.c.h.b16 %v1104
    %v1856 = vunpack.c.l.b16 %v1105
    %v1857 = vunpack.c.h.b16 %v1105
    %v1858 = vunpack.c.l.b16 %v1106
    %v1859 = vunpack.c.h.b16 %v1106
    %v1860 = vunpack.c.l.b16 %v1107
    %v1861 = vunpack.c.h.b16 %v1107
    %v1862 = vunpack.c.l.b16 %v1108
    %v1863 = vunpack.c.h.b16 %v1108
    %v1864 = vunpack.c.l.b16 %v1109
    %v1865 = vunpack.c.h.b16 %v1109
    %v1866 = vunpack.c.l.b16 %v1110
    %v1867 = vunpack.c.h.b16 %v1110
    %v1868 = vunpack.c.l.b16 %v1111
    %v1869 = vunpack.c.h.b16 %v1111
    %v1870 = vunpack.c.l.b16 %v1112
    %v1871 = vunpack.c.h.b16 %v1112
    %v1872 = vunpack.c.l.b16 %v1113
    %v1873 = vunpack.c.h.b16 %v1113
    %v1874 = vunpack.c.l.b16 %v1114
    %v1875 = vunpack.c.h.b16 %v1114
    %v1876 = vunpack.c.l.b16 %v1115
    %v1877 = vunpack.c.h.b16 %v1115
    %v1878 = vunpack.c.l.b16 %v1116
    %v1879 = vunpack.c.h.b16 %v1116
    %v1880 = vunpack.c.l.b16 %v1117
    %v1881 = vunpack.c.h.b16 %v1117
    %v1882 = vunpack.c.l.b16 %v1118
    %v1883 = vunpack.c.h.b16 %v1118
    %v1884 = vunpack.c.l.b16 %v1119
    %v1885 = vunpack.c.h.b16 %v1119
    %v1886 = vunpack.c.l.b16 %v1120
    %v1887 = vunpack.c.h.b16 %v1120
    %v1888 = vunpack.c.l.b16 %v1121
    %v1889 = vunpack.c.h.b16 %v1121
    %v1890 = vunpack.c.l.b16 %v1122
    %v1891 = vunpack.c.h.b16 %v1122
    %v1892 = vunpack.c.l.b16 %v1123
    %v1893 = vunpack.c.h.b16 %v1123
    %v1894 = vunpack.c.l.b16 %v1124
    %v1895 = vunpack.c.h.b16 %v1124
    %v1896 = vunpack.c.l.b16 %v1125
    %v1897 = vunpack.c.h.b16 %v1125
    %v1898 = vunpack.c.l.b16 %v1126
    %v1899 = vunpack.c.h.b16 %v1126
    %v1900 = vunpack.c.l.b16 %v1127
    %v1901 = vunpack.c.h.b16 %v1127
    %v1902 = vunpack.c.l.b16 %v1128
    %v1903 = vunpack.c.h.b16 %v1128
    %v1904 = vunpack.c.l.b16 %v1129
    %v1905 = vunpack.c.h.b16 %v1129
    %v1906 = vunpack.c.l.b16 %v1130
    %v1907 = vunpack.c.h.b16 %v1130
    %v1908 = vunpack.c.l.b16 %v1131
    %v1909 = vunpack.c.h.b16 %v1131
    %v1910 = vunpack.c.l.b16 %v1132
    %v1911 = vunpack.c.h.b16 %v1132
    %v1912 = vunpack.c.l.b16 %v1133
    %v1913 = vunpack.c.h.b16 %v1133
    %v1914 = vunpack.c.l.b16 %v1134
    %v1915 = vunpack.c.h.b16 %v1134
    %v1916 = vunpack.c.l.b16 %v1135
    %v1917 = vunpack.c.h.b16 %v1135
    %v1918 = vunpack.c.l.b16 %v1136
    %v1919 = vunpack.c.h.b16 %v1136
    %v1920 = vunpack.c.l.b16 %v1137
    %v1921 = vunpack.c.h.b16 %v1137
    %v1922 = vunpack.c.l.b16 %v1138
    %v1923 = vunpack.c.h.b16 %v1138
    %v1924 = vunpack.c.l.b16 %v1139
    %v1925 = vunpack.c.h.b16 %v1139
    %v1926 = vunpack.c.l.b16 %v1140
    %v1927 = vunpack.c.h.b16 %v1140
    %v1928 = vunpack.c.l.b16 %v1141
    %v1929 = vunpack.c.h.b16 %v1141
    %v1930 = vunpack.c.l.b16 %v1142
    %v1931 = vunpack.c.h.b16 %v1142
    %v1932 = vunpack.c.l.b16 %v1143
    %v1933 = vunpack.c.h.b16 %v1143
    %v1934 = vunpack.c.l.b16 %v1144
    %v1935 = vunpack.c.h.b16 %v1144
    %v1936 = vunpack.c.l.b16 %v1145
    %v1937 = vunpack.c.h.b16 %v1145
    %v1938 = vunpack.c.l.b16 %v1146
    %v1939 = vunpack.c.h.b16 %v1146
    %v1940 = vunpack.c.l.b16 %v1147
    %v1941 = vunpack.c.h.b16 %v1147
    %v1942 = vunpack.c.l.b16 %v1148
    %v1943 = vunpack.c.h.b16 %v1148
    %v1944 = vunpack.c.l.b16 %v1149
    %v1945 = vunpack.c.h.b16 %v1149
    %v1946 = vunpack.c.l.b16 %v1150
    %v1947 = vunpack.c.h.b16 %v1150
    %v1948 = vunpack.c.l.b16 %v1151
    %v1949 = vunpack.c.h.b16 %v1151
    %v1950 = vunpack.c.l.b16 %v1152
    %v1951 = vunpack.c.h.b16 %v1152
    %v1952 = vunpack.c.l.b16 %v1153
    %v1953 = vunpack.c.h.b16 %v1153
    %v1954 = vunpack.c.l.b16 %v1154
    %v1955 = vunpack.c.h.b16 %v1154
    %v1956 = vunpack.c.l.b16 %v1155
    %v1957 = vunpack.c.h.b16 %v1155
    %v1958 = vunpack.c.l.b16 %v1156
    %v1959 = vunpack.c.h.b16 %v1156
    %v1960 = vunpack.c.l.b16 %v1157
    %v1961 = vunpack.c.h.b16 %v1157
    %v1962 = vunpack.c.l.b16 %v1158
    %v1963 = vunpack.c.h.b16 %v1158
    %v1964 = vunpack.c.l.b16 %v1159
    %v1965 = vunpack.c.h.b16 %v1159
    %v1966 = vunpack.c.l.b16 %v1160
    %v1967 = vunpack.c.h.b16 %v1160
    %v1968 = vunpack.c.l.b16 %v1161
    %v1969 = vunpack.c.h.b16 %v1161
    %v1970 = vunpack.c.l.b16 %v1162
    %v1971 = vunpack.c.h.b16 %v1162
    %v1972 = vunpack.c.l.b16 %v1163
    %v1973 = vunpack.c.h.b16 %v1163
    %v1974 = vpack.c.b16 %v1470, %v1462
    %v1975 = vpack.c.b16 %v1471, %v1463
    %v1976 = vpack.c.b16 %v1472, %v1464
    %v1977 = vpack.c.b16 %v1473, %v1465
    %v1978 = vpack.c.b16 %v1474, %v1466
    %v1979 = vpack.c.b16 %v1475, %v1467
    %v1980 = vpack.c.b16 %v1476, %v1468
    %v1981 = vpack.c.b16 %v1477, %v1469
    %v1982 = vpack.c.b16 %v1486, %v1478
    %v1983 = vpack.c.b16 %v1487, %v1479
    %v1984 = vpack.c.b16 %v1488, %v1480
    %v1985 = vpack.c.b16 %v1489, %v1481
    %v1986 = vpack.c.b16 %v1490, %v1482
    %v1987 = vpack.c.b16 %v1491, %v1483
    %v1988 = vpack.c.b16 %v1492, %v1484
    %v1989 = vpack.c.b16 %v1493, %v1485
    %v1990 = vpack.c.b16 %v1502, %v1494
    %v1991 = vpack.c.b16 %v1503, %v1495
    %v1992 = vpack.c.b16 %v1504, %v1496
    %v1993 = vpack.c.b16 %v1505, %v1497
    %v1994 = vpack.c.b16 %v1506, %v1498
    %v1995 = vpack.c.b16 %v1507, %v1499
    %v1996 = vpack.c.b16 %v1508, %v1500
    %v1997 = vpack.c.b16 %v1509, %v1501
    %v1998 = vpack.c.b16 %v1518, %v1510
    %v1999 = vpack.c.b16 %v1519, %v1511
    %v2000 = vpack.c.b16 %v1520, %v1512
    %v2001 = vpack.c.b16 %v1521, %v1513
    %v2002 = vpack.c.b16 %v1522, %v1514
    %v2003 = vpack.c.b16 %v1523, %v1515
    %v2004 = vpack.c.b16 %v1524, %v1516
    %v2005 = vpack.c.b16 %v1525, %v1517
    %v2006 = vpack.c.b16 %v1534, %v1526
    %v2007 = vpack.c.b16 %v1535, %v1527
    %v2008 = vpack.c.b16 %v1536, %v1528
    %v2009 = vpack.c.b16 %v1537, %v1529
    %v2010 = vpack.c.b16 %v1538, %v1530
    %v2011 = vpack.c.b16 %v1539, %v1531
    %v2012 = vpack.c.b16 %v1540, %v1532
    %v2013 = vpack.c.b16 %v1541, %v1533
    %v2014 = vpack.c.b16 %v1550, %v1542
    %v2015 = vpack.c.b16 %v1551, %v1543
    %v2016 = vpack.c.b16 %v1552, %v1544
    %v2017 = vpack.c.b16 %v1553, %v1545
    %v2018 = vpack.c.b16 %v1554, %v1546
    %v2019 = vpack.c.b16 %v1555, %v1547
    %v2020 = vpack.c.b16 %v1556, %v1548
    %v2021 = vpack.c.b16 %v1557, %v1549
    %v2022 = vpack.c.b16 %v1566, %v1558
    %v2023 = vpack.c.b16 %v1567, %v1559
    %v2024 = vpack.c.b16 %v1568, %v1560
    %v2025 = vpack.c.b16 %v1569, %v1561
    %v2026 = vpack.c.b16 %v1570, %v1562
    %v2027 = vpack.c.b16 %v1571, %v1563
    %v2028 = vpack.c.b16 %v1572, %v1564
    %v2029 = vpack.c.b16 %v1573, %v1565
    %v2030 = vpack.c.b16 %v1582, %v1574
    %v2031 = vpack.c.b16 %v1583, %v1575
    %v2032 = vpack.c.b16 %v1584, %v1576
    %v2033 = vpack.c.b16 %v1585, %v1577
    %v2034 = vpack.c.b16 %v1586, %v1578
    %v2035 = vpack.c.b16 %v1587, %v1579
    %v2036 = vpack.c.b16 %v1588, %v1580
    %v2037 = vpack.c.b16 %v1589, %v1581
    %v2038 = vpack.c.b16 %v1598, %v1590
    %v2039 = vpack.c.b16 %v1599, %v1591
    %v2040 = vpack.c.b16 %v1600, %v1592
    %v2041 = vpack.c.b16 %v1601, %v1593
    %v2042 = vpack.c.b16 %v1602, %v1594
    %v2043 = vpack.c.b16 %v1603, %v1595
    %v2044 = vpack.c.b16 %v1604, %v1596
    %v2045 = vpack.c.b16 %v1605, %v1597
    %v2046 = vpack.c.b16 %v1614, %v1606
    %v2047 = vpack.c.b16 %v1615, %v1607
    %v2048 = vpack.c.b16 %v1616, %v1608
    %v2049 = vpack.c.b16 %v1617, %v1609
    %v2050 = vpack.c.b16 %v1618, %v1610
    %v2051 = vpack.c.b16 %v1619, %v1611
    %v2052 = vpack.c.b16 %v1620, %v1612
    %v2053 = vpack.c.b16 %v1621, %v1613
    %v2054 = vpack.c.b16 %v1630, %v1622
    %v2055 = vpack.c.b16 %v1631, %v1623
    %v2056 = vpack.c.b16 %v1632, %v1624
    %v2057 = vpack.c.b16 %v1633, %v1625
    %v2058 = vpack.c.b16 %v1634, %v1626
    %v2059 = vpack.c.b16 %v1635, %v1627
    %v2060 = vpack.c.b16 %v1636, %v1628
    %v2061 = vpack.c.b16 %v1637, %v1629
    %v2062 = vpack.c.b16 %v1646, %v1638
    %v2063 = vpack.c.b16 %v1647, %v1639
    %v2064 = vpack.c.b16 %v1648, %v1640
    %v2065 = vpack.c.b16 %v1649, %v1641
    %v2066 = vpack.c.b16 %v1650, %v1642
    %v2067 = vpack.c.b16 %v1651, %v1643
    %v2068 = vpack.c.b16 %v1652, %v1644
    %v2069 = vpack.c.b16 %v1653, %v1645
    %v2070 = vpack.c.b16 %v1662, %v1654
    %v2071 = vpack.c.b16 %v1663, %v1655
    %v2072 = vpack.c.b16 %v1664, %v1656
    %v2073 = vpack.c.b16 %v1665, %v1657
    %v2074 = vpack.c.b16 %v1666, %v1658
    %v2075 = vpack.c.b16 %v1667, %v1659
    %v2076 = vpack.c.b16 %v1668, %v1660
    %v2077 = vpack.c.b16 %v1669, %v1661
    %v2078 = vpack.c.b16 %v1678, %v1670
    %v2079 = vpack.c.b16 %v1679, %v1671
    %v2080 = vpack.c.b16 %v1680, %v1672
    %v2081 = vpack.c.b16 %v1681, %v1673
    %v2082 = vpack.c.b16 %v1682, %v1674
    %v2083 = vpack.c.b16 %v1683, %v1675
    %v2084 = vpack.c.b16 %v1684, %v1676
    %v2085 = vpack.c.b16 %v1685, %v1677
    %v2086 = vpack.c.b16 %v1694, %v1686
    %v2087 = vpack.c.b16 %v1695, %v1687
    %v2088 = vpack.c.b16 %v1696, %v1688
    %v2089 = vpack.c.b16 %v1697, %v1689
    %v2090 = vpack.c.b16 %v1698, %v1690
    %v2091 = vpack.c.b16 %v1699, %v1691
    %v2092 = vpack.c.b16 %v1700, %v1692
    %v2093 = vpack.c.b16 %v1701, %v1693
    %v2094 = vpack.c.b16 %v1710, %v1702
    %v2095 = vpack.c.b16 %v1711, %v1703
    %v2096 = vpack.c.b16 %v1712, %v1704
    %v2097 = vpack.c.b16 %v1713, %v1705
    %v2098 = vpack.c.b16 %v1714, %v1706
    %v2099 = vpack.c.b16 %v1715, %v1707
    %v2100 = vpack.c.b16 %v1716, %v1708
    %v2101 = vpack.c.b16 %v1717, %v1709
    %v2102 = vpack.c.b16 %v1726, %v1718
    %v2103 = vpack.c.b16 %v1727, %v1719
    %v2104 = vpack.c.b16 %v1728, %v1720
    %v2105 = vpack.c.b16 %v1729, %v1721
    %v2106 = vpack.c.b16 %v1730, %v1722
    %v2107 = vpack.c.b16 %v1731, %v1723
    %v2108 = vpack.c.b16 %v1732, %v1724
    %v2109 = vpack.c.b16 %v1733, %v1725
    %v2110 = vpack.c.b16 %v1742, %v1734
    %v2111 = vpack.c.b16 %v1743, %v1735
    %v2112 = vpack.c.b16 %v1744, %v1736
    %v2113 = vpack.c.b16 %v1745, %v1737
    %v2114 = vpack.c.b16 %v1746, %v1738
    %v2115 = vpack.c.b16 %v1747, %v1739
    %v2116 = vpack.c.b16 %v1748, %v1740
    %v2117 = vpack.c.b16 %v1749, %v1741
    %v2118 = vpack.c.b16 %v1758, %v1750
    %v2119 = vpack.c.b16 %v1759, %v1751
    %v2120 = vpack.c.b16 %v1760, %v1752
    %v2121 = vpack.c.b16 %v1761, %v1753
    %v2122 = vpack.c.b16 %v1762, %v1754
    %v2123 = vpack.c.b16 %v1763, %v1755
    %v2124 = vpack.c.b16 %v1764, %v1756
    %v2125 = vpack.c.b16 %v1765, %v1757
    %v2126 = vpack.c.b16 %v1774, %v1766
    %v2127 = vpack.c.b16 %v1775, %v1767
    %v2128 = vpack.c.b16 %v1776, %v1768
    %v2129 = vpack.c.b16 %v1777, %v1769
    %v2130 = vpack.c.b16 %v1778, %v1770
    %v2131 = vpack.c.b16 %v1779, %v1771
    %v2132 = vpack.c.b16 %v1780, %v1772
    %v2133 = vpack.c.b16 %v1781, %v1773
    %v2134 = vpack.c.b16 %v1790, %v1782
    %v2135 = vpack.c.b16 %v1791, %v1783
    %v2136 = vpack.c.b16 %v1792, %v1784
    %v2137 = vpack.c.b16 %v1793, %v1785
    %v2138 = vpack.c.b16 %v1794, %v1786
    %v2139 = vpack.c.b16 %v1795, %v1787
    %v2140 = vpack.c.b16 %v1796, %v1788
    %v2141 = vpack.c.b16 %v1797, %v1789
    %v2142 = vpack.c.b16 %v1806, %v1798
    %v2143 = vpack.c.b16 %v1807, %v1799
    %v2144 = vpack.c.b16 %v1808, %v1800
    %v2145 = vpack.c.b16 %v1809, %v1801
    %v2146 = vpack.c.b16 %v1810, %v1802
    %v2147 = vpack.c.b16 %v1811, %v1803
    %v2148 = vpack.c.b16 %v1812, %v1804
    %v2149 = vpack.c.b16 %v1813, %v1805
    %v2150 = vpack.c.b16 %v1822, %v1814
    %v2151 = vpack.c.b16 %v1823, %v1815
    %v2152 = vpack.c.b16 %v1824, %v1816
    %v2153 = vpack.c.b16 %v1825, %v1817
    %v2154 = vpack.c.b16 %v1826, %v1818
    %v2155 = vpack.c.b16 %v1827, %v1819
    %v2156 = vpack.c.b16 %v1828, %v1820
    %v2157 = vpack.c.b16 %v1829, %v1821
    %v2158 = vpack.c.b16 %v1838, %v1830
    %v2159 = vpack.c.b16 %v1839, %v1831
    %v2160 = vpack.c.b16 %v1840, %v1832
    %v2161 = vpack.c.b16 %v1841, %v1833
    %v2162 = vpack.c.b16 %v1842, %v1834
    %v2163 = vpack.c.b16 %v1843, %v1835
    %v2164 = vpack.c.b16 %v1844, %v1836
    %v2165 = vpack.c.b16 %v1845, %v1837
    %v2166 = vpack.c.b16 %v1854, %v1846
    %v2167 = vpack.c.b16 %v1855, %v1847
    %v2168 = vpack.c.b16 %v1856, %v1848
    %v2169 = vpack.c.b16 %v1857, %v1849
    %v2170 = vpack.c.b16 %v1858, %v1850
    %v2171 = vpack.c.b16 %v1859, %v1851
    %v2172 = vpack.c.b16 %v1860, %v1852
    %v2173 = vpack.c.b16 %v1861, %v1853
    %v2174 = vpack.c.b16 %v1870, %v1862
    %v2175 = vpack.c.b16 %v1871, %v1863
    %v2176 = vpack.c.b16 %v1872, %v1864
    %v2177 = vpack.c.b16 %v1873, %v1865
    %v2178 = vpack.c.b16 %v1874, %v1866
    %v2179 = vpack.c.b16 %v1875, %v1867
    %v2180 = vpack.c.b16 %v1876, %v1868
    %v2181 = vpack.c.b16 %v1877, %v1869
    %v2182 = vpack.c.b16 %v1886, %v1878
    %v2183 = vpack.c.b16 %v1887, %v1879
    %v2184 = vpack.c.b16 %v1888, %v1880
    %v2185 = vpack.c.b16 %v1889, %v1881
    %v2186 = vpack.c.b16 %v1890, %v1882
    %v2187 = vpack.c.b16 %v1891, %v1883
    %v2188 = vpack.c.b16 %v1892, %v1884
    %v2189 = vpack.c.b16 %v1893, %v1885
    %v2190 = vpack.c.b16 %v1902, %v1894
    %v2191 = vpack.c.b16 %v1903, %v1895
    %v2192 = vpack.c.b16 %v1904, %v1896
    %v2193 = vpack.c.b16 %v1905, %v1897
    %v2194 = vpack.c.b16 %v1906, %v1898
    %v2195 = vpack.c.b16 %v1907, %v1899
    %v2196 = vpack.c.b16 %v1908, %v1900
    %v2197 = vpack.c.b16 %v1909, %v1901
    %v2198 = vpack.c.b16 %v1918, %v1910
    %v2199 = vpack.c.b16 %v1919, %v1911
    %v2200 = vpack.c.b16 %v1920, %v1912
    %v2201 = vpack.c.b16 %v1921, %v1913
    %v2202 = vpack.c.b16 %v1922, %v1914
    %v2203 = vpack.c.b16 %v1923, %v1915
    %v2204 = vpack.c.b16 %v1924, %v1916
    %v2205 = vpack.c.b16 %v1925, %v1917
    %v2206 = vpack.c.b16 %v1934, %v1926
    %v2207 = vpack.c.b16 %v1935, %v1927
    %v2208 = vpack.c.b16 %v1936, %v1928
    %v2209 = vpack.c.b16 %v1937, %v1929
    %v2210 = vpack.c.b16 %v1938, %v1930
    %v2211 = vpack.c.b16 %v1939, %v1931
    %v2212 = vpack.c.b16 %v1940, %v1932
    %v2213 = vpack.c.b16 %v1941, %v1933
    %v2214 = vpack.c.b16 %v1950, %v1942
    %v2215 = vpack.c.b16 %v1951, %v1943
    %v2216 = vpack.c.b16 %v1952, %v1944
    %v2217 = vpack.c.b16 %v1953, %v1945
    %v2218 = vpack.c.b16 %v1954, %v1946
    %v2219 = vpack.c.b16 %v1955, %v1947
    %v2220 = vpack.c.b16 %v1956, %v1948
    %v2221 = vpack.c.b16 %v1957, %v1949
    %v2222 = vpack.c.b16 %v1966, %v1958
    %v2223 = vpack.c.b16 %v1967, %v1959
    %v2224 = vpack.c.b16 %v1968, %v1960
    %v2225 = vpack.c.b16 %v1969, %v1961
    %v2226 = vpack.c.b16 %v1970, %v1962
    %v2227 = vpack.c.b16 %v1971, %v1963
    %v2228 = vpack.c.b16 %v1972, %v1964
    %v2229 = vpack.c.b16 %v1973, %v1965
    %2486 = vmatprep.subr.bf16.mxu0 %v2031
    %2487 = vmatpush1.bf16.msra.mxu0 %v2030
    %2488 = vmatprep.subr.bf16.mxu0 %v2023
    %2489 = vmatpush1.bf16.msra.mxu0 %v2022
    %2490 = vmatprep.subr.bf16.mxu0 %v2015
    %2491 = vmatpush1.bf16.msra.mxu0 %v2014
    %2492 = vmatprep.subr.bf16.mxu0 %v2007
    %2493 = vmatpush1.bf16.msra.mxu0 %v2006
    %2494 = vmatprep.subr.bf16.mxu0 %v1999
    %2495 = vmatpush1.bf16.msra.mxu0 %v1998
    %2496 = vmatprep.subr.bf16.mxu0 %v1991
    %2497 = vmatpush1.bf16.msra.mxu0 %v1990
    %2498 = vmatprep.subr.bf16.mxu0 %v1983
    %2499 = vmatpush1.bf16.msra.mxu0 %v1982
    %2500 = vmatprep.subr.bf16.mxu0 %v1975
    %2501 = vmatpush1.bf16.msra.mxu0 %v1974
    %2502 = vmatprep.subr.bf16.mxu0 %v2095
    %2503 = vmatpush2.bf16.msra.mxu0 %v2094
    %2504 = vmatprep.subr.bf16.mxu0 %v2087
    %2505 = vmatpush2.bf16.msra.mxu0 %v2086
    %2506 = vmatprep.subr.bf16.mxu0 %v2079
    %2507 = vmatpush2.bf16.msra.mxu0 %v2078
    %2508 = vmatprep.subr.bf16.mxu0 %v2071
    %2509 = vmatpush2.bf16.msra.mxu0 %v2070
    %2510 = vmatprep.subr.bf16.mxu0 %v2063
    %2511 = vmatpush2.bf16.msra.mxu0 %v2062
    %2512 = vmatprep.subr.bf16.mxu0 %v2055
    %2513 = vmatpush2.bf16.msra.mxu0 %v2054
    %2514 = vmatprep.subr.bf16.mxu0 %v2047
    %2515 = vmatpush2.bf16.msra.mxu0 %v2046
    %2516 = vmatprep.subr.bf16.mxu0 %v2039
    %2517 = vmatpush2.bf16.msra.mxu0 %v2038
    %2518 = vmatprep.mubr.bf16.mxu0 %v905
    %2519 = vmatmul.mubr.bf16.gmra.mxu0 %v904
    %v2520 = vpop.f32.mrf.mxu0
    %v2521 = vadd.f32 %v1169, %v2520
    %v2522 = vpop.f32.mrf.mxu0
    %v2523 = vadd.f32 %v1173, %v2522
    %v2524 = vpop.f32.mrf.mxu0
    %v2525 = vpop.f32.mrf.mxu0
    %2526 = vdwg.mxu0
    %2527 = vmatprep.subr.bf16.mxu0 %v2159
    %2528 = vmatpush1.bf16.msra.mxu0 %v2158
    %2529 = vmatprep.subr.bf16.mxu0 %v2151
    %2530 = vmatpush1.bf16.msra.mxu0 %v2150
    %2531 = vmatprep.subr.bf16.mxu0 %v2143
    %2532 = vmatpush1.bf16.msra.mxu0 %v2142
    %2533 = vmatprep.subr.bf16.mxu0 %v2135
    %2534 = vmatpush1.bf16.msra.mxu0 %v2134
    %2535 = vmatprep.subr.bf16.mxu0 %v2127
    %2536 = vmatpush1.bf16.msra.mxu0 %v2126
    %2537 = vmatprep.subr.bf16.mxu0 %v2119
    %2538 = vmatpush1.bf16.msra.mxu0 %v2118
    %2539 = vmatprep.subr.bf16.mxu0 %v2111
    %2540 = vmatpush1.bf16.msra.mxu0 %v2110
    %2541 = vmatprep.subr.bf16.mxu0 %v2103
    %2542 = vmatpush1.bf16.msra.mxu0 %v2102
    %2543 = vmatprep.subr.bf16.mxu0 %v2223
    %2544 = vmatpush2.bf16.msra.mxu0 %v2222
    %2545 = vmatprep.subr.bf16.mxu0 %v2215
    %2546 = vmatpush2.bf16.msra.mxu0 %v2214
    %2547 = vmatprep.subr.bf16.mxu0 %v2207
    %2548 = vmatpush2.bf16.msra.mxu0 %v2206
    %2549 = vmatprep.subr.bf16.mxu0 %v2199
    %2550 = vmatpush2.bf16.msra.mxu0 %v2198
    %2551 = vmatprep.subr.bf16.mxu0 %v2191
    %2552 = vmatpush2.bf16.msra.mxu0 %v2190
    %2553 = vmatprep.subr.bf16.mxu0 %v2183
    %2554 = vmatpush2.bf16.msra.mxu0 %v2182
    %2555 = vmatprep.subr.bf16.mxu0 %v2175
    %2556 = vmatpush2.bf16.msra.mxu0 %v2174
    %2557 = vmatprep.subr.bf16.mxu0 %v2167
    %2558 = vmatpush2.bf16.msra.mxu0 %v2166
    %2559 = vmatprep.mubr.bf16.mxu0 %v907
    %2560 = vmatmul.mubr.bf16.gmra.mxu0 %v906
    %v2561 = vpop.f32.mrf.mxu0
    %v2562 = vadd.f32 %v2521, %v2561
    %v2563 = vpop.f32.mrf.mxu0
    %v2564 = vadd.f32 %v2523, %v2563
    %v2565 = vpop.f32.mrf.mxu0
    %v2566 = vpop.f32.mrf.mxu0
    %2567 = vdwg.mxu0
    %2568 = vmatprep.subr.bf16.mxu0 %v2033
    %2569 = vmatpush1.bf16.msra.mxu0 %v2032
    %2570 = vmatprep.subr.bf16.mxu0 %v2025
    %2571 = vmatpush1.bf16.msra.mxu0 %v2024
    %2572 = vmatprep.subr.bf16.mxu0 %v2017
    %2573 = vmatpush1.bf16.msra.mxu0 %v2016
    %2574 = vmatprep.subr.bf16.mxu0 %v2009
    %2575 = vmatpush1.bf16.msra.mxu0 %v2008
    %2576 = vmatprep.subr.bf16.mxu0 %v2001
    %2577 = vmatpush1.bf16.msra.mxu0 %v2000
    %2578 = vmatprep.subr.bf16.mxu0 %v1993
    %2579 = vmatpush1.bf16.msra.mxu0 %v1992
    %2580 = vmatprep.subr.bf16.mxu0 %v1985
    %2581 = vmatpush1.bf16.msra.mxu0 %v1984
    %2582 = vmatprep.subr.bf16.mxu0 %v1977
    %2583 = vmatpush1.bf16.msra.mxu0 %v1976
    %2584 = vmatprep.subr.bf16.mxu0 %v2097
    %2585 = vmatpush2.bf16.msra.mxu0 %v2096
    %2586 = vmatprep.subr.bf16.mxu0 %v2089
    %2587 = vmatpush2.bf16.msra.mxu0 %v2088
    %2588 = vmatprep.subr.bf16.mxu0 %v2081
    %2589 = vmatpush2.bf16.msra.mxu0 %v2080
    %2590 = vmatprep.subr.bf16.mxu0 %v2073
    %2591 = vmatpush2.bf16.msra.mxu0 %v2072
    %2592 = vmatprep.subr.bf16.mxu0 %v2065
    %2593 = vmatpush2.bf16.msra.mxu0 %v2064
    %2594 = vmatprep.subr.bf16.mxu0 %v2057
    %2595 = vmatpush2.bf16.msra.mxu0 %v2056
    %2596 = vmatprep.subr.bf16.mxu0 %v2049
    %2597 = vmatpush2.bf16.msra.mxu0 %v2048
    %2598 = vmatprep.subr.bf16.mxu0 %v2041
    %2599 = vmatpush2.bf16.msra.mxu0 %v2040
    %2600 = vmatprep.mubr.bf16.mxu0 %v905
    %2601 = vmatmul.mubr.bf16.gmra.mxu0 %v904
    %v2602 = vpop.f32.mrf.mxu0
    %v2603 = vadd.f32 %v1177, %v2602
    %v2604 = vpop.f32.mrf.mxu0
    %v2605 = vadd.f32 %v1181, %v2604
    %v2606 = vpop.f32.mrf.mxu0
    %v2607 = vpop.f32.mrf.mxu0
    %2608 = vdwg.mxu0
    %2609 = vmatprep.subr.bf16.mxu0 %v2161
    %2610 = vmatpush1.bf16.msra.mxu0 %v2160
    %2611 = vmatprep.subr.bf16.mxu0 %v2153
    %2612 = vmatpush1.bf16.msra.mxu0 %v2152
    %2613 = vmatprep.subr.bf16.mxu0 %v2145
    %2614 = vmatpush1.bf16.msra.mxu0 %v2144
    %2615 = vmatprep.subr.bf16.mxu0 %v2137
    %2616 = vmatpush1.bf16.msra.mxu0 %v2136
    %2617 = vmatprep.subr.bf16.mxu0 %v2129
    %2618 = vmatpush1.bf16.msra.mxu0 %v2128
    %2619 = vmatprep.subr.bf16.mxu0 %v2121
    %2620 = vmatpush1.bf16.msra.mxu0 %v2120
    %2621 = vmatprep.subr.bf16.mxu0 %v2113
    %2622 = vmatpush1.bf16.msra.mxu0 %v2112
    %2623 = vmatprep.subr.bf16.mxu0 %v2105
    %2624 = vmatpush1.bf16.msra.mxu0 %v2104
    %2625 = vmatprep.subr.bf16.mxu0 %v2225
    %2626 = vmatpush2.bf16.msra.mxu0 %v2224
    %2627 = vmatprep.subr.bf16.mxu0 %v2217
    %2628 = vmatpush2.bf16.msra.mxu0 %v2216
    %2629 = vmatprep.subr.bf16.mxu0 %v2209
    %2630 = vmatpush2.bf16.msra.mxu0 %v2208
    %2631 = vmatprep.subr.bf16.mxu0 %v2201
    %2632 = vmatpush2.bf16.msra.mxu0 %v2200
    %2633 = vmatprep.subr.bf16.mxu0 %v2193
    %2634 = vmatpush2.bf16.msra.mxu0 %v2192
    %2635 = vmatprep.subr.bf16.mxu0 %v2185
    %2636 = vmatpush2.bf16.msra.mxu0 %v2184
    %2637 = vmatprep.subr.bf16.mxu0 %v2177
    %2638 = vmatpush2.bf16.msra.mxu0 %v2176
    %2639 = vmatprep.subr.bf16.mxu0 %v2169
    %2640 = vmatpush2.bf16.msra.mxu0 %v2168
    %2641 = vmatprep.mubr.bf16.mxu0 %v907
    %2642 = vmatmul.mubr.bf16.gmra.mxu0 %v906
    %v2643 = vpop.f32.mrf.mxu0
    %v2644 = vadd.f32 %v2603, %v2643
    %v2645 = vpop.f32.mrf.mxu0
    %v2646 = vadd.f32 %v2605, %v2645
    %v2647 = vpop.f32.mrf.mxu0
    %v2648 = vpop.f32.mrf.mxu0
    %2649 = vdwg.mxu0
    %2650 = vmatprep.subr.bf16.mxu0 %v2035
    %2651 = vmatpush1.bf16.msra.mxu0 %v2034
    %2652 = vmatprep.subr.bf16.mxu0 %v2027
    %2653 = vmatpush1.bf16.msra.mxu0 %v2026
    %2654 = vmatprep.subr.bf16.mxu0 %v2019
    %2655 = vmatpush1.bf16.msra.mxu0 %v2018
    %2656 = vmatprep.subr.bf16.mxu0 %v2011
    %2657 = vmatpush1.bf16.msra.mxu0 %v2010
    %2658 = vmatprep.subr.bf16.mxu0 %v2003
    %2659 = vmatpush1.bf16.msra.mxu0 %v2002
    %2660 = vmatprep.subr.bf16.mxu0 %v1995
    %2661 = vmatpush1.bf16.msra.mxu0 %v1994
    %2662 = vmatprep.subr.bf16.mxu0 %v1987
    %2663 = vmatpush1.bf16.msra.mxu0 %v1986
    %2664 = vmatprep.subr.bf16.mxu0 %v1979
    %2665 = vmatpush1.bf16.msra.mxu0 %v1978
    %2666 = vmatprep.subr.bf16.mxu0 %v2099
    %2667 = vmatpush2.bf16.msra.mxu0 %v2098
    %2668 = vmatprep.subr.bf16.mxu0 %v2091
    %2669 = vmatpush2.bf16.msra.mxu0 %v2090
    %2670 = vmatprep.subr.bf16.mxu0 %v2083
    %2671 = vmatpush2.bf16.msra.mxu0 %v2082
    %2672 = vmatprep.subr.bf16.mxu0 %v2075
    %2673 = vmatpush2.bf16.msra.mxu0 %v2074
    %2674 = vmatprep.subr.bf16.mxu0 %v2067
    %2675 = vmatpush2.bf16.msra.mxu0 %v2066
    %2676 = vmatprep.subr.bf16.mxu0 %v2059
    %2677 = vmatpush2.bf16.msra.mxu0 %v2058
    %2678 = vmatprep.subr.bf16.mxu0 %v2051
    %2679 = vmatpush2.bf16.msra.mxu0 %v2050
    %2680 = vmatprep.subr.bf16.mxu0 %v2043
    %2681 = vmatpush2.bf16.msra.mxu0 %v2042
    %2682 = vmatprep.mubr.bf16.mxu0 %v905
    %2683 = vmatmul.mubr.bf16.gmra.mxu0 %v904
    %v2684 = vpop.f32.mrf.mxu0
    %v2685 = vadd.f32 %v1185, %v2684
    %v2686 = vpop.f32.mrf.mxu0
    %v2687 = vadd.f32 %v1189, %v2686
    %v2688 = vpop.f32.mrf.mxu0
    %v2689 = vpop.f32.mrf.mxu0
    %2690 = vdwg.mxu0
    %2691 = vmatprep.subr.bf16.mxu0 %v2163
    %2692 = vmatpush1.bf16.msra.mxu0 %v2162
    %2693 = vmatprep.subr.bf16.mxu0 %v2155
    %2694 = vmatpush1.bf16.msra.mxu0 %v2154
    %2695 = vmatprep.subr.bf16.mxu0 %v2147
    %2696 = vmatpush1.bf16.msra.mxu0 %v2146
    %2697 = vmatprep.subr.bf16.mxu0 %v2139
    %2698 = vmatpush1.bf16.msra.mxu0 %v2138
    %2699 = vmatprep.subr.bf16.mxu0 %v2131
    %2700 = vmatpush1.bf16.msra.mxu0 %v2130
    %2701 = vmatprep.subr.bf16.mxu0 %v2123
    %2702 = vmatpush1.bf16.msra.mxu0 %v2122
    %2703 = vmatprep.subr.bf16.mxu0 %v2115
    %2704 = vmatpush1.bf16.msra.mxu0 %v2114
    %2705 = vmatprep.subr.bf16.mxu0 %v2107
    %2706 = vmatpush1.bf16.msra.mxu0 %v2106
    %2707 = vmatprep.subr.bf16.mxu0 %v2227
    %2708 = vmatpush2.bf16.msra.mxu0 %v2226
    %2709 = vmatprep.subr.bf16.mxu0 %v2219
    %2710 = vmatpush2.bf16.msra.mxu0 %v2218
    %2711 = vmatprep.subr.bf16.mxu0 %v2211
    %2712 = vmatpush2.bf16.msra.mxu0 %v2210
    %2713 = vmatprep.subr.bf16.mxu0 %v2203
    %2714 = vmatpush2.bf16.msra.mxu0 %v2202
    %2715 = vmatprep.subr.bf16.mxu0 %v2195
    %2716 = vmatpush2.bf16.msra.mxu0 %v2194
    %2717 = vmatprep.subr.bf16.mxu0 %v2187
    %2718 = vmatpush2.bf16.msra.mxu0 %v2186
    %2719 = vmatprep.subr.bf16.mxu0 %v2179
    %2720 = vmatpush2.bf16.msra.mxu0 %v2178
    %2721 = vmatprep.subr.bf16.mxu0 %v2171
    %2722 = vmatpush2.bf16.msra.mxu0 %v2170
    %2723 = vmatprep.mubr.bf16.mxu0 %v907
    %2724 = vmatmul.mubr.bf16.gmra.mxu0 %v906
    %v2725 = vpop.f32.mrf.mxu0
    %v2726 = vadd.f32 %v2685, %v2725
    %v2727 = vpop.f32.mrf.mxu0
    %v2728 = vadd.f32 %v2687, %v2727
    %v2729 = vpop.f32.mrf.mxu0
    %v2730 = vpop.f32.mrf.mxu0
    %2731 = vdwg.mxu0
    %2732 = vmatprep.subr.bf16.mxu0 %v2037
    %2733 = vmatpush1.bf16.msra.mxu0 %v2036
    %2734 = vmatprep.subr.bf16.mxu0 %v2029
    %2735 = vmatpush1.bf16.msra.mxu0 %v2028
    %2736 = vmatprep.subr.bf16.mxu0 %v2021
    %2737 = vmatpush1.bf16.msra.mxu0 %v2020
    %2738 = vmatprep.subr.bf16.mxu0 %v2013
    %2739 = vmatpush1.bf16.msra.mxu0 %v2012
    %2740 = vmatprep.subr.bf16.mxu0 %v2005
    %2741 = vmatpush1.bf16.msra.mxu0 %v2004
    %2742 = vmatprep.subr.bf16.mxu0 %v1997
    %2743 = vmatpush1.bf16.msra.mxu0 %v1996
    %2744 = vmatprep.subr.bf16.mxu0 %v1989
    %2745 = vmatpush1.bf16.msra.mxu0 %v1988
    %2746 = vmatprep.subr.bf16.mxu0 %v1981
    %2747 = vmatpush1.bf16.msra.mxu0 %v1980
    %2748 = vmatprep.subr.bf16.mxu0 %v2101
    %2749 = vmatpush2.bf16.msra.mxu0 %v2100
    %2750 = vmatprep.subr.bf16.mxu0 %v2093
    %2751 = vmatpush2.bf16.msra.mxu0 %v2092
    %2752 = vmatprep.subr.bf16.mxu0 %v2085
    %2753 = vmatpush2.bf16.msra.mxu0 %v2084
    %2754 = vmatprep.subr.bf16.mxu0 %v2077
    %2755 = vmatpush2.bf16.msra.mxu0 %v2076
    %2756 = vmatprep.subr.bf16.mxu0 %v2069
    %2757 = vmatpush2.bf16.msra.mxu0 %v2068
    %2758 = vmatprep.subr.bf16.mxu0 %v2061
    %2759 = vmatpush2.bf16.msra.mxu0 %v2060
    %2760 = vmatprep.subr.bf16.mxu0 %v2053
    %2761 = vmatpush2.bf16.msra.mxu0 %v2052
    %2762 = vmatprep.subr.bf16.mxu0 %v2045
    %2763 = vmatpush2.bf16.msra.mxu0 %v2044
    %2764 = vmatprep.mubr.bf16.mxu0 %v905
    %2765 = vmatmul.mubr.bf16.gmra.mxu0 %v904
    %v2766 = vpop.f32.mrf.mxu0
    %v2767 = vadd.f32 %v1193, %v2766
    %v2768 = vpop.f32.mrf.mxu0
    %v2769 = vadd.f32 %v1197, %v2768
    %v2770 = vpop.f32.mrf.mxu0
    %v2771 = vpop.f32.mrf.mxu0
    %2772 = vdwg.mxu0
    %2773 = vmatprep.subr.bf16.mxu0 %v2165
    %2774 = vmatpush1.bf16.msra.mxu0 %v2164
    %2775 = vmatprep.subr.bf16.mxu0 %v2157
    %2776 = vmatpush1.bf16.msra.mxu0 %v2156
    %2777 = vmatprep.subr.bf16.mxu0 %v2149
    %2778 = vmatpush1.bf16.msra.mxu0 %v2148
    %2779 = vmatprep.subr.bf16.mxu0 %v2141
    %2780 = vmatpush1.bf16.msra.mxu0 %v2140
    %2781 = vmatprep.subr.bf16.mxu0 %v2133
    %2782 = vmatpush1.bf16.msra.mxu0 %v2132
    %2783 = vmatprep.subr.bf16.mxu0 %v2125
    %2784 = vmatpush1.bf16.msra.mxu0 %v2124
    %2785 = vmatprep.subr.bf16.mxu0 %v2117
    %2786 = vmatpush1.bf16.msra.mxu0 %v2116
    %2787 = vmatprep.subr.bf16.mxu0 %v2109
    %2788 = vmatpush1.bf16.msra.mxu0 %v2108
    %2789 = vmatprep.subr.bf16.mxu0 %v2229
    %2790 = vmatpush2.bf16.msra.mxu0 %v2228
    %2791 = vmatprep.subr.bf16.mxu0 %v2221
    %2792 = vmatpush2.bf16.msra.mxu0 %v2220
    %2793 = vmatprep.subr.bf16.mxu0 %v2213
    %2794 = vmatpush2.bf16.msra.mxu0 %v2212
    %2795 = vmatprep.subr.bf16.mxu0 %v2205
    %2796 = vmatpush2.bf16.msra.mxu0 %v2204
    %2797 = vmatprep.subr.bf16.mxu0 %v2197
    %2798 = vmatpush2.bf16.msra.mxu0 %v2196
    %2799 = vmatprep.subr.bf16.mxu0 %v2189
    %2800 = vmatpush2.bf16.msra.mxu0 %v2188
    %2801 = vmatprep.subr.bf16.mxu0 %v2181
    %2802 = vmatpush2.bf16.msra.mxu0 %v2180
    %2803 = vmatprep.subr.bf16.mxu0 %v2173
    %2804 = vmatpush2.bf16.msra.mxu0 %v2172
    %2805 = vmatprep.mubr.bf16.mxu0 %v907
    %2806 = vmatmul.mubr.bf16.gmra.mxu0 %v906
    %v2807 = vpop.f32.mrf.mxu0
    %v2808 = vadd.f32 %v2767, %v2807
    %v2809 = vpop.f32.mrf.mxu0
    %v2810 = vadd.f32 %v2769, %v2809
    %v2811 = vpop.f32.mrf.mxu0
    %v2812 = vpop.f32.mrf.mxu0
    %2813 = vdwg.mxu0
    %vm2814 = vcmp.ge.f32.partialorder %v2562, 0.0
    %vm2815 = vcmp.ge.f32.partialorder %v2564, 0.0
    %vm2816 = vcmp.ge.f32.partialorder %v2644, 0.0
    %vm2817 = vcmp.ge.f32.partialorder %v2646, 0.0
    %vm2818 = vcmp.ge.f32.partialorder %v2726, 0.0
    %vm2819 = vcmp.ge.f32.partialorder %v2728, 0.0
    %vm2820 = vcmp.ge.f32.partialorder %v2808, 0.0
    %vm2821 = vcmp.ge.f32.partialorder %v2810, 0.0
    %v2822 = vmul.f32 %v2562, 0.2
    %v2823 = vmul.f32 %v2564, 0.2
    %v2824 = vmul.f32 %v2644, 0.2
    %v2825 = vmul.f32 %v2646, 0.2
    %v2826 = vmul.f32 %v2726, 0.2
    %v2827 = vmul.f32 %v2728, 0.2
    %v2828 = vmul.f32 %v2808, 0.2
    %v2829 = vmul.f32 %v2810, 0.2
    %v2830 = vsel %vm2814, %v2562, %v2822
    %v2831 = vsel %vm2815, %v2564, %v2823
    %v2832 = vsel %vm2816, %v2644, %v2824
    %v2833 = vsel %vm2817, %v2646, %v2825
    %v2834 = vsel %vm2818, %v2726, %v2826
    %v2835 = vsel %vm2819, %v2728, %v2827
    %v2836 = vsel %vm2820, %v2808, %v2828
    %v2837 = vsel %vm2821, %v2810, %v2829
    %v2838 = vpack.c.bf16 %v2830, %v2830
    %v2839 = vpack.c.bf16 %v2831, %v2831
    %v2840 = vpack.c.bf16 %v2832, %v2832
    %v2841 = vpack.c.bf16 %v2833, %v2833
    %v2842 = vpack.c.bf16 %v2834, %v2834
    %v2843 = vpack.c.bf16 %v2835, %v2835
    %v2844 = vpack.c.bf16 %v2836, %v2836
    %v2845 = vpack.c.bf16 %v2837, %v2837
    %v2846 = vld [vmem:[#allocation13] sm:$0xf]
    %v2847 = vld [vmem:[#allocation13 + $0x4] sm:$0xf]
    %v2848 = vld [vmem:[#allocation13 + $0x8] sm:$0xf]
    %v2849 = vld [vmem:[#allocation13 + $0xc] sm:$0xf]
    %v2850 = vld [vmem:[#allocation13 + $0x10] sm:$0xf]
    %v2851 = vld [vmem:[#allocation13 + $0x14] sm:$0xf]
    %v2852 = vld [vmem:[#allocation13 + $0x18] sm:$0xf]
    %v2853 = vld [vmem:[#allocation13 + $0x1c] sm:$0xf]
    %v2854 = vld [vmem:[#allocation13 + $0x20] sm:$0xf]
    %v2855 = vld [vmem:[#allocation13 + $0x24] sm:$0xf]
    %v2856 = vld [vmem:[#allocation13 + $0x28] sm:$0xf]
    %v2857 = vld [vmem:[#allocation13 + $0x2c] sm:$0xf]
    %v2858 = vld [vmem:[#allocation13 + $0x30] sm:$0xf]
    %v2859 = vld [vmem:[#allocation13 + $0x34] sm:$0xf]
    %v2860 = vld [vmem:[#allocation13 + $0x38] sm:$0xf]
    %v2861 = vld [vmem:[#allocation13 + $0x3c] sm:$0xf]
    %v2862 = vld [vmem:[#allocation13 + $0x40] sm:$0xf]
    %v2863 = vld [vmem:[#allocation13 + $0x44] sm:$0xf]
    %v2864 = vld [vmem:[#allocation13 + $0x48] sm:$0xf]
    %v2865 = vld [vmem:[#allocation13 + $0x4c] sm:$0xf]
    %v2866 = vld [vmem:[#allocation13 + $0x50] sm:$0xf]
    %v2867 = vld [vmem:[#allocation13 + $0x54] sm:$0xf]
    %v2868 = vld [vmem:[#allocation13 + $0x58] sm:$0xf]
    %v2869 = vld [vmem:[#allocation13 + $0x5c] sm:$0xf]
    %v2870 = vld [vmem:[#allocation13 + $0x60] sm:$0xf]
    %v2871 = vld [vmem:[#allocation13 + $0x64] sm:$0xf]
    %v2872 = vld [vmem:[#allocation13 + $0x68] sm:$0xf]
    %v2873 = vld [vmem:[#allocation13 + $0x6c] sm:$0xf]
    %v2874 = vld [vmem:[#allocation13 + $0x70] sm:$0xf]
    %v2875 = vld [vmem:[#allocation13 + $0x74] sm:$0xf]
    %v2876 = vld [vmem:[#allocation13 + $0x78] sm:$0xf]
    %v2877 = vld [vmem:[#allocation13 + $0x7c] sm:$0xf]
    %v2878 = vld [vmem:[#allocation13 + $0x80] sm:$0xf]
    %v2879 = vld [vmem:[#allocation13 + $0x84] sm:$0xf]
    %v2880 = vld [vmem:[#allocation13 + $0x88] sm:$0xf]
    %v2881 = vld [vmem:[#allocation13 + $0x8c] sm:$0xf]
    %v2882 = vld [vmem:[#allocation13 + $0x90] sm:$0xf]
    %v2883 = vld [vmem:[#allocation13 + $0x94] sm:$0xf]
    %v2884 = vld [vmem:[#allocation13 + $0x98] sm:$0xf]
    %v2885 = vld [vmem:[#allocation13 + $0x9c] sm:$0xf]
    %v2886 = vld [vmem:[#allocation13 + $0xa0] sm:$0xf]
    %v2887 = vld [vmem:[#allocation13 + $0xa4] sm:$0xf]
    %v2888 = vld [vmem:[#allocation13 + $0xa8] sm:$0xf]
    %v2889 = vld [vmem:[#allocation13 + $0xac] sm:$0xf]
    %v2890 = vld [vmem:[#allocation13 + $0xb0] sm:$0xf]
    %v2891 = vld [vmem:[#allocation13 + $0xb4] sm:$0xf]
    %v2892 = vld [vmem:[#allocation13 + $0xb8] sm:$0xf]
    %v2893 = vld [vmem:[#allocation13 + $0xbc] sm:$0xf]
    %v2894 = vld [vmem:[#allocation13 + $0xc0] sm:$0xf]
    %v2895 = vld [vmem:[#allocation13 + $0xc4] sm:$0xf]
    %v2896 = vld [vmem:[#allocation13 + $0xc8] sm:$0xf]
    %v2897 = vld [vmem:[#allocation13 + $0xcc] sm:$0xf]
    %v2898 = vld [vmem:[#allocation13 + $0xd0] sm:$0xf]
    %v2899 = vld [vmem:[#allocation13 + $0xd4] sm:$0xf]
    %v2900 = vld [vmem:[#allocation13 + $0xd8] sm:$0xf]
    %v2901 = vld [vmem:[#allocation13 + $0xdc] sm:$0xf]
    %v2902 = vld [vmem:[#allocation13 + $0xe0] sm:$0xf]
    %v2903 = vld [vmem:[#allocation13 + $0xe4] sm:$0xf]
    %v2904 = vld [vmem:[#allocation13 + $0xe8] sm:$0xf]
    %v2905 = vld [vmem:[#allocation13 + $0xec] sm:$0xf]
    %v2906 = vld [vmem:[#allocation13 + $0xf0] sm:$0xf]
    %v2907 = vld [vmem:[#allocation13 + $0xf4] sm:$0xf]
    %v2908 = vld [vmem:[#allocation13 + $0xf8] sm:$0xf]
    %v2909 = vld [vmem:[#allocation13 + $0xfc] sm:$0xf]
    %v2910 = vld [vmem:[#allocation13 + $0x100] sm:$0xf]
    %v2911 = vld [vmem:[#allocation13 + $0x104] sm:$0xf]
    %v2912 = vld [vmem:[#allocation13 + $0x108] sm:$0xf]
    %v2913 = vld [vmem:[#allocation13 + $0x10c] sm:$0xf]
    %v2914 = vld [vmem:[#allocation13 + $0x110] sm:$0xf]
    %v2915 = vld [vmem:[#allocation13 + $0x114] sm:$0xf]
    %v2916 = vld [vmem:[#allocation13 + $0x118] sm:$0xf]
    %v2917 = vld [vmem:[#allocation13 + $0x11c] sm:$0xf]
    %v2918 = vld [vmem:[#allocation13 + $0x120] sm:$0xf]
    %v2919 = vld [vmem:[#allocation13 + $0x124] sm:$0xf]
    %v2920 = vld [vmem:[#allocation13 + $0x128] sm:$0xf]
    %v2921 = vld [vmem:[#allocation13 + $0x12c] sm:$0xf]
    %v2922 = vld [vmem:[#allocation13 + $0x130] sm:$0xf]
    %v2923 = vld [vmem:[#allocation13 + $0x134] sm:$0xf]
    %v2924 = vld [vmem:[#allocation13 + $0x138] sm:$0xf]
    %v2925 = vld [vmem:[#allocation13 + $0x13c] sm:$0xf]
    %v2926 = vld [vmem:[#allocation13 + $0x140] sm:$0xf]
    %v2927 = vld [vmem:[#allocation13 + $0x144] sm:$0xf]
    %v2928 = vld [vmem:[#allocation13 + $0x148] sm:$0xf]
    %v2929 = vld [vmem:[#allocation13 + $0x14c] sm:$0xf]
    %v2930 = vld [vmem:[#allocation13 + $0x150] sm:$0xf]
    %v2931 = vld [vmem:[#allocation13 + $0x154] sm:$0xf]
    %v2932 = vld [vmem:[#allocation13 + $0x158] sm:$0xf]
    %v2933 = vld [vmem:[#allocation13 + $0x15c] sm:$0xf]
    %v2934 = vld [vmem:[#allocation13 + $0x160] sm:$0xf]
    %v2935 = vld [vmem:[#allocation13 + $0x164] sm:$0xf]
    %v2936 = vld [vmem:[#allocation13 + $0x168] sm:$0xf]
    %v2937 = vld [vmem:[#allocation13 + $0x16c] sm:$0xf]
    %v2938 = vld [vmem:[#allocation13 + $0x170] sm:$0xf]
    %v2939 = vld [vmem:[#allocation13 + $0x174] sm:$0xf]
    %v2940 = vld [vmem:[#allocation13 + $0x178] sm:$0xf]
    %v2941 = vld [vmem:[#allocation13 + $0x17c] sm:$0xf]
    %v2942 = vld [vmem:[#allocation13 + $0x180] sm:$0xf]
    %v2943 = vld [vmem:[#allocation13 + $0x184] sm:$0xf]
    %v2944 = vld [vmem:[#allocation13 + $0x188] sm:$0xf]
    %v2945 = vld [vmem:[#allocation13 + $0x18c] sm:$0xf]
    %v2946 = vld [vmem:[#allocation13 + $0x190] sm:$0xf]
    %v2947 = vld [vmem:[#allocation13 + $0x194] sm:$0xf]
    %v2948 = vld [vmem:[#allocation13 + $0x198] sm:$0xf]
    %v2949 = vld [vmem:[#allocation13 + $0x19c] sm:$0xf]
    %v2950 = vld [vmem:[#allocation13 + $0x1a0] sm:$0xf]
    %v2951 = vld [vmem:[#allocation13 + $0x1a4] sm:$0xf]
    %v2952 = vld [vmem:[#allocation13 + $0x1a8] sm:$0xf]
    %v2953 = vld [vmem:[#allocation13 + $0x1ac] sm:$0xf]
    %v2954 = vld [vmem:[#allocation13 + $0x1b0] sm:$0xf]
    %v2955 = vld [vmem:[#allocation13 + $0x1b4] sm:$0xf]
    %v2956 = vld [vmem:[#allocation13 + $0x1b8] sm:$0xf]
    %v2957 = vld [vmem:[#allocation13 + $0x1bc] sm:$0xf]
    %v2958 = vld [vmem:[#allocation13 + $0x1c0] sm:$0xf]
    %v2959 = vld [vmem:[#allocation13 + $0x1c4] sm:$0xf]
    %v2960 = vld [vmem:[#allocation13 + $0x1c8] sm:$0xf]
    %v2961 = vld [vmem:[#allocation13 + $0x1cc] sm:$0xf]
    %v2962 = vld [vmem:[#allocation13 + $0x1d0] sm:$0xf]
    %v2963 = vld [vmem:[#allocation13 + $0x1d4] sm:$0xf]
    %v2964 = vld [vmem:[#allocation13 + $0x1d8] sm:$0xf]
    %v2965 = vld [vmem:[#allocation13 + $0x1dc] sm:$0xf]
    %v2966 = vld [vmem:[#allocation13 + $0x1e0] sm:$0xf]
    %v2967 = vld [vmem:[#allocation13 + $0x1e4] sm:$0xf]
    %v2968 = vld [vmem:[#allocation13 + $0x1e8] sm:$0xf]
    %v2969 = vld [vmem:[#allocation13 + $0x1ec] sm:$0xf]
    %v2970 = vld [vmem:[#allocation13 + $0x1f0] sm:$0xf]
    %v2971 = vld [vmem:[#allocation13 + $0x1f4] sm:$0xf]
    %v2972 = vld [vmem:[#allocation13 + $0x1f8] sm:$0xf]
    %v2973 = vld [vmem:[#allocation13 + $0x1fc] sm:$0xf]
    %v2974 = vld [vmem:[%s10] sm:$0x1]
    %v2976 = vlaneseq
    %v2977 = vshrl.u32 %v2976, 7
    %v2978 = vsub.s32 0, %v2977
    %v2979 = vrot.slane %v2974, %v2978
    %v3109 = vunpack.c.l.b16 %v2846
    %v3110 = vunpack.c.l.b16 %v2847
    %v3111 = vunpack.c.l.b16 %v2848
    %v3112 = vunpack.c.l.b16 %v2849
    %v3113 = vunpack.c.l.b16 %v2850
    %v3114 = vunpack.c.l.b16 %v2851
    %v3115 = vunpack.c.l.b16 %v2852
    %v3116 = vunpack.c.l.b16 %v2853
    %v3117 = vunpack.c.l.b16 %v2854
    %v3118 = vunpack.c.l.b16 %v2855
    %v3119 = vunpack.c.l.b16 %v2856
    %v3120 = vunpack.c.l.b16 %v2857
    %v3121 = vunpack.c.l.b16 %v2858
    %v3122 = vunpack.c.l.b16 %v2859
    %v3123 = vunpack.c.l.b16 %v2860
    %v3124 = vunpack.c.l.b16 %v2861
    %v3125 = vunpack.c.l.b16 %v2862
    %v3126 = vunpack.c.l.b16 %v2863
    %v3127 = vunpack.c.l.b16 %v2864
    %v3128 = vunpack.c.l.b16 %v2865
    %v3129 = vunpack.c.l.b16 %v2866
    %v3130 = vunpack.c.l.b16 %v2867
    %v3131 = vunpack.c.l.b16 %v2868
    %v3132 = vunpack.c.l.b16 %v2869
    %v3133 = vunpack.c.l.b16 %v2870
    %v3134 = vunpack.c.l.b16 %v2871
    %v3135 = vunpack.c.l.b16 %v2872
    %v3136 = vunpack.c.l.b16 %v2873
    %v3137 = vunpack.c.l.b16 %v2874
    %v3138 = vunpack.c.l.b16 %v2875
    %v3139 = vunpack.c.l.b16 %v2876
    %v3140 = vunpack.c.l.b16 %v2877
    %v3141 = vunpack.c.l.b16 %v2878
    %v3142 = vunpack.c.l.b16 %v2879
    %v3143 = vunpack.c.l.b16 %v2880
    %v3144 = vunpack.c.l.b16 %v2881
    %v3145 = vunpack.c.l.b16 %v2882
    %v3146 = vunpack.c.l.b16 %v2883
    %v3147 = vunpack.c.l.b16 %v2884
    %v3148 = vunpack.c.l.b16 %v2885
    %v3149 = vunpack.c.l.b16 %v2886
    %v3150 = vunpack.c.l.b16 %v2887
    %v3151 = vunpack.c.l.b16 %v2888
    %v3152 = vunpack.c.l.b16 %v2889
    %v3153 = vunpack.c.l.b16 %v2890
    %v3154 = vunpack.c.l.b16 %v2891
    %v3155 = vunpack.c.l.b16 %v2892
    %v3156 = vunpack.c.l.b16 %v2893
    %v3157 = vunpack.c.l.b16 %v2894
    %v3158 = vunpack.c.l.b16 %v2895
    %v3159 = vunpack.c.l.b16 %v2896
    %v3160 = vunpack.c.l.b16 %v2897
    %v3161 = vunpack.c.l.b16 %v2898
    %v3162 = vunpack.c.l.b16 %v2899
    %v3163 = vunpack.c.l.b16 %v2900
    %v3164 = vunpack.c.l.b16 %v2901
    %v3165 = vunpack.c.l.b16 %v2902
    %v3166 = vunpack.c.l.b16 %v2903
    %v3167 = vunpack.c.l.b16 %v2904
    %v3168 = vunpack.c.l.b16 %v2905
    %v3169 = vunpack.c.l.b16 %v2906
    %v3170 = vunpack.c.l.b16 %v2907
    %v3171 = vunpack.c.l.b16 %v2908
    %v3172 = vunpack.c.l.b16 %v2909
    %v3173 = vunpack.c.l.b16 %v2910
    %v3174 = vunpack.c.l.b16 %v2911
    %v3175 = vunpack.c.l.b16 %v2912
    %v3176 = vunpack.c.l.b16 %v2913
    %v3177 = vunpack.c.l.b16 %v2914
    %v3178 = vunpack.c.l.b16 %v2915
    %v3179 = vunpack.c.l.b16 %v2916
    %v3180 = vunpack.c.l.b16 %v2917
    %v3181 = vunpack.c.l.b16 %v2918
    %v3182 = vunpack.c.l.b16 %v2919
    %v3183 = vunpack.c.l.b16 %v2920
    %v3184 = vunpack.c.l.b16 %v2921
    %v3185 = vunpack.c.l.b16 %v2922
    %v3186 = vunpack.c.l.b16 %v2923
    %v3187 = vunpack.c.l.b16 %v2924
    %v3188 = vunpack.c.l.b16 %v2925
    %v3189 = vunpack.c.l.b16 %v2926
    %v3190 = vunpack.c.l.b16 %v2927
    %v3191 = vunpack.c.l.b16 %v2928
    %v3192 = vunpack.c.l.b16 %v2929
    %v3193 = vunpack.c.l.b16 %v2930
    %v3194 = vunpack.c.l.b16 %v2931
    %v3195 = vunpack.c.l.b16 %v2932
    %v3196 = vunpack.c.l.b16 %v2933
    %v3197 = vunpack.c.l.b16 %v2934
    %v3198 = vunpack.c.l.b16 %v2935
    %v3199 = vunpack.c.l.b16 %v2936
    %v3200 = vunpack.c.l.b16 %v2937
    %v3201 = vunpack.c.l.b16 %v2938
    %v3202 = vunpack.c.l.b16 %v2939
    %v3203 = vunpack.c.l.b16 %v2940
    %v3204 = vunpack.c.l.b16 %v2941
    %v3205 = vunpack.c.l.b16 %v2942
    %v3206 = vunpack.c.l.b16 %v2943
    %v3207 = vunpack.c.l.b16 %v2944
    %v3208 = vunpack.c.l.b16 %v2945
    %v3209 = vunpack.c.l.b16 %v2946
    %v3210 = vunpack.c.l.b16 %v2947
    %v3211 = vunpack.c.l.b16 %v2948
    %v3212 = vunpack.c.l.b16 %v2949
    %v3213 = vunpack.c.l.b16 %v2950
    %v3214 = vunpack.c.l.b16 %v2951
    %v3215 = vunpack.c.l.b16 %v2952
    %v3216 = vunpack.c.l.b16 %v2953
    %v3217 = vunpack.c.l.b16 %v2954
    %v3218 = vunpack.c.l.b16 %v2955
    %v3219 = vunpack.c.l.b16 %v2956
    %v3220 = vunpack.c.l.b16 %v2957
    %v3221 = vunpack.c.l.b16 %v2958
    %v3222 = vunpack.c.l.b16 %v2959
    %v3223 = vunpack.c.l.b16 %v2960
    %v3224 = vunpack.c.l.b16 %v2961
    %v3225 = vunpack.c.l.b16 %v2962
    %v3226 = vunpack.c.l.b16 %v2963
    %v3227 = vunpack.c.l.b16 %v2964
    %v3228 = vunpack.c.l.b16 %v2965
    %v3229 = vunpack.c.l.b16 %v2966
    %v3230 = vunpack.c.l.b16 %v2967
    %v3231 = vunpack.c.l.b16 %v2968
    %v3232 = vunpack.c.l.b16 %v2969
    %v3233 = vunpack.c.l.b16 %v2970
    %v3234 = vunpack.c.l.b16 %v2971
    %v3235 = vunpack.c.l.b16 %v2972
    %v3236 = vunpack.c.l.b16 %v2973
    %v3237 = vpack.c.b16 %v3110, %v3109
    %v3238 = vpack.c.b16 %v3112, %v3111
    %v3239 = vpack.c.b16 %v3114, %v3113
    %v3240 = vpack.c.b16 %v3116, %v3115
    %v3241 = vpack.c.b16 %v3118, %v3117
    %v3242 = vpack.c.b16 %v3120, %v3119
    %v3243 = vpack.c.b16 %v3122, %v3121
    %v3244 = vpack.c.b16 %v3124, %v3123
    %v3245 = vpack.c.b16 %v3126, %v3125
    %v3246 = vpack.c.b16 %v3128, %v3127
    %v3247 = vpack.c.b16 %v3130, %v3129
    %v3248 = vpack.c.b16 %v3132, %v3131
    %v3249 = vpack.c.b16 %v3134, %v3133
    %v3250 = vpack.c.b16 %v3136, %v3135
    %v3251 = vpack.c.b16 %v3138, %v3137
    %v3252 = vpack.c.b16 %v3140, %v3139
    %v3253 = vpack.c.b16 %v3142, %v3141
    %v3254 = vpack.c.b16 %v3144, %v3143
    %v3255 = vpack.c.b16 %v3146, %v3145
    %v3256 = vpack.c.b16 %v3148, %v3147
    %v3257 = vpack.c.b16 %v3150, %v3149
    %v3258 = vpack.c.b16 %v3152, %v3151
    %v3259 = vpack.c.b16 %v3154, %v3153
    %v3260 = vpack.c.b16 %v3156, %v3155
    %v3261 = vpack.c.b16 %v3158, %v3157
    %v3262 = vpack.c.b16 %v3160, %v3159
    %v3263 = vpack.c.b16 %v3162, %v3161
    %v3264 = vpack.c.b16 %v3164, %v3163
    %v3265 = vpack.c.b16 %v3166, %v3165
    %v3266 = vpack.c.b16 %v3168, %v3167
    %v3267 = vpack.c.b16 %v3170, %v3169
    %v3268 = vpack.c.b16 %v3172, %v3171
    %v3269 = vpack.c.b16 %v3174, %v3173
    %v3270 = vpack.c.b16 %v3176, %v3175
    %v3271 = vpack.c.b16 %v3178, %v3177
    %v3272 = vpack.c.b16 %v3180, %v3179
    %v3273 = vpack.c.b16 %v3182, %v3181
    %v3274 = vpack.c.b16 %v3184, %v3183
    %v3275 = vpack.c.b16 %v3186, %v3185
    %v3276 = vpack.c.b16 %v3188, %v3187
    %v3277 = vpack.c.b16 %v3190, %v3189
    %v3278 = vpack.c.b16 %v3192, %v3191
    %v3279 = vpack.c.b16 %v3194, %v3193
    %v3280 = vpack.c.b16 %v3196, %v3195
    %v3281 = vpack.c.b16 %v3198, %v3197
    %v3282 = vpack.c.b16 %v3200, %v3199
    %v3283 = vpack.c.b16 %v3202, %v3201
    %v3284 = vpack.c.b16 %v3204, %v3203
    %v3285 = vpack.c.b16 %v3206, %v3205
    %v3286 = vpack.c.b16 %v3208, %v3207
    %v3287 = vpack.c.b16 %v3210, %v3209
    %v3288 = vpack.c.b16 %v3212, %v3211
    %v3289 = vpack.c.b16 %v3214, %v3213
    %v3290 = vpack.c.b16 %v3216, %v3215
    %v3291 = vpack.c.b16 %v3218, %v3217
    %v3292 = vpack.c.b16 %v3220, %v3219
    %v3293 = vpack.c.b16 %v3222, %v3221
    %v3294 = vpack.c.b16 %v3224, %v3223
    %v3295 = vpack.c.b16 %v3226, %v3225
    %v3296 = vpack.c.b16 %v3228, %v3227
    %v3297 = vpack.c.b16 %v3230, %v3229
    %v3298 = vpack.c.b16 %v3232, %v3231
    %v3299 = vpack.c.b16 %v3234, %v3233
    %v3300 = vpack.c.b16 %v3236, %v3235
    %3365 = vmatprep.subr.bf16.mxu0 0
    %3366 = vmatpush1.bf16.msra.mxu0 %v3244
    %3367 = vmatprep.subr.bf16.mxu0 0
    %3368 = vmatpush1.bf16.msra.mxu0 %v3243
    %3369 = vmatprep.subr.bf16.mxu0 0
    %3370 = vmatpush1.bf16.msra.mxu0 %v3242
    %3371 = vmatprep.subr.bf16.mxu0 0
    %3372 = vmatpush1.bf16.msra.mxu0 %v3241
    %3373 = vmatprep.subr.bf16.mxu0 0
    %3374 = vmatpush1.bf16.msra.mxu0 %v3240
    %3375 = vmatprep.subr.bf16.mxu0 0
    %3376 = vmatpush1.bf16.msra.mxu0 %v3239
    %3377 = vmatprep.subr.bf16.mxu0 0
    %3378 = vmatpush1.bf16.msra.mxu0 %v3238
    %3379 = vmatprep.subr.bf16.mxu0 0
    %3380 = vmatpush1.bf16.msra.mxu0 %v3237
    %3381 = vmatprep.subr.bf16.mxu0 0
    %3382 = vmatpush2.bf16.msra.mxu0 %v3252
    %3383 = vmatprep.subr.bf16.mxu0 0
    %3384 = vmatpush2.bf16.msra.mxu0 %v3251
    %3385 = vmatprep.subr.bf16.mxu0 0
    %3386 = vmatpush2.bf16.msra.mxu0 %v3250
    %3387 = vmatprep.subr.bf16.mxu0 0
    %3388 = vmatpush2.bf16.msra.mxu0 %v3249
    %3389 = vmatprep.subr.bf16.mxu0 0
    %3390 = vmatpush2.bf16.msra.mxu0 %v3248
    %3391 = vmatprep.subr.bf16.mxu0 0
    %3392 = vmatpush2.bf16.msra.mxu0 %v3247
    %3393 = vmatprep.subr.bf16.mxu0 0
    %3394 = vmatpush2.bf16.msra.mxu0 %v3246
    %3395 = vmatprep.subr.bf16.mxu0 0
    %3396 = vmatpush2.bf16.msra.mxu0 %v3245
    %3397 = vmatprep.mubr.bf16.mxu0 %v2839
    %3398 = vmatmul.mubr.bf16.gmra.mxu0 %v2838
    %v3399 = vpop.f32.mrf.mxu0
    %v3400 = vadd.f32 %v2979, %v3399
    %v3401 = vpop.f32.mrf.mxu0
    %v3402 = vpop.f32.mrf.mxu0
    %v3403 = vpop.f32.mrf.mxu0
    %3404 = vdwg.mxu0
    %3405 = vmatprep.subr.bf16.mxu0 0
    %3406 = vmatpush1.bf16.msra.mxu0 %v3260
    %3407 = vmatprep.subr.bf16.mxu0 0
    %3408 = vmatpush1.bf16.msra.mxu0 %v3259
    %3409 = vmatprep.subr.bf16.mxu0 0
    %3410 = vmatpush1.bf16.msra.mxu0 %v3258
    %3411 = vmatprep.subr.bf16.mxu0 0
    %3412 = vmatpush1.bf16.msra.mxu0 %v3257
    %3413 = vmatprep.subr.bf16.mxu0 0
    %3414 = vmatpush1.bf16.msra.mxu0 %v3256
    %3415 = vmatprep.subr.bf16.mxu0 0
    %3416 = vmatpush1.bf16.msra.mxu0 %v3255
    %3417 = vmatprep.subr.bf16.mxu0 0
    %3418 = vmatpush1.bf16.msra.mxu0 %v3254
    %3419 = vmatprep.subr.bf16.mxu0 0
    %3420 = vmatpush1.bf16.msra.mxu0 %v3253
    %3421 = vmatprep.subr.bf16.mxu0 0
    %3422 = vmatpush2.bf16.msra.mxu0 %v3268
    %3423 = vmatprep.subr.bf16.mxu0 0
    %3424 = vmatpush2.bf16.msra.mxu0 %v3267
    %3425 = vmatprep.subr.bf16.mxu0 0
    %3426 = vmatpush2.bf16.msra.mxu0 %v3266
    %3427 = vmatprep.subr.bf16.mxu0 0
    %3428 = vmatpush2.bf16.msra.mxu0 %v3265
    %3429 = vmatprep.subr.bf16.mxu0 0
    %3430 = vmatpush2.bf16.msra.mxu0 %v3264
    %3431 = vmatprep.subr.bf16.mxu0 0
    %3432 = vmatpush2.bf16.msra.mxu0 %v3263
    %3433 = vmatprep.subr.bf16.mxu0 0
    %3434 = vmatpush2.bf16.msra.mxu0 %v3262
    %3435 = vmatprep.subr.bf16.mxu0 0
    %3436 = vmatpush2.bf16.msra.mxu0 %v3261
    %3437 = vmatprep.mubr.bf16.mxu0 %v2841
    %3438 = vmatmul.mubr.bf16.gmra.mxu0 %v2840
    %v3439 = vpop.f32.mrf.mxu0
    %v3440 = vadd.f32 %v3400, %v3439
    %v3441 = vpop.f32.mrf.mxu0
    %v3442 = vpop.f32.mrf.mxu0
    %v3443 = vpop.f32.mrf.mxu0
    %3444 = vdwg.mxu0
    %3445 = vmatprep.subr.bf16.mxu0 0
    %3446 = vmatpush1.bf16.msra.mxu0 %v3276
    %3447 = vmatprep.subr.bf16.mxu0 0
    %3448 = vmatpush1.bf16.msra.mxu0 %v3275
    %3449 = vmatprep.subr.bf16.mxu0 0
    %3450 = vmatpush1.bf16.msra.mxu0 %v3274
    %3451 = vmatprep.subr.bf16.mxu0 0
    %3452 = vmatpush1.bf16.msra.mxu0 %v3273
    %3453 = vmatprep.subr.bf16.mxu0 0
    %3454 = vmatpush1.bf16.msra.mxu0 %v3272
    %3455 = vmatprep.subr.bf16.mxu0 0
    %3456 = vmatpush1.bf16.msra.mxu0 %v3271
    %3457 = vmatprep.subr.bf16.mxu0 0
    %3458 = vmatpush1.bf16.msra.mxu0 %v3270
    %3459 = vmatprep.subr.bf16.mxu0 0
    %3460 = vmatpush1.bf16.msra.mxu0 %v3269
    %3461 = vmatprep.subr.bf16.mxu0 0
    %3462 = vmatpush2.bf16.msra.mxu0 %v3284
    %3463 = vmatprep.subr.bf16.mxu0 0
    %3464 = vmatpush2.bf16.msra.mxu0 %v3283
    %3465 = vmatprep.subr.bf16.mxu0 0
    %3466 = vmatpush2.bf16.msra.mxu0 %v3282
    %3467 = vmatprep.subr.bf16.mxu0 0
    %3468 = vmatpush2.bf16.msra.mxu0 %v3281
    %3469 = vmatprep.subr.bf16.mxu0 0
    %3470 = vmatpush2.bf16.msra.mxu0 %v3280
    %3471 = vmatprep.subr.bf16.mxu0 0
    %3472 = vmatpush2.bf16.msra.mxu0 %v3279
    %3473 = vmatprep.subr.bf16.mxu0 0
    %3474 = vmatpush2.bf16.msra.mxu0 %v3278
    %3475 = vmatprep.subr.bf16.mxu0 0
    %3476 = vmatpush2.bf16.msra.mxu0 %v3277
    %3477 = vmatprep.mubr.bf16.mxu0 %v2843
    %3478 = vmatmul.mubr.bf16.gmra.mxu0 %v2842
    %v3479 = vpop.f32.mrf.mxu0
    %v3480 = vadd.f32 %v3440, %v3479
    %v3481 = vpop.f32.mrf.mxu0
    %v3482 = vpop.f32.mrf.mxu0
    %v3483 = vpop.f32.mrf.mxu0
    %3484 = vdwg.mxu0
    %3485 = vmatprep.subr.bf16.mxu0 0
    %3486 = vmatpush1.bf16.msra.mxu0 %v3292
    %3487 = vmatprep.subr.bf16.mxu0 0
    %3488 = vmatpush1.bf16.msra.mxu0 %v3291
    %3489 = vmatprep.subr.bf16.mxu0 0
    %3490 = vmatpush1.bf16.msra.mxu0 %v3290
    %3491 = vmatprep.subr.bf16.mxu0 0
    %3492 = vmatpush1.bf16.msra.mxu0 %v3289
    %3493 = vmatprep.subr.bf16.mxu0 0
    %3494 = vmatpush1.bf16.msra.mxu0 %v3288
    %3495 = vmatprep.subr.bf16.mxu0 0
    %3496 = vmatpush1.bf16.msra.mxu0 %v3287
    %3497 = vmatprep.subr.bf16.mxu0 0
    %3498 = vmatpush1.bf16.msra.mxu0 %v3286
    %3499 = vmatprep.subr.bf16.mxu0 0
    %3500 = vmatpush1.bf16.msra.mxu0 %v3285
    %3501 = vmatprep.subr.bf16.mxu0 0
    %3502 = vmatpush2.bf16.msra.mxu0 %v3300
    %3503 = vmatprep.subr.bf16.mxu0 0
    %3504 = vmatpush2.bf16.msra.mxu0 %v3299
    %3505 = vmatprep.subr.bf16.mxu0 0
    %3506 = vmatpush2.bf16.msra.mxu0 %v3298
    %3507 = vmatprep.subr.bf16.mxu0 0
    %3508 = vmatpush2.bf16.msra.mxu0 %v3297
    %3509 = vmatprep.subr.bf16.mxu0 0
    %3510 = vmatpush2.bf16.msra.mxu0 %v3296
    %3511 = vmatprep.subr.bf16.mxu0 0
    %3512 = vmatpush2.bf16.msra.mxu0 %v3295
    %3513 = vmatprep.subr.bf16.mxu0 0
    %3514 = vmatpush2.bf16.msra.mxu0 %v3294
    %3515 = vmatprep.subr.bf16.mxu0 0
    %3516 = vmatpush2.bf16.msra.mxu0 %v3293
    %3517 = vmatprep.mubr.bf16.mxu0 %v2845
    %3518 = vmatmul.mubr.bf16.gmra.mxu0 %v2844
    %v3519 = vpop.f32.mrf.mxu0
    %v3520 = vadd.f32 %v3480, %v3519
    %v3521 = vpop.f32.mrf.mxu0
    %v3522 = vpop.f32.mrf.mxu0
    %v3523 = vpop.f32.mrf.mxu0
    %3524 = vdwg.mxu0
    %v3525 = vtanh.pop %v3520
    %3526 = vst [vmem:[#allocation14] sm:$0xff] %v3525
    // Predicated region
    $region74: #{tpu_custom_call.1} parent=1 // pred_check
      _
    $region75: #{tpu_custom_call.1} parent=1 // pred_check_branch
      %3528 = sbr.rel (0) target = $region77
    $region76: #{tpu_custom_call.1} parent=1 // pred_region
      %s3530 = ssub.s32 128, 128
      %3531 = vsyncadd [#allocation4], %s3530
      %s3533 = sshll.u32 [#allocation14], 4
      %s3534 = int_to_ptr.vmem [resolvable:$true] %s3533
      %3536 = dma.vmem_to_hbm [thread:$0]  %s3534, 128, %s11, [#allocation4]
    $region77: #{tpu_custom_call.1} parent=1 // pred_fallthru
      _
    // Predicated region
    $region78: #{tpu_custom_call.1} parent=1 // pred_check
      _
    $region79: #{tpu_custom_call.1} parent=1 // pred_check_branch
      %3538 = sbr.rel (0) target = $region81
    $region80: #{tpu_custom_call.1} parent=1 // pred_region
      %3539 = dma.done [#allocation4], 128
    $region81: #{tpu_custom_call.1} parent=1 // pred_fallthru
      _
    %3540 = vsyncpa [#allocation3], 1
    %3541 = vsyncpa [#allocation6], 1
    %3542 = vsyncpa [#allocation9], 1
    %3543 = vsyncpa [#allocation12], 1
    %3544 = vsyncpa [#allocation4], 1

</llo_original>
